<compile_context>
chip_gen: v7x
topology: tpu7x:2x2x1
jax: 0.10.0
libtpu: 0.0.40
codegen_flags: <defaults>
</compile_context>

<pallas_src>
import jax
import jax.numpy as jnp
from jax.experimental import pallas as pl
from jax.experimental.pallas import tpu as pltpu


def mlp_kernel(x_ref, w1_ref, b1_ref, w2_ref, b2_ref, o_ref, xb_ref):
    # x_ref:  (Tp, 384) f32   (resident across all grid steps)
    # w1_ref: (384, TILE_H) bf16, b1_ref: (1, TILE_H) f32   (per-step hidden tile)
    # w2_ref: (TILE_H, 384) bf16, b2_ref: (1, 384) f32      (b2 resident)
    # o_ref:  (Tp, 384) f32  -- VMEM-resident accumulator (constant index_map)
    # xb_ref: (Tp, 384) bf16 scratch -- one-time cast of the activation block
    k = pl.program_id(0)

    @pl.when(k == 0)
    def _():
        # One-time f32 -> bf16 cast of the resident activation block (reused every step).
        xb_ref[...] = x_ref[...].astype(jnp.bfloat16)
        # Fold the second-layer bias into the accumulator init; the output block is
        # VMEM-resident across the whole reduction, so accumulate straight into o_ref.
        o_ref[...] = jnp.broadcast_to(b2_ref[...], o_ref.shape)

    h = jnp.dot(xb_ref[...], w1_ref[...],
                preferred_element_type=jnp.float32) + b1_ref[...]
    # exact GELU (approximate='none'): 0.5 * h * (1 + erf(h / sqrt(2))), kept in f32
    h = 0.5 * h * (1.0 + jax.lax.erf(h * jnp.float32(0.7071067811865476)))
    o_ref[...] += jnp.dot(h.astype(jnp.bfloat16), w2_ref[...],
                          preferred_element_type=jnp.float32)


def _pick_tile_h(hid):
    """v7x: 2 grid steps (per-step overhead > weight-tile DMA at ~3.2 TB/s).
    v5e/v6e: keep the 3-step pipeline where DMA and MXU time are balanced."""
    kind = ""
    try:
        kind = jax.devices()[0].device_kind.lower()
    except Exception:
        pass
    if "v7" in kind and hid % 768 == 0:
        return 768
    return 512 if hid % 512 == 0 else hid


def mlp_forward(x, w1, b1, w2, b2, *, tile_h=None):
    """x: [N, H, W, 384] float32 -> [N, H, W, 384] float32."""
    N, H, W, C = x.shape
    HID = w1.shape[1]
    if tile_h is None:
        tile_h = _pick_tile_h(HID)
    assert HID % tile_h == 0
    T = N * H * W
    Tp = ((T + 15) // 16) * 16          # 196 -> 208: bf16/f32 sublane aligned rows

    # Only a tiny f32 row-pad in the wrapper; the bf16 cast happens inside the kernel.
    x2d = jnp.pad(x.reshape(T, C).astype(jnp.float32), ((0, Tp - T), (0, 0)))
    # bf16 weight operands (f32 accumulation): halves weight HBM traffic, bf16-native MXU.
    w1b = w1.astype(jnp.bfloat16)
    w2b = w2.astype(jnp.bfloat16)
    b1_2d = b1.reshape(1, HID).astype(jnp.float32)
    b2_2d = b2.reshape(1, C).astype(jnp.float32)

    n_k = HID // tile_h                 # shallow reduction grid (2-3 steps)
    grid_spec = pltpu.PrefetchScalarGridSpec(
        num_scalar_prefetch=0,
        grid=(n_k,),
        in_specs=[
            pl.BlockSpec((Tp, C), lambda k: (0, 0)),       # x: resident across k
            pl.BlockSpec((C, tile_h), lambda k: (0, k)),   # w1 hidden tile
            pl.BlockSpec((1, tile_h), lambda k: (0, k)),   # b1 hidden tile
            pl.BlockSpec((tile_h, C), lambda k: (k, 0)),   # w2 hidden tile
            pl.BlockSpec((1, C), lambda k: (0, 0)),        # b2: resident
        ],
        out_specs=pl.BlockSpec((Tp, C), lambda k: (0, 0)), # resident accumulator
        scratch_shapes=[pltpu.VMEM((Tp, C), jnp.bfloat16)],
    )
    out2d = pl.pallas_call(
        mlp_kernel,
        out_shape=jax.ShapeDtypeStruct((Tp, C), jnp.float32),
        grid_spec=grid_spec,
        # Footprint (~3-4.5 MiB with double-buffered weight tiles) fits the default
        # scoped VMEM limit on every generation, so no vmem_limit_bytes override.
        compiler_params=pltpu.CompilerParams(
            dimension_semantics=("arbitrary",)),
    )(x2d, w1b, b1_2d, w2b, b2_2d)
    return out2d[:T].reshape(N, H, W, C)


def reference(x, w1, b1, w2, b2):
    h = x @ w1 + b1
    h = jax.nn.gelu(h, approximate=False)
    return h @ w2 + b2


if __name__ == "__main__":
    key = jax.random.PRNGKey(0)
    k_x, k_w1, k_b1, k_w2, k_b2 = jax.random.split(key, 5)

    IN, HID = 384, 1536
    # Deterministic synthetic parameters (shapes from the module's __init__).
    # Weights stored as (in_features, out_features) so that y = x @ W + b,
    # which matches PyTorch's y = x @ W_pt.T + b semantics.
    x = jax.random.normal(k_x, (1, 14, 14, IN), dtype=jnp.float32)
    w1 = jax.random.normal(k_w1, (IN, HID), dtype=jnp.float32) * (1.0 / IN ** 0.5)
    b1 = jax.random.normal(k_b1, (HID,), dtype=jnp.float32) * 0.01
    w2 = jax.random.normal(k_w2, (HID, IN), dtype=jnp.float32) * (1.0 / HID ** 0.5)
    b2 = jax.random.normal(k_b2, (IN,), dtype=jnp.float32) * 0.01

    out = mlp_forward(x, w1, b1, w2, b2)
    out = jax.block_until_ready(out)

    ref = reference(x, w1, b1, w2, b2)
    assert out.shape == (1, 14, 14, IN), out.shape
    # Tolerance relaxed vs a pure-f32 version because matmul operands are bf16
    # (f32 accumulation); observed error is ~1e-2 abs in the tails.
    assert jnp.allclose(out, ref, atol=5e-2, rtol=5e-2), float(jnp.max(jnp.abs(out - ref)))

    print("KERNEL_OK")
</pallas_src>

<mosaic_0001>
module attributes {stable_mosaic.version = 11 : i64} {
  func.func @mlp_kernel(%arg0: i32, %arg1: memref<208x384xf32, #tpu.memory_space<vmem>>, %arg2: memref<384x512xbf16, #tpu.memory_space<vmem>>, %arg3: memref<1x512xf32, #tpu.memory_space<vmem>>, %arg4: memref<512x384xbf16, #tpu.memory_space<vmem>>, %arg5: memref<1x384xf32, #tpu.memory_space<vmem>>, %arg6: memref<208x384xf32, #tpu.memory_space<vmem>>, %arg7: memref<208x384xbf16, #tpu.memory_space<vmem>>) attributes {dimension_semantics = [#tpu.dimension_semantics<arbitrary>], iteration_bounds = array<i64: 3>, scalar_prefetch = 0 : i64, scratch_operands = 1 : i64, tpu.core_type = #tpu.core_type<tc>, window_params = [{pipeline_mode = #tpu.pipeline_mode<synchronous>, transform_indices = @transform_0, window_bounds = array<i64: 208, 384>}, {transform_indices = @transform_1, window_bounds = array<i64: 384, 512>}, {transform_indices = @transform_2, window_bounds = array<i64: 1, 512>}, {transform_indices = @transform_3, window_bounds = array<i64: 512, 384>}, {pipeline_mode = #tpu.pipeline_mode<synchronous>, transform_indices = @transform_4, window_bounds = array<i64: 1, 384>}, {pipeline_mode = #tpu.pipeline_mode<synchronous>, transform_indices = @transform_5, window_bounds = array<i64: 208, 384>}]} {
    %c0_i32 = arith.constant 0 : i32
    %0 = arith.cmpi eq, %arg0, %c0_i32 : i32
    %1 = arith.extui %0 : i1 to i32
    %c0_i32_0 = arith.constant 0 : i32
    %2 = arith.cmpi ne, %1, %c0_i32_0 : i32
    scf.if %2 {
      %c0_16 = arith.constant 0 : index
      %c0_17 = arith.constant 0 : index
      %23 = vector.load %arg1[%c0_16, %c0_17] : memref<208x384xf32, #tpu.memory_space<vmem>>, vector<208x384xf32>
      %24 = arith.truncf %23 : vector<208x384xf32> to vector<208x384xbf16>
      %c0_18 = arith.constant 0 : index
      %c0_19 = arith.constant 0 : index
      %25 = vector.load %arg7[%c0_18, %c0_19] : memref<208x384xbf16, #tpu.memory_space<vmem>>, vector<208x384xbf16>
      tpu.vector_store %arg7[%c0_18, %c0_19], %24 {strides = array<i32>} : memref<208x384xbf16, #tpu.memory_space<vmem>>, vector<208x384xbf16>,
      %c0_20 = arith.constant 0 : index
      %c0_21 = arith.constant 0 : index
      %26 = vector.load %arg5[%c0_20, %c0_21] : memref<1x384xf32, #tpu.memory_space<vmem>>, vector<1x384xf32>
      %27 = vector.shape_cast %26 : vector<1x384xf32> to vector<1x384xf32>
      %28 = vector.broadcast %27 : vector<1x384xf32> to vector<208x384xf32>
      %c0_22 = arith.constant 0 : index
      %c0_23 = arith.constant 0 : index
      %29 = vector.load %arg6[%c0_22, %c0_23] : memref<208x384xf32, #tpu.memory_space<vmem>>, vector<208x384xf32>
      tpu.vector_store %arg6[%c0_22, %c0_23], %28 {strides = array<i32>} : memref<208x384xf32, #tpu.memory_space<vmem>>, vector<208x384xf32>,
    } else {
    }
    %c0 = arith.constant 0 : index
    %c0_1 = arith.constant 0 : index
    %3 = vector.load %arg7[%c0, %c0_1] : memref<208x384xbf16, #tpu.memory_space<vmem>>, vector<208x384xbf16>
    %c0_2 = arith.constant 0 : index
    %c0_3 = arith.constant 0 : index
    %4 = vector.load %arg2[%c0_2, %c0_3] : memref<384x512xbf16, #tpu.memory_space<vmem>>, vector<384x512xbf16>
    %cst = arith.constant dense<0.000000e+00> : vector<208x512xf32>
    %5 = tpu.matmul %3, %4, %cst {dimension_numbers = #tpu.dot_dimension_numbers<[1], [0], [0], [1], [0, 0, 1, 1], [], []>} : vector<208x384xbf16>, vector<384x512xbf16>, vector<208x512xf32> -> vector<208x512xf32>
    %c0_4 = arith.constant 0 : index
    %c0_5 = arith.constant 0 : index
    %6 = vector.load %arg3[%c0_4, %c0_5] : memref<1x512xf32, #tpu.memory_space<vmem>>, vector<1x512xf32>
    %7 = vector.broadcast %6 : vector<1x512xf32> to vector<208x512xf32>
    %8 = arith.addf %5, %7 : vector<208x512xf32>
    %cst_6 = arith.constant 5.000000e-01 : f32
    %9 = vector.broadcast %cst_6 : f32 to vector<208x512xf32>
    %10 = arith.mulf %9, %8 : vector<208x512xf32>
    %cst_7 = arith.constant 0.707106769 : f32
    %11 = vector.broadcast %cst_7 : f32 to vector<208x512xf32>
    %12 = arith.mulf %8, %11 : vector<208x512xf32>
    %13 = math.erf %12 : vector<208x512xf32>
    %cst_8 = arith.constant 1.000000e+00 : f32
    %14 = vector.broadcast %cst_8 : f32 to vector<208x512xf32>
    %15 = arith.addf %14, %13 : vector<208x512xf32>
    %16 = arith.mulf %10, %15 : vector<208x512xf32>
    %c0_9 = arith.constant 0 : index
    %c0_10 = arith.constant 0 : index
    %17 = vector.load %arg6[%c0_9, %c0_10] : memref<208x384xf32, #tpu.memory_space<vmem>>, vector<208x384xf32>
    %18 = arith.truncf %16 : vector<208x512xf32> to vector<208x512xbf16>
    %c0_11 = arith.constant 0 : index
    %c0_12 = arith.constant 0 : index
    %19 = vector.load %arg4[%c0_11, %c0_12] : memref<512x384xbf16, #tpu.memory_space<vmem>>, vector<512x384xbf16>
    %cst_13 = arith.constant dense<0.000000e+00> : vector<208x384xf32>
    %20 = tpu.matmul %18, %19, %cst_13 {dimension_numbers = #tpu.dot_dimension_numbers<[1], [0], [0], [1], [0, 0, 1, 1], [], []>} : vector<208x512xbf16>, vector<512x384xbf16>, vector<208x384xf32> -> vector<208x384xf32>
    %21 = arith.addf %17, %20 : vector<208x384xf32>
    %c0_14 = arith.constant 0 : index
    %c0_15 = arith.constant 0 : index
    %22 = vector.load %arg6[%c0_14, %c0_15] : memref<208x384xf32, #tpu.memory_space<vmem>>, vector<208x384xf32>
    tpu.vector_store %arg6[%c0_14, %c0_15], %21 {strides = array<i32>} : memref<208x384xf32, #tpu.memory_space<vmem>>, vector<208x384xf32>,
    return
  }
  func.func @transform_0(%arg0: i32) -> (i32, i32) {
    %c0_i32 = arith.constant 0 : i32
    %c0_i32_0 = arith.constant 0 : i32
    %c0_i32_1 = arith.constant 0 : i32
    return %c0_i32, %c0_i32_0 : i32, i32
  }
  func.func @transform_1(%arg0: i32) -> (i32, i32) {
    %c0_i32 = arith.constant 0 : i32
    %c0_i32_0 = arith.constant 0 : i32
    return %c0_i32, %arg0 : i32, i32
  }
  func.func @transform_2(%arg0: i32) -> (i32, i32) {
    %c0_i32 = arith.constant 0 : i32
    %c0_i32_0 = arith.constant 0 : i32
    return %c0_i32, %arg0 : i32, i32
  }
  func.func @transform_3(%arg0: i32) -> (i32, i32) {
    %c0_i32 = arith.constant 0 : i32
    %c0_i32_0 = arith.constant 0 : i32
    return %arg0, %c0_i32 : i32, i32
  }
  func.func @transform_4(%arg0: i32) -> (i32, i32) {
    %c0_i32 = arith.constant 0 : i32
    %c0_i32_0 = arith.constant 0 : i32
    %c0_i32_1 = arith.constant 0 : i32
    return %c0_i32, %c0_i32_0 : i32, i32
  }
  func.func @transform_5(%arg0: i32) -> (i32, i32) {
    %c0_i32 = arith.constant 0 : i32
    %c0_i32_0 = arith.constant 0 : i32
    %c0_i32_1 = arith.constant 0 : i32
    return %c0_i32, %c0_i32_0 : i32, i32
  }
}

</mosaic_0001>

<llo_original>
// kernel: tpu_custom_call.1
$region0: #{tpu_custom_call.1}
  #allocation0 [shape = 'u32[]', space=smem, size = 0x4, offset = 0x4, fixed_abs, tag = 'smem constant byte address 0x4 - core index']
  #allocation1 [shape = 'u32[144,128]{1,0:T(1,128)}', space=vmem, size = 0x12000, scoped, tag = 'internal scratch']
  #allocation2 [shape = 'bf16[208,384]{1,0:T(16,128)(2,1)}', space=vmem, size = 0x27000, scoped, tag = 'scratch operand']
  %s0 = inlined_call_operand.hbm [shape: f32[208,384], index: 0, kind: input, shape index: {}]
  %s1 = inlined_call_operand.hbm [shape: bf16[384,1536], index: 1, kind: input, shape index: {}]
  %s2 = inlined_call_operand.hbm [shape: f32[1,1536], index: 2, kind: input, shape index: {}]
  %s3 = inlined_call_operand.hbm [shape: bf16[1536,384], index: 3, kind: input, shape index: {}]
  %s4 = inlined_call_operand.hbm [shape: f32[1,384], index: 4, kind: input, shape index: {}]
  %s5 = inlined_call_operand.hbm [shape: f32[208,384], index: 5, kind: output, shape index: {}]
  %s6 = sld [smem:[#allocation0]]
  $region77: #{tpu_custom_call.1} parent=0
    _
  %s8 = ssub.s32 1, %s6
  %s9 = scalar_select 0, %s8, %s6
  $region1: #{tpu_custom_call.1} parent=0
    #allocation3 [shape = 'u8[319488]{0}', space=vmem, size = 0x4e000, scoped, tag = 'input window, operand 0, single buffered']
    #allocation4 [shape = 's32[2]{0}', space=sflag, size = 0x8, scoped, tag = 'scoped memory for tpu_custom_call.1']
    #allocation5 [shape = 's32[2]{0}', space=sflag, size = 0x8, scoped, tag = 'scoped memory for tpu_custom_call.1']
    #allocation6 [shape = 'u8[786432]{0}', space=vmem, size = 0xc0000, scoped, tag = 'input window, operand 1']
    #allocation7 [shape = 's32[2]{0}', space=sflag, size = 0x8, scoped, tag = 'scoped memory for tpu_custom_call.1']
    #allocation8 [shape = 'u8[4096]{0}', space=vmem, size = 0x1000, scoped, tag = 'input window, operand 2']
    #allocation9 [shape = 'u8[786432]{0}', space=vmem, size = 0xc0000, scoped, tag = 'input window, operand 3']
    #allocation10 [shape = 's32[2]{0}', space=sflag, size = 0x8, scoped, tag = 'scoped memory for tpu_custom_call.1']
    #allocation11 [shape = 'u8[1536]{0}', space=vmem, size = 0x800, scoped, tag = 'input window, operand 4, single buffered']
    #allocation12 [shape = 'u8[319488]{0}', space=vmem, size = 0x4e000, scoped, tag = 'output window, operand 0, single buffered']
    %10 = vsyncpa [#allocation4], 0
    %11 = vsyncpa [#allocation7], 0
    %s12 = scalar_lea.sflag [#allocation7], 1
    %13 = vsyncpa %s12, 0
    %14 = vsyncpa [#allocation10], 0
    %s15 = scalar_lea.sflag [#allocation10], 1
    %16 = vsyncpa %s15, 0
    %17 = vsyncpa [#allocation5], 0
    loop: start=0, step=1, limit=5
    $region2: #{tpu_custom_call.1} parent=1 // loop_pre_header
      _
    $region3: #{tpu_custom_call.1} parent=1 // loop_header
      %s19 = sphi 0, %s23
      %p20 = scmp.ge.s32.totalorder %s19, 5
      %s27 = sphi 0, %s27
      %s29 = sphi 0, %s27
      %s30 = sphi 0, %s29
      %s44 = sphi 0, %s30
      %s50 = sphi 0, %s52
      %s53 = sphi 0, %s50
      %s54 = sphi 0, %s53
      %s70 = sphi 0, %s54
      %s76 = sphi 0, %s78
      %s79 = sphi 0, %s76
      %s80 = sphi 0, %s79
      %s96 = sphi 0, %s80
      %s102 = sphi 0, %s104
      %s105 = sphi 0, %s102
      %s106 = sphi 0, %s105
      %s122 = sphi 0, %s106
      %s126 = sphi 0, %s126
      %s128 = sphi 0, %s126
      %s129 = sphi 0, %s128
      %s143 = sphi 0, %s129
      %s147 = sphi 0, %s147
      %s149 = sphi 0, %s147
      %s150 = sphi 0, %s149
      %s164 = sphi 0, %s150
    $region4: #{tpu_custom_call.1} parent=1 // loop_header_branch
      %22 = sbr.rel (%p20) target = $region8
    $region5: #{tpu_custom_call.1} parent=1 // loop_body
      %s24 = ssub.s32 %s19, 1
      %s25 = ssub.s32 %s19, 2
      %s26 = sadd.s32 %s19, 1
      %s28 = sadd.s32 %s27, 1
      %p31 = scmp.eq.s32.totalorder %s19, 2
      %p32 = scmp.ne.s32.totalorder %s27, %s29
      %p33 = scmp.eq.s32.totalorder %s19, 0
      %p34 = por %p32, %p33
      %p35 = scmp.ne.s32.totalorder %s27, %s29
      %p36 = scmp.eq.s32.totalorder %s24, 2
      %p37 = por %p35, %p36
      %p38 = scmp.ne.s32.totalorder %s29, %s30
      %p39 = scmp.eq.s32.totalorder %s24, 0
      %p40 = por %p38, %p39
      %p41 = scmp.ne.s32.totalorder %s29, %s30
      %p42 = scmp.eq.s32.totalorder %s25, 2
      %p43 = por %p41, %p42
      %p45 = scmp.ne.s32.totalorder %s30, %s44
      %p46 = scmp.eq.s32.totalorder %s25, 0
      %p47 = por %p45, %p46
      %s48 = ssub.s32 %s19, %s26
      %p49 = scmp.eq.s32.totalorder %s48, 0
      %s51 = sadd.s32 %s50, 1
      %s52 = scalar_select %p49, %s50, %s51
      %p55 = pneg %p49
      %p56 = scmp.eq.s32.totalorder %s19, 2
      %p57 = por %p55, %p56
      %p58 = scmp.ne.s32.totalorder %s50, %s53
      %p59 = scmp.eq.s32.totalorder %s19, 0
      %p60 = por %p58, %p59
      %p61 = scmp.ne.s32.totalorder %s50, %s53
      %p62 = scmp.eq.s32.totalorder %s24, 2
      %p63 = por %p61, %p62
      %p64 = scmp.ne.s32.totalorder %s53, %s54
      %p65 = scmp.eq.s32.totalorder %s24, 0
      %p66 = por %p64, %p65
      %p67 = scmp.ne.s32.totalorder %s53, %s54
      %p68 = scmp.eq.s32.totalorder %s25, 2
      %p69 = por %p67, %p68
      %p71 = scmp.ne.s32.totalorder %s54, %s70
      %p72 = scmp.eq.s32.totalorder %s25, 0
      %p73 = por %p71, %p72
      %s74 = ssub.s32 %s19, %s26
      %p75 = scmp.eq.s32.totalorder %s74, 0
      %s77 = sadd.s32 %s76, 1
      %s78 = scalar_select %p75, %s76, %s77
      %p81 = pneg %p75
      %p82 = scmp.eq.s32.totalorder %s19, 2
      %p83 = por %p81, %p82
      %p84 = scmp.ne.s32.totalorder %s76, %s79
      %p85 = scmp.eq.s32.totalorder %s19, 0
      %p86 = por %p84, %p85
      %p87 = scmp.ne.s32.totalorder %s76, %s79
      %p88 = scmp.eq.s32.totalorder %s24, 2
      %p89 = por %p87, %p88
      %p90 = scmp.ne.s32.totalorder %s79, %s80
      %p91 = scmp.eq.s32.totalorder %s24, 0
      %p92 = por %p90, %p91
      %p93 = scmp.ne.s32.totalorder %s79, %s80
      %p94 = scmp.eq.s32.totalorder %s25, 2
      %p95 = por %p93, %p94
      %p97 = scmp.ne.s32.totalorder %s80, %s96
      %p98 = scmp.eq.s32.totalorder %s25, 0
      %p99 = por %p97, %p98
      %s100 = ssub.s32 %s19, %s26
      %p101 = scmp.eq.s32.totalorder %s100, 0
      %s103 = sadd.s32 %s102, 1
      %s104 = scalar_select %p101, %s102, %s103
      %p107 = pneg %p101
      %p108 = scmp.eq.s32.totalorder %s19, 2
      %p109 = por %p107, %p108
      %p110 = scmp.ne.s32.totalorder %s102, %s105
      %p111 = scmp.eq.s32.totalorder %s19, 0
      %p112 = por %p110, %p111
      %p113 = scmp.ne.s32.totalorder %s102, %s105
      %p114 = scmp.eq.s32.totalorder %s24, 2
      %p115 = por %p113, %p114
      %p116 = scmp.ne.s32.totalorder %s105, %s106
      %p117 = scmp.eq.s32.totalorder %s24, 0
      %p118 = por %p116, %p117
      %p119 = scmp.ne.s32.totalorder %s105, %s106
      %p120 = scmp.eq.s32.totalorder %s25, 2
      %p121 = por %p119, %p120
      %p123 = scmp.ne.s32.totalorder %s106, %s122
      %p124 = scmp.eq.s32.totalorder %s25, 0
      %p125 = por %p123, %p124
      %s127 = sadd.s32 %s126, 1
      %p130 = scmp.eq.s32.totalorder %s19, 2
      %p131 = scmp.ne.s32.totalorder %s126, %s128
      %p132 = scmp.eq.s32.totalorder %s19, 0
      %p133 = por %p131, %p132
      %p134 = scmp.ne.s32.totalorder %s126, %s128
      %p135 = scmp.eq.s32.totalorder %s24, 2
      %p136 = por %p134, %p135
      %p137 = scmp.ne.s32.totalorder %s128, %s129
      %p138 = scmp.eq.s32.totalorder %s24, 0
      %p139 = por %p137, %p138
      %p140 = scmp.ne.s32.totalorder %s128, %s129
      %p141 = scmp.eq.s32.totalorder %s25, 2
      %p142 = por %p140, %p141
      %p144 = scmp.ne.s32.totalorder %s129, %s143
      %p145 = scmp.eq.s32.totalorder %s25, 0
      %p146 = por %p144, %p145
      %s148 = sadd.s32 %s147, 1
      %p151 = scmp.eq.s32.totalorder %s19, 2
      %p152 = scmp.ne.s32.totalorder %s147, %s149
      %p153 = scmp.eq.s32.totalorder %s19, 0
      %p154 = por %p152, %p153
      %p155 = scmp.ne.s32.totalorder %s147, %s149
      %p156 = scmp.eq.s32.totalorder %s24, 2
      %p157 = por %p155, %p156
      %p158 = scmp.ne.s32.totalorder %s149, %s150
      %p159 = scmp.eq.s32.totalorder %s24, 0
      %p160 = por %p158, %p159
      %p161 = scmp.ne.s32.totalorder %s149, %s150
      %p162 = scmp.eq.s32.totalorder %s25, 2
      %p163 = por %p161, %p162
      %p165 = scmp.ne.s32.totalorder %s150, %s164
      %p166 = scmp.eq.s32.totalorder %s25, 0
      %p167 = por %p165, %p166
      %p168 = scmp.le.s32.totalorder 1, %s19
      %p169 = scmp.lt.s32.totalorder %s19, 4
      %p170 = pnand %p168, %p169
      %p171 = pneg %p170
      // Predicated region
      $region9: #{tpu_custom_call.1} parent=5 // pred_check
        _
      $region10: #{tpu_custom_call.1} parent=5 // pred_check_branch
        %173 = sbr.rel (%p170) target = $region12
      $region11: #{tpu_custom_call.1} parent=5 // pred_region
        %s174 = ssub.s32 %s19, 1
        // Predicated region
        $region13: #{tpu_custom_call.1} parent=11 // pred_check
          %p175 = pneg %p40
        $region14: #{tpu_custom_call.1} parent=11 // pred_check_branch
          %177 = sbr.rel (%p175) target = $region16
        $region15: #{tpu_custom_call.1} parent=11 // pred_region
          %s179 = ssub.s32 9984, 9984
          %180 = vsyncadd [#allocation4], %s179
          %s181 = sshll.u32 [#allocation3], 4
          %s182 = int_to_ptr.vmem [resolvable:$true] %s181
          %187 = dma.hbm_to_vmem [thread:$0]  %s0, 9984, %s182, [#allocation4], 384, 384, 24
        $region16: #{tpu_custom_call.1} parent=11 // pred_fallthru
          _
        // Predicated region
        $region17: #{tpu_custom_call.1} parent=11 // pred_check
          %p188 = pneg %p139
        $region18: #{tpu_custom_call.1} parent=11 // pred_check_branch
          %190 = sbr.rel (%p188) target = $region20
        $region19: #{tpu_custom_call.1} parent=11 // pred_region
          %s192 = ssub.s32 48, 48
          %193 = vsyncadd [#allocation10], %s192
          %s195 = sshll.u32 [#allocation11], 4
          %s196 = int_to_ptr.vmem [resolvable:$true] %s195
          %198 = dma.hbm_to_vmem [thread:$0]  %s4, 48, %s196, [#allocation10]
        $region20: #{tpu_custom_call.1} parent=11 // pred_fallthru
          _
      $region12: #{tpu_custom_call.1} parent=5 // pred_fallthru
        _
      %p199 = scmp.lt.s32.totalorder %s19, 3
      // Predicated region
      $region21: #{tpu_custom_call.1} parent=5 // pred_check
        %p200 = pneg %p199
      $region22: #{tpu_custom_call.1} parent=5 // pred_check_branch
        %202 = sbr.rel (%p200) target = $region24
      $region23: #{tpu_custom_call.1} parent=5 // pred_region
        // Predicated region
        $region25: #{tpu_custom_call.1} parent=23 // pred_check
          %p203 = pneg %p60
        $region26: #{tpu_custom_call.1} parent=23 // pred_check_branch
          %205 = sbr.rel (%p203) target = $region28
        $region27: #{tpu_custom_call.1} parent=23 // pred_region
          %s206 = sand.u32 %s19, 1
          %s207 = scalar_lea.sflag [#allocation7], %s206
          %s208 = sand.u32 %s50, 1
          %s209 = smul.addr %s208, 768
          %s210 = scalar_lea.vmem [#allocation6], %s209
          %s211 = smul.u32 4, %s19
          %s213 = ssub.s32 12288, 12288
          %214 = vsyncadd %s207, %s213
          %s215 = smul.addr %s211, 64
          %s216 = scalar_lea.hbm %s1, %s215
          %s217 = sshll.u32 %s210, 4
          %s218 = int_to_ptr.vmem [resolvable:$true] %s217
          %223 = dma.hbm_to_vmem [thread:$0]  %s216, 12288, %s218, %s207, 768, 256, 16
        $region28: #{tpu_custom_call.1} parent=23 // pred_fallthru
          _
        // Predicated region
        $region29: #{tpu_custom_call.1} parent=23 // pred_check
          %p224 = pneg %p86
        $region30: #{tpu_custom_call.1} parent=23 // pred_check_branch
          %226 = sbr.rel (%p224) target = $region32
        $region31: #{tpu_custom_call.1} parent=23 // pred_region
          %s227 = sand.u32 %s19, 1
          %s228 = scalar_lea.sflag [#allocation7], %s227
          %s229 = sand.u32 %s76, 1
          %s230 = smul.addr %s229, 4
          %s231 = scalar_lea.vmem [#allocation8], %s230
          %s232 = smul.u32 4, %s19
          %s234 = ssub.s32 64, 64
          %235 = vsyncadd %s228, %s234
          %s236 = smul.addr %s232, 16
          %s237 = scalar_lea.hbm %s2, %s236
          %s239 = sshll.u32 %s231, 4
          %s240 = int_to_ptr.vmem [resolvable:$true] %s239
          %242 = dma.hbm_to_vmem [thread:$0]  %s237, 64, %s240, %s228
        $region32: #{tpu_custom_call.1} parent=23 // pred_fallthru
          _
        // Predicated region
        $region33: #{tpu_custom_call.1} parent=23 // pred_check
          %p243 = pneg %p112
        $region34: #{tpu_custom_call.1} parent=23 // pred_check_branch
          %245 = sbr.rel (%p243) target = $region36
        $region35: #{tpu_custom_call.1} parent=23 // pred_region
          %s246 = sand.u32 %s19, 1
          %s247 = scalar_lea.sflag [#allocation10], %s246
          %s248 = sand.u32 %s102, 1
          %s249 = smul.addr %s248, 768
          %s250 = scalar_lea.vmem [#allocation9], %s249
          %s251 = smul.u32 64, %s19
          %s253 = ssub.s32 12288, 12288
          %254 = vsyncadd %s247, %s253
          %s255 = smul.addr %s251, 3
          %s256 = smul.addr %s255, 64
          %s257 = scalar_lea.hbm %s3, %s256
          %s258 = sshll.u32 %s250, 4
          %s259 = int_to_ptr.vmem [resolvable:$true] %s258
          %264 = dma.hbm_to_vmem [thread:$0]  %s257, 12288, %s259, %s247, 192, 192, 12
        $region36: #{tpu_custom_call.1} parent=23 // pred_fallthru
          _
      $region24: #{tpu_custom_call.1} parent=5 // pred_fallthru
        _
      %p265 = scmp.le.s32.totalorder 1, %s19
      %p266 = scmp.lt.s32.totalorder %s19, 4
      %p267 = pnand %p265, %p266
      %p268 = pneg %p267
      // Predicated region
      $region37: #{tpu_custom_call.1} parent=5 // pred_check
        _
      $region38: #{tpu_custom_call.1} parent=5 // pred_check_branch
        %270 = sbr.rel (%p267) target = $region40
      $region39: #{tpu_custom_call.1} parent=5 // pred_region
        %s271 = ssub.s32 %s19, 1
        // Predicated region
        $region41: #{tpu_custom_call.1} parent=39 // pred_check
          %p272 = pneg %p40
        $region42: #{tpu_custom_call.1} parent=39 // pred_check_branch
          %274 = sbr.rel (%p272) target = $region44
        $region43: #{tpu_custom_call.1} parent=39 // pred_region
          %275 = dma.done [#allocation4], 9984
        $region44: #{tpu_custom_call.1} parent=39 // pred_fallthru
          _
        %s276 = sand.u32 %s24, 1
        %s277 = scalar_lea.sflag [#allocation7], %s276
        %s278 = sand.u32 %s53, 1
        %s279 = smul.addr %s278, 768
        %s280 = scalar_lea.vmem [#allocation6], %s279
        // Predicated region
        $region45: #{tpu_custom_call.1} parent=39 // pred_check
          %p281 = pneg %p66
        $region46: #{tpu_custom_call.1} parent=39 // pred_check_branch
          %283 = sbr.rel (%p281) target = $region48
        $region47: #{tpu_custom_call.1} parent=39 // pred_region
          %284 = dma.done %s277, 12288
        $region48: #{tpu_custom_call.1} parent=39 // pred_fallthru
          _
        %s285 = sand.u32 %s24, 1
        %s286 = scalar_lea.sflag [#allocation7], %s285
        %s287 = sand.u32 %s79, 1
        %s288 = smul.addr %s287, 4
        %s289 = scalar_lea.vmem [#allocation8], %s288
        // Predicated region
        $region49: #{tpu_custom_call.1} parent=39 // pred_check
          %p290 = pneg %p92
        $region50: #{tpu_custom_call.1} parent=39 // pred_check_branch
          %292 = sbr.rel (%p290) target = $region52
        $region51: #{tpu_custom_call.1} parent=39 // pred_region
          %293 = dma.done %s286, 64
        $region52: #{tpu_custom_call.1} parent=39 // pred_fallthru
          _
        %s294 = sand.u32 %s24, 1
        %s295 = scalar_lea.sflag [#allocation10], %s294
        %s296 = sand.u32 %s105, 1
        %s297 = smul.addr %s296, 768
        %s298 = scalar_lea.vmem [#allocation9], %s297
        // Predicated region
        $region53: #{tpu_custom_call.1} parent=39 // pred_check
          %p299 = pneg %p118
        $region54: #{tpu_custom_call.1} parent=39 // pred_check_branch
          %301 = sbr.rel (%p299) target = $region56
        $region55: #{tpu_custom_call.1} parent=39 // pred_region
          %302 = dma.done %s295, 12288
        $region56: #{tpu_custom_call.1} parent=39 // pred_fallthru
          _
        // Predicated region
        $region57: #{tpu_custom_call.1} parent=39 // pred_check
          %p303 = pneg %p139
        $region58: #{tpu_custom_call.1} parent=39 // pred_check_branch
          %305 = sbr.rel (%p303) target = $region60
        $region59: #{tpu_custom_call.1} parent=39 // pred_region
          %306 = dma.done [#allocation10], 48
        $region60: #{tpu_custom_call.1} parent=39 // pred_fallthru
          _
        %p307 = pneg %p40
        %p308 = pneg %p37
        %s309 = sand.u32 %s24, 1
        %s310 = scalar_lea.sflag [#allocation7], %s309
        %s311 = sand.u32 %s53, 1
        %s312 = smul.addr %s311, 768
        %s313 = scalar_lea.vmem [#allocation6], %s312
        %p314 = pneg %p66
        %p315 = pneg %p63
        %s316 = sand.u32 %s24, 1
        %s317 = scalar_lea.sflag [#allocation7], %s316
        %s318 = sand.u32 %s79, 1
        %s319 = smul.addr %s318, 4
        %s320 = scalar_lea.vmem [#allocation8], %s319
        %p321 = pneg %p92
        %p322 = pneg %p89
        %s323 = sand.u32 %s24, 1
        %s324 = scalar_lea.sflag [#allocation10], %s323
        %s325 = sand.u32 %s105, 1
        %s326 = smul.addr %s325, 768
        %s327 = scalar_lea.vmem [#allocation9], %s326
        %p328 = pneg %p118
        %p329 = pneg %p115
        %p330 = pneg %p139
        %p331 = pneg %p136
        %p332 = pneg %p160
        %p333 = pneg %p157
        %s334 = smul.u32 4, %s24
        %s335 = smul.u32 4, %s24
        %s336 = smul.u32 64, %s24
        %p338 = scmp.eq.s32.totalorder %s24, 0
        // Predicated region
        $region61: #{tpu_custom_call.1} parent=39 // pred_check
          %p339 = pneg %p338
        $region62: #{tpu_custom_call.1} parent=39 // pred_check_branch
          %341 = sbr.rel (%p339) target = $region64
        $region63: #{tpu_custom_call.1} parent=39 // pred_region
          %v342 = vld [vmem:[#allocation3] sm:$0xff]
          %v343 = vld [vmem:[#allocation3 + $0x8] sm:$0xff]
          %v344 = vld [vmem:[#allocation3 + $0x10] sm:$0xff]
          %v345 = vld [vmem:[#allocation3 + $0x18] sm:$0xff]
          %v346 = vld [vmem:[#allocation3 + $0x20] sm:$0xff]
          %v347 = vld [vmem:[#allocation3 + $0x28] sm:$0xff]
          %v348 = vld [vmem:[#allocation3 + $0x30] sm:$0xff]
          %v349 = vld [vmem:[#allocation3 + $0x38] sm:$0xff]
          %v350 = vld [vmem:[#allocation3 + $0x40] sm:$0xff]
          %v351 = vld [vmem:[#allocation3 + $0x48] sm:$0xff]
          %v352 = vld [vmem:[#allocation3 + $0x50] sm:$0xff]
          %v353 = vld [vmem:[#allocation3 + $0x58] sm:$0xff]
          %v354 = vld [vmem:[#allocation3 + $0x60] sm:$0xff]
          %v355 = vld [vmem:[#allocation3 + $0x68] sm:$0xff]
          %v356 = vld [vmem:[#allocation3 + $0x70] sm:$0xff]
          %v357 = vld [vmem:[#allocation3 + $0x78] sm:$0xff]
          %v358 = vld [vmem:[#allocation3 + $0x80] sm:$0xff]
          %v359 = vld [vmem:[#allocation3 + $0x88] sm:$0xff]
          %v360 = vld [vmem:[#allocation3 + $0x90] sm:$0xff]
          %v361 = vld [vmem:[#allocation3 + $0x98] sm:$0xff]
          %v362 = vld [vmem:[#allocation3 + $0xa0] sm:$0xff]
          %v363 = vld [vmem:[#allocation3 + $0xa8] sm:$0xff]
          %v364 = vld [vmem:[#allocation3 + $0xb0] sm:$0xff]
          %v365 = vld [vmem:[#allocation3 + $0xb8] sm:$0xff]
          %v366 = vld [vmem:[#allocation3 + $0xc0] sm:$0xff]
          %v367 = vld [vmem:[#allocation3 + $0xc8] sm:$0xff]
          %v368 = vld [vmem:[#allocation3 + $0xd0] sm:$0xff]
          %v369 = vld [vmem:[#allocation3 + $0xd8] sm:$0xff]
          %v370 = vld [vmem:[#allocation3 + $0xe0] sm:$0xff]
          %v371 = vld [vmem:[#allocation3 + $0xe8] sm:$0xff]
          %v372 = vld [vmem:[#allocation3 + $0xf0] sm:$0xff]
          %v373 = vld [vmem:[#allocation3 + $0xf8] sm:$0xff]
          %v374 = vld [vmem:[#allocation3 + $0x100] sm:$0xff]
          %v375 = vld [vmem:[#allocation3 + $0x108] sm:$0xff]
          %v376 = vld [vmem:[#allocation3 + $0x110] sm:$0xff]
          %v377 = vld [vmem:[#allocation3 + $0x118] sm:$0xff]
          %v378 = vld [vmem:[#allocation3 + $0x120] sm:$0xff]
          %v379 = vld [vmem:[#allocation3 + $0x128] sm:$0xff]
          %v380 = vld [vmem:[#allocation3 + $0x130] sm:$0xff]
          %v381 = vld [vmem:[#allocation3 + $0x138] sm:$0xff]
          %v382 = vld [vmem:[#allocation3 + $0x140] sm:$0xff]
          %v383 = vld [vmem:[#allocation3 + $0x148] sm:$0xff]
          %v384 = vld [vmem:[#allocation3 + $0x150] sm:$0xff]
          %v385 = vld [vmem:[#allocation3 + $0x158] sm:$0xff]
          %v386 = vld [vmem:[#allocation3 + $0x160] sm:$0xff]
          %v387 = vld [vmem:[#allocation3 + $0x168] sm:$0xff]
          %v388 = vld [vmem:[#allocation3 + $0x170] sm:$0xff]
          %v389 = vld [vmem:[#allocation3 + $0x178] sm:$0xff]
          %v390 = vld [vmem:[#allocation3 + $0x180] sm:$0xff]
          %v391 = vld [vmem:[#allocation3 + $0x188] sm:$0xff]
          %v392 = vld [vmem:[#allocation3 + $0x190] sm:$0xff]
          %v393 = vld [vmem:[#allocation3 + $0x198] sm:$0xff]
          %v394 = vld [vmem:[#allocation3 + $0x1a0] sm:$0xff]
          %v395 = vld [vmem:[#allocation3 + $0x1a8] sm:$0xff]
          %v396 = vld [vmem:[#allocation3 + $0x1b0] sm:$0xff]
          %v397 = vld [vmem:[#allocation3 + $0x1b8] sm:$0xff]
          %v398 = vld [vmem:[#allocation3 + $0x1c0] sm:$0xff]
          %v399 = vld [vmem:[#allocation3 + $0x1c8] sm:$0xff]
          %v400 = vld [vmem:[#allocation3 + $0x1d0] sm:$0xff]
          %v401 = vld [vmem:[#allocation3 + $0x1d8] sm:$0xff]
          %v402 = vld [vmem:[#allocation3 + $0x1e0] sm:$0xff]
          %v403 = vld [vmem:[#allocation3 + $0x1e8] sm:$0xff]
          %v404 = vld [vmem:[#allocation3 + $0x1f0] sm:$0xff]
          %v405 = vld [vmem:[#allocation3 + $0x1f8] sm:$0xff]
          %v406 = vld [vmem:[#allocation3 + $0x200] sm:$0xff]
          %v407 = vld [vmem:[#allocation3 + $0x208] sm:$0xff]
          %v408 = vld [vmem:[#allocation3 + $0x210] sm:$0xff]
          %v409 = vld [vmem:[#allocation3 + $0x218] sm:$0xff]
          %v410 = vld [vmem:[#allocation3 + $0x220] sm:$0xff]
          %v411 = vld [vmem:[#allocation3 + $0x228] sm:$0xff]
          %v412 = vld [vmem:[#allocation3 + $0x230] sm:$0xff]
          %v413 = vld [vmem:[#allocation3 + $0x238] sm:$0xff]
          %v414 = vld [vmem:[#allocation3 + $0x240] sm:$0xff]
          %v415 = vld [vmem:[#allocation3 + $0x248] sm:$0xff]
          %v416 = vld [vmem:[#allocation3 + $0x250] sm:$0xff]
          %v417 = vld [vmem:[#allocation3 + $0x258] sm:$0xff]
          %v418 = vld [vmem:[#allocation3 + $0x260] sm:$0xff]
          %v419 = vld [vmem:[#allocation3 + $0x268] sm:$0xff]
          %v420 = vpack.c.bf16 %v345, %v342
          %v421 = vpack.c.bf16 %v346, %v343
          %v422 = vpack.c.bf16 %v347, %v344
          %v423 = vpack.c.bf16 %v351, %v348
          %v424 = vpack.c.bf16 %v352, %v349
          %v425 = vpack.c.bf16 %v353, %v350
          %v426 = vpack.c.bf16 %v357, %v354
          %v427 = vpack.c.bf16 %v358, %v355
          %v428 = vpack.c.bf16 %v359, %v356
          %v429 = vpack.c.bf16 %v363, %v360
          %v430 = vpack.c.bf16 %v364, %v361
          %v431 = vpack.c.bf16 %v365, %v362
          %v432 = vpack.c.bf16 %v369, %v366
          %v433 = vpack.c.bf16 %v370, %v367
          %v434 = vpack.c.bf16 %v371, %v368
          %v435 = vpack.c.bf16 %v375, %v372
          %v436 = vpack.c.bf16 %v376, %v373
          %v437 = vpack.c.bf16 %v377, %v374
          %v438 = vpack.c.bf16 %v381, %v378
          %v439 = vpack.c.bf16 %v382, %v379
          %v440 = vpack.c.bf16 %v383, %v380
          %v441 = vpack.c.bf16 %v387, %v384
          %v442 = vpack.c.bf16 %v388, %v385
          %v443 = vpack.c.bf16 %v389, %v386
          %v444 = vpack.c.bf16 %v393, %v390
          %v445 = vpack.c.bf16 %v394, %v391
          %v446 = vpack.c.bf16 %v395, %v392
          %v447 = vpack.c.bf16 %v399, %v396
          %v448 = vpack.c.bf16 %v400, %v397
          %v449 = vpack.c.bf16 %v401, %v398
          %v450 = vpack.c.bf16 %v405, %v402
          %v451 = vpack.c.bf16 %v406, %v403
          %v452 = vpack.c.bf16 %v407, %v404
          %v453 = vpack.c.bf16 %v411, %v408
          %v454 = vpack.c.bf16 %v412, %v409
          %v455 = vpack.c.bf16 %v413, %v410
          %v456 = vpack.c.bf16 %v417, %v414
          %v457 = vpack.c.bf16 %v418, %v415
          %v458 = vpack.c.bf16 %v419, %v416
          %459 = vst [vmem:[#allocation2] sm:$0xff] %v420
          %460 = vst [vmem:[#allocation2 + $0x8] sm:$0xff] %v421
          %461 = vst [vmem:[#allocation2 + $0x10] sm:$0xff] %v422
          %462 = vst [vmem:[#allocation2 + $0x18] sm:$0xff] %v423
          %463 = vst [vmem:[#allocation2 + $0x20] sm:$0xff] %v424
          %464 = vst [vmem:[#allocation2 + $0x28] sm:$0xff] %v425
          %465 = vst [vmem:[#allocation2 + $0x30] sm:$0xff] %v426
          %466 = vst [vmem:[#allocation2 + $0x38] sm:$0xff] %v427
          %467 = vst [vmem:[#allocation2 + $0x40] sm:$0xff] %v428
          %468 = vst [vmem:[#allocation2 + $0x48] sm:$0xff] %v429
          %469 = vst [vmem:[#allocation2 + $0x50] sm:$0xff] %v430
          %470 = vst [vmem:[#allocation2 + $0x58] sm:$0xff] %v431
          %471 = vst [vmem:[#allocation2 + $0x60] sm:$0xff] %v432
          %472 = vst [vmem:[#allocation2 + $0x68] sm:$0xff] %v433
          %473 = vst [vmem:[#allocation2 + $0x70] sm:$0xff] %v434
          %474 = vst [vmem:[#allocation2 + $0x78] sm:$0xff] %v435
          %475 = vst [vmem:[#allocation2 + $0x80] sm:$0xff] %v436
          %476 = vst [vmem:[#allocation2 + $0x88] sm:$0xff] %v437
          %477 = vst [vmem:[#allocation2 + $0x90] sm:$0xff] %v438
          %478 = vst [vmem:[#allocation2 + $0x98] sm:$0xff] %v439
          %479 = vst [vmem:[#allocation2 + $0xa0] sm:$0xff] %v440
          %480 = vst [vmem:[#allocation2 + $0xa8] sm:$0xff] %v441
          %481 = vst [vmem:[#allocation2 + $0xb0] sm:$0xff] %v442
          %482 = vst [vmem:[#allocation2 + $0xb8] sm:$0xff] %v443
          %483 = vst [vmem:[#allocation2 + $0xc0] sm:$0xff] %v444
          %484 = vst [vmem:[#allocation2 + $0xc8] sm:$0xff] %v445
          %485 = vst [vmem:[#allocation2 + $0xd0] sm:$0xff] %v446
          %486 = vst [vmem:[#allocation2 + $0xd8] sm:$0xff] %v447
          %487 = vst [vmem:[#allocation2 + $0xe0] sm:$0xff] %v448
          %488 = vst [vmem:[#allocation2 + $0xe8] sm:$0xff] %v449
          %489 = vst [vmem:[#allocation2 + $0xf0] sm:$0xff] %v450
          %490 = vst [vmem:[#allocation2 + $0xf8] sm:$0xff] %v451
          %491 = vst [vmem:[#allocation2 + $0x100] sm:$0xff] %v452
          %492 = vst [vmem:[#allocation2 + $0x108] sm:$0xff] %v453
          %493 = vst [vmem:[#allocation2 + $0x110] sm:$0xff] %v454
          %494 = vst [vmem:[#allocation2 + $0x118] sm:$0xff] %v455
          %495 = vst [vmem:[#allocation2 + $0x120] sm:$0xff] %v456
          %496 = vst [vmem:[#allocation2 + $0x128] sm:$0xff] %v457
          %497 = vst [vmem:[#allocation2 + $0x130] sm:$0xff] %v458
          %v498 = vld [vmem:[#allocation11] sm:$0x7]
          %v500 = vlaneseq
          %v501 = vshrl.u32 %v500, 7
          %v502 = vsub.s32 0, %v501
          %v503 = vrot.slane %v498, %v502
          %v504 = vlaneseq
          %v505 = vshrl.u32 %v504, 7
          %v506 = vsub.s32 1, %v505
          %v507 = vrot.slane %v498, %v506
          %v508 = vlaneseq
          %v509 = vshrl.u32 %v508, 7
          %v510 = vsub.s32 2, %v509
          %v511 = vrot.slane %v498, %v510
          %515 = vst [vmem:[#allocation12] sm:$0xff] %v503
          %516 = vst [vmem:[#allocation12 + $0x8] sm:$0xff] %v507
          %517 = vst [vmem:[#allocation12 + $0x10] sm:$0xff] %v511
          %518 = vst [vmem:[#allocation12 + $0x18] sm:$0xff] %v503
          %519 = vst [vmem:[#allocation12 + $0x20] sm:$0xff] %v507
          %520 = vst [vmem:[#allocation12 + $0x28] sm:$0xff] %v511
          %521 = vst [vmem:[#allocation12 + $0x30] sm:$0xff] %v503
          %522 = vst [vmem:[#allocation12 + $0x38] sm:$0xff] %v507
          %523 = vst [vmem:[#allocation12 + $0x40] sm:$0xff] %v511
          %524 = vst [vmem:[#allocation12 + $0x48] sm:$0xff] %v503
          %525 = vst [vmem:[#allocation12 + $0x50] sm:$0xff] %v507
          %526 = vst [vmem:[#allocation12 + $0x58] sm:$0xff] %v511
          %527 = vst [vmem:[#allocation12 + $0x60] sm:$0xff] %v503
          %528 = vst [vmem:[#allocation12 + $0x68] sm:$0xff] %v507
          %529 = vst [vmem:[#allocation12 + $0x70] sm:$0xff] %v511
          %530 = vst [vmem:[#allocation12 + $0x78] sm:$0xff] %v503
          %531 = vst [vmem:[#allocation12 + $0x80] sm:$0xff] %v507
          %532 = vst [vmem:[#allocation12 + $0x88] sm:$0xff] %v511
          %533 = vst [vmem:[#allocation12 + $0x90] sm:$0xff] %v503
          %534 = vst [vmem:[#allocation12 + $0x98] sm:$0xff] %v507
          %535 = vst [vmem:[#allocation12 + $0xa0] sm:$0xff] %v511
          %536 = vst [vmem:[#allocation12 + $0xa8] sm:$0xff] %v503
          %537 = vst [vmem:[#allocation12 + $0xb0] sm:$0xff] %v507
          %538 = vst [vmem:[#allocation12 + $0xb8] sm:$0xff] %v511
          %539 = vst [vmem:[#allocation12 + $0xc0] sm:$0xff] %v503
          %540 = vst [vmem:[#allocation12 + $0xc8] sm:$0xff] %v507
          %541 = vst [vmem:[#allocation12 + $0xd0] sm:$0xff] %v511
          %542 = vst [vmem:[#allocation12 + $0xd8] sm:$0xff] %v503
          %543 = vst [vmem:[#allocation12 + $0xe0] sm:$0xff] %v507
          %544 = vst [vmem:[#allocation12 + $0xe8] sm:$0xff] %v511
          %545 = vst [vmem:[#allocation12 + $0xf0] sm:$0xff] %v503
          %546 = vst [vmem:[#allocation12 + $0xf8] sm:$0xff] %v507
          %547 = vst [vmem:[#allocation12 + $0x100] sm:$0xff] %v511
          %548 = vst [vmem:[#allocation12 + $0x108] sm:$0xff] %v503
          %549 = vst [vmem:[#allocation12 + $0x110] sm:$0xff] %v507
          %550 = vst [vmem:[#allocation12 + $0x118] sm:$0xff] %v511
          %551 = vst [vmem:[#allocation12 + $0x120] sm:$0xff] %v503
          %552 = vst [vmem:[#allocation12 + $0x128] sm:$0xff] %v507
          %553 = vst [vmem:[#allocation12 + $0x130] sm:$0xff] %v511
          %554 = vst [vmem:[#allocation12 + $0x138] sm:$0xff] %v503
          %555 = vst [vmem:[#allocation12 + $0x140] sm:$0xff] %v507
          %556 = vst [vmem:[#allocation12 + $0x148] sm:$0xff] %v511
          %557 = vst [vmem:[#allocation12 + $0x150] sm:$0xff] %v503
          %558 = vst [vmem:[#allocation12 + $0x158] sm:$0xff] %v507
          %559 = vst [vmem:[#allocation12 + $0x160] sm:$0xff] %v511
          %560 = vst [vmem:[#allocation12 + $0x168] sm:$0xff] %v503
          %561 = vst [vmem:[#allocation12 + $0x170] sm:$0xff] %v507
          %562 = vst [vmem:[#allocation12 + $0x178] sm:$0xff] %v511
          %563 = vst [vmem:[#allocation12 + $0x180] sm:$0xff] %v503
          %564 = vst [vmem:[#allocation12 + $0x188] sm:$0xff] %v507
          %565 = vst [vmem:[#allocation12 + $0x190] sm:$0xff] %v511
          %566 = vst [vmem:[#allocation12 + $0x198] sm:$0xff] %v503
          %567 = vst [vmem:[#allocation12 + $0x1a0] sm:$0xff] %v507
          %568 = vst [vmem:[#allocation12 + $0x1a8] sm:$0xff] %v511
          %569 = vst [vmem:[#allocation12 + $0x1b0] sm:$0xff] %v503
          %570 = vst [vmem:[#allocation12 + $0x1b8] sm:$0xff] %v507
          %571 = vst [vmem:[#allocation12 + $0x1c0] sm:$0xff] %v511
          %572 = vst [vmem:[#allocation12 + $0x1c8] sm:$0xff] %v503
          %573 = vst [vmem:[#allocation12 + $0x1d0] sm:$0xff] %v507
          %574 = vst [vmem:[#allocation12 + $0x1d8] sm:$0xff] %v511
          %575 = vst [vmem:[#allocation12 + $0x1e0] sm:$0xff] %v503
          %576 = vst [vmem:[#allocation12 + $0x1e8] sm:$0xff] %v507
          %577 = vst [vmem:[#allocation12 + $0x1f0] sm:$0xff] %v511
          %578 = vst [vmem:[#allocation12 + $0x1f8] sm:$0xff] %v503
          %579 = vst [vmem:[#allocation12 + $0x200] sm:$0xff] %v507
          %580 = vst [vmem:[#allocation12 + $0x208] sm:$0xff] %v511
          %581 = vst [vmem:[#allocation12 + $0x210] sm:$0xff] %v503
          %582 = vst [vmem:[#allocation12 + $0x218] sm:$0xff] %v507
          %583 = vst [vmem:[#allocation12 + $0x220] sm:$0xff] %v511
          %584 = vst [vmem:[#allocation12 + $0x228] sm:$0xff] %v503
          %585 = vst [vmem:[#allocation12 + $0x230] sm:$0xff] %v507
          %586 = vst [vmem:[#allocation12 + $0x238] sm:$0xff] %v511
          %587 = vst [vmem:[#allocation12 + $0x240] sm:$0xff] %v503
          %588 = vst [vmem:[#allocation12 + $0x248] sm:$0xff] %v507
          %589 = vst [vmem:[#allocation12 + $0x250] sm:$0xff] %v511
          %590 = vst [vmem:[#allocation12 + $0x258] sm:$0xff] %v503
          %591 = vst [vmem:[#allocation12 + $0x260] sm:$0xff] %v507
          %592 = vst [vmem:[#allocation12 + $0x268] sm:$0xff] %v511
        $region64: #{tpu_custom_call.1} parent=39 // pred_fallthru
          _
        %v593 = vld [vmem:[#allocation2] sm:$0xff]
        %v594 = vld [vmem:[#allocation2 + $0x8] sm:$0xff]
        %v595 = vld [vmem:[#allocation2 + $0x10] sm:$0xff]
        %v596 = vld [vmem:[#allocation2 + $0x18] sm:$0xff]
        %v597 = vld [vmem:[#allocation2 + $0x20] sm:$0xff]
        %v598 = vld [vmem:[#allocation2 + $0x28] sm:$0xff]
        %v599 = vld [vmem:[#allocation2 + $0x30] sm:$0xff]
        %v600 = vld [vmem:[#allocation2 + $0x38] sm:$0xff]
        %v601 = vld [vmem:[#allocation2 + $0x40] sm:$0xff]
        %v602 = vld [vmem:[#allocation2 + $0x48] sm:$0xff]
        %v603 = vld [vmem:[#allocation2 + $0x50] sm:$0xff]
        %v604 = vld [vmem:[#allocation2 + $0x58] sm:$0xff]
        %v605 = vld [vmem:[#allocation2 + $0x60] sm:$0xff]
        %v606 = vld [vmem:[#allocation2 + $0x68] sm:$0xff]
        %v607 = vld [vmem:[#allocation2 + $0x70] sm:$0xff]
        %v608 = vld [vmem:[#allocation2 + $0x78] sm:$0xff]
        %v609 = vld [vmem:[#allocation2 + $0x80] sm:$0xff]
        %v610 = vld [vmem:[#allocation2 + $0x88] sm:$0xff]
        %v611 = vld [vmem:[#allocation2 + $0x90] sm:$0xff]
        %v612 = vld [vmem:[#allocation2 + $0x98] sm:$0xff]
        %v613 = vld [vmem:[#allocation2 + $0xa0] sm:$0xff]
        %v614 = vld [vmem:[#allocation2 + $0xa8] sm:$0xff]
        %v615 = vld [vmem:[#allocation2 + $0xb0] sm:$0xff]
        %v616 = vld [vmem:[#allocation2 + $0xb8] sm:$0xff]
        %v617 = vld [vmem:[#allocation2 + $0xc0] sm:$0xff]
        %v618 = vld [vmem:[#allocation2 + $0xc8] sm:$0xff]
        %v619 = vld [vmem:[#allocation2 + $0xd0] sm:$0xff]
        %v620 = vld [vmem:[#allocation2 + $0xd8] sm:$0xff]
        %v621 = vld [vmem:[#allocation2 + $0xe0] sm:$0xff]
        %v622 = vld [vmem:[#allocation2 + $0xe8] sm:$0xff]
        %v623 = vld [vmem:[#allocation2 + $0xf0] sm:$0xff]
        %v624 = vld [vmem:[#allocation2 + $0xf8] sm:$0xff]
        %v625 = vld [vmem:[#allocation2 + $0x100] sm:$0xff]
        %v626 = vld [vmem:[#allocation2 + $0x108] sm:$0xff]
        %v627 = vld [vmem:[#allocation2 + $0x110] sm:$0xff]
        %v628 = vld [vmem:[#allocation2 + $0x118] sm:$0xff]
        %v629 = vld [vmem:[#allocation2 + $0x120] sm:$0xff]
        %v630 = vld [vmem:[#allocation2 + $0x128] sm:$0xff]
        %v631 = vld [vmem:[#allocation2 + $0x130] sm:$0xff]
        %v632 = vld [vmem:[%s280] sm:$0xff]
        %v633 = vld [vmem:[%s280 + $0x8] sm:$0xff]
        %v634 = vld [vmem:[%s280 + $0x10] sm:$0xff]
        %v635 = vld [vmem:[%s280 + $0x18] sm:$0xff]
        %v636 = vld [vmem:[%s280 + $0x20] sm:$0xff]
        %v637 = vld [vmem:[%s280 + $0x28] sm:$0xff]
        %v638 = vld [vmem:[%s280 + $0x30] sm:$0xff]
        %v639 = vld [vmem:[%s280 + $0x38] sm:$0xff]
        %v640 = vld [vmem:[%s280 + $0x40] sm:$0xff]
        %v641 = vld [vmem:[%s280 + $0x48] sm:$0xff]
        %v642 = vld [vmem:[%s280 + $0x50] sm:$0xff]
        %v643 = vld [vmem:[%s280 + $0x58] sm:$0xff]
        %v644 = vld [vmem:[%s280 + $0x60] sm:$0xff]
        %v645 = vld [vmem:[%s280 + $0x68] sm:$0xff]
        %v646 = vld [vmem:[%s280 + $0x70] sm:$0xff]
        %v647 = vld [vmem:[%s280 + $0x78] sm:$0xff]
        %v648 = vld [vmem:[%s280 + $0x80] sm:$0xff]
        %v649 = vld [vmem:[%s280 + $0x88] sm:$0xff]
        %v650 = vld [vmem:[%s280 + $0x90] sm:$0xff]
        %v651 = vld [vmem:[%s280 + $0x98] sm:$0xff]
        %v652 = vld [vmem:[%s280 + $0xa0] sm:$0xff]
        %v653 = vld [vmem:[%s280 + $0xa8] sm:$0xff]
        %v654 = vld [vmem:[%s280 + $0xb0] sm:$0xff]
        %v655 = vld [vmem:[%s280 + $0xb8] sm:$0xff]
        %v656 = vld [vmem:[%s280 + $0xc0] sm:$0xff]
        %v657 = vld [vmem:[%s280 + $0xc8] sm:$0xff]
        %v658 = vld [vmem:[%s280 + $0xd0] sm:$0xff]
        %v659 = vld [vmem:[%s280 + $0xd8] sm:$0xff]
        %v660 = vld [vmem:[%s280 + $0xe0] sm:$0xff]
        %v661 = vld [vmem:[%s280 + $0xe8] sm:$0xff]
        %v662 = vld [vmem:[%s280 + $0xf0] sm:$0xff]
        %v663 = vld [vmem:[%s280 + $0xf8] sm:$0xff]
        %v664 = vld [vmem:[%s280 + $0x100] sm:$0xff]
        %v665 = vld [vmem:[%s280 + $0x108] sm:$0xff]
        %v666 = vld [vmem:[%s280 + $0x110] sm:$0xff]
        %v667 = vld [vmem:[%s280 + $0x118] sm:$0xff]
        %v668 = vld [vmem:[%s280 + $0x120] sm:$0xff]
        %v669 = vld [vmem:[%s280 + $0x128] sm:$0xff]
        %v670 = vld [vmem:[%s280 + $0x130] sm:$0xff]
        %v671 = vld [vmem:[%s280 + $0x138] sm:$0xff]
        %v672 = vld [vmem:[%s280 + $0x140] sm:$0xff]
        %v673 = vld [vmem:[%s280 + $0x148] sm:$0xff]
        %v674 = vld [vmem:[%s280 + $0x150] sm:$0xff]
        %v675 = vld [vmem:[%s280 + $0x158] sm:$0xff]
        %v676 = vld [vmem:[%s280 + $0x160] sm:$0xff]
        %v677 = vld [vmem:[%s280 + $0x168] sm:$0xff]
        %v678 = vld [vmem:[%s280 + $0x170] sm:$0xff]
        %v679 = vld [vmem:[%s280 + $0x178] sm:$0xff]
        %v680 = vld [vmem:[%s280 + $0x180] sm:$0xff]
        %v681 = vld [vmem:[%s280 + $0x188] sm:$0xff]
        %v682 = vld [vmem:[%s280 + $0x190] sm:$0xff]
        %v683 = vld [vmem:[%s280 + $0x198] sm:$0xff]
        %v684 = vld [vmem:[%s280 + $0x1a0] sm:$0xff]
        %v685 = vld [vmem:[%s280 + $0x1a8] sm:$0xff]
        %v686 = vld [vmem:[%s280 + $0x1b0] sm:$0xff]
        %v687 = vld [vmem:[%s280 + $0x1b8] sm:$0xff]
        %v688 = vld [vmem:[%s280 + $0x1c0] sm:$0xff]
        %v689 = vld [vmem:[%s280 + $0x1c8] sm:$0xff]
        %v690 = vld [vmem:[%s280 + $0x1d0] sm:$0xff]
        %v691 = vld [vmem:[%s280 + $0x1d8] sm:$0xff]
        %v692 = vld [vmem:[%s280 + $0x1e0] sm:$0xff]
        %v693 = vld [vmem:[%s280 + $0x1e8] sm:$0xff]
        %v694 = vld [vmem:[%s280 + $0x1f0] sm:$0xff]
        %v695 = vld [vmem:[%s280 + $0x1f8] sm:$0xff]
        %v696 = vld [vmem:[%s280 + $0x200] sm:$0xff]
        %v697 = vld [vmem:[%s280 + $0x208] sm:$0xff]
        %v698 = vld [vmem:[%s280 + $0x210] sm:$0xff]
        %v699 = vld [vmem:[%s280 + $0x218] sm:$0xff]
        %v700 = vld [vmem:[%s280 + $0x220] sm:$0xff]
        %v701 = vld [vmem:[%s280 + $0x228] sm:$0xff]
        %v702 = vld [vmem:[%s280 + $0x230] sm:$0xff]
        %v703 = vld [vmem:[%s280 + $0x238] sm:$0xff]
        %v704 = vld [vmem:[%s280 + $0x240] sm:$0xff]
        %v705 = vld [vmem:[%s280 + $0x248] sm:$0xff]
        %v706 = vld [vmem:[%s280 + $0x250] sm:$0xff]
        %v707 = vld [vmem:[%s280 + $0x258] sm:$0xff]
        %v708 = vld [vmem:[%s280 + $0x260] sm:$0xff]
        %v709 = vld [vmem:[%s280 + $0x268] sm:$0xff]
        %v710 = vld [vmem:[%s280 + $0x270] sm:$0xff]
        %v711 = vld [vmem:[%s280 + $0x278] sm:$0xff]
        %v712 = vld [vmem:[%s280 + $0x280] sm:$0xff]
        %v713 = vld [vmem:[%s280 + $0x288] sm:$0xff]
        %v714 = vld [vmem:[%s280 + $0x290] sm:$0xff]
        %v715 = vld [vmem:[%s280 + $0x298] sm:$0xff]
        %v716 = vld [vmem:[%s280 + $0x2a0] sm:$0xff]
        %v717 = vld [vmem:[%s280 + $0x2a8] sm:$0xff]
        %v718 = vld [vmem:[%s280 + $0x2b0] sm:$0xff]
        %v719 = vld [vmem:[%s280 + $0x2b8] sm:$0xff]
        %v720 = vld [vmem:[%s280 + $0x2c0] sm:$0xff]
        %v721 = vld [vmem:[%s280 + $0x2c8] sm:$0xff]
        %v722 = vld [vmem:[%s280 + $0x2d0] sm:$0xff]
        %v723 = vld [vmem:[%s280 + $0x2d8] sm:$0xff]
        %v724 = vld [vmem:[%s280 + $0x2e0] sm:$0xff]
        %v725 = vld [vmem:[%s280 + $0x2e8] sm:$0xff]
        %v726 = vld [vmem:[%s280 + $0x2f0] sm:$0xff]
        %v727 = vld [vmem:[%s280 + $0x2f8] sm:$0xff]
        %v728 = vld [vmem:[%s289] sm:$0xf]
        %v730 = vlaneseq
        %v731 = vshrl.u32 %v730, 7
        %v732 = vsub.s32 0, %v731
        %v733 = vrot.slane %v728, %v732
        %v734 = vlaneseq
        %v735 = vshrl.u32 %v734, 7
        %v736 = vsub.s32 1, %v735
        %v737 = vrot.slane %v728, %v736
        %v738 = vlaneseq
        %v739 = vshrl.u32 %v738, 7
        %v740 = vsub.s32 2, %v739
        %v741 = vrot.slane %v728, %v740
        %v742 = vlaneseq
        %v743 = vshrl.u32 %v742, 7
        %v744 = vsub.s32 3, %v743
        %v745 = vrot.slane %v728, %v744
        %v846 = vunpack.c.l.b16 %v632
        %v847 = vunpack.c.h.b16 %v632
        %v848 = vunpack.c.l.b16 %v633
        %v849 = vunpack.c.h.b16 %v633
        %v850 = vunpack.c.l.b16 %v634
        %v851 = vunpack.c.h.b16 %v634
        %v852 = vunpack.c.l.b16 %v635
        %v853 = vunpack.c.h.b16 %v635
        %v854 = vunpack.c.l.b16 %v636
        %v855 = vunpack.c.h.b16 %v636
        %v856 = vunpack.c.l.b16 %v637
        %v857 = vunpack.c.h.b16 %v637
        %v858 = vunpack.c.l.b16 %v638
        %v859 = vunpack.c.h.b16 %v638
        %v860 = vunpack.c.l.b16 %v639
        %v861 = vunpack.c.h.b16 %v639
        %v862 = vunpack.c.l.b16 %v640
        %v863 = vunpack.c.h.b16 %v640
        %v864 = vunpack.c.l.b16 %v641
        %v865 = vunpack.c.h.b16 %v641
        %v866 = vunpack.c.l.b16 %v642
        %v867 = vunpack.c.h.b16 %v642
        %v868 = vunpack.c.l.b16 %v643
        %v869 = vunpack.c.h.b16 %v643
        %v870 = vunpack.c.l.b16 %v644
        %v871 = vunpack.c.h.b16 %v644
        %v872 = vunpack.c.l.b16 %v645
        %v873 = vunpack.c.h.b16 %v645
        %v874 = vunpack.c.l.b16 %v646
        %v875 = vunpack.c.h.b16 %v646
        %v876 = vunpack.c.l.b16 %v647
        %v877 = vunpack.c.h.b16 %v647
        %v878 = vunpack.c.l.b16 %v648
        %v879 = vunpack.c.h.b16 %v648
        %v880 = vunpack.c.l.b16 %v649
        %v881 = vunpack.c.h.b16 %v649
        %v882 = vunpack.c.l.b16 %v650
        %v883 = vunpack.c.h.b16 %v650
        %v884 = vunpack.c.l.b16 %v651
        %v885 = vunpack.c.h.b16 %v651
        %v886 = vunpack.c.l.b16 %v652
        %v887 = vunpack.c.h.b16 %v652
        %v888 = vunpack.c.l.b16 %v653
        %v889 = vunpack.c.h.b16 %v653
        %v890 = vunpack.c.l.b16 %v654
        %v891 = vunpack.c.h.b16 %v654
        %v892 = vunpack.c.l.b16 %v655
        %v893 = vunpack.c.h.b16 %v655
        %v894 = vunpack.c.l.b16 %v656
        %v895 = vunpack.c.h.b16 %v656
        %v896 = vunpack.c.l.b16 %v657
        %v897 = vunpack.c.h.b16 %v657
        %v898 = vunpack.c.l.b16 %v658
        %v899 = vunpack.c.h.b16 %v658
        %v900 = vunpack.c.l.b16 %v659
        %v901 = vunpack.c.h.b16 %v659
        %v902 = vunpack.c.l.b16 %v660
        %v903 = vunpack.c.h.b16 %v660
        %v904 = vunpack.c.l.b16 %v661
        %v905 = vunpack.c.h.b16 %v661
        %v906 = vunpack.c.l.b16 %v662
        %v907 = vunpack.c.h.b16 %v662
        %v908 = vunpack.c.l.b16 %v663
        %v909 = vunpack.c.h.b16 %v663
        %v910 = vunpack.c.l.b16 %v664
        %v911 = vunpack.c.h.b16 %v664
        %v912 = vunpack.c.l.b16 %v665
        %v913 = vunpack.c.h.b16 %v665
        %v914 = vunpack.c.l.b16 %v666
        %v915 = vunpack.c.h.b16 %v666
        %v916 = vunpack.c.l.b16 %v667
        %v917 = vunpack.c.h.b16 %v667
        %v918 = vunpack.c.l.b16 %v668
        %v919 = vunpack.c.h.b16 %v668
        %v920 = vunpack.c.l.b16 %v669
        %v921 = vunpack.c.h.b16 %v669
        %v922 = vunpack.c.l.b16 %v670
        %v923 = vunpack.c.h.b16 %v670
        %v924 = vunpack.c.l.b16 %v671
        %v925 = vunpack.c.h.b16 %v671
        %v926 = vunpack.c.l.b16 %v672
        %v927 = vunpack.c.h.b16 %v672
        %v928 = vunpack.c.l.b16 %v673
        %v929 = vunpack.c.h.b16 %v673
        %v930 = vunpack.c.l.b16 %v674
        %v931 = vunpack.c.h.b16 %v674
        %v932 = vunpack.c.l.b16 %v675
        %v933 = vunpack.c.h.b16 %v675
        %v934 = vunpack.c.l.b16 %v676
        %v935 = vunpack.c.h.b16 %v676
        %v936 = vunpack.c.l.b16 %v677
        %v937 = vunpack.c.h.b16 %v677
        %v938 = vunpack.c.l.b16 %v678
        %v939 = vunpack.c.h.b16 %v678
        %v940 = vunpack.c.l.b16 %v679
        %v941 = vunpack.c.h.b16 %v679
        %v942 = vunpack.c.l.b16 %v680
        %v943 = vunpack.c.h.b16 %v680
        %v944 = vunpack.c.l.b16 %v681
        %v945 = vunpack.c.h.b16 %v681
        %v946 = vunpack.c.l.b16 %v682
        %v947 = vunpack.c.h.b16 %v682
        %v948 = vunpack.c.l.b16 %v683
        %v949 = vunpack.c.h.b16 %v683
        %v950 = vunpack.c.l.b16 %v684
        %v951 = vunpack.c.h.b16 %v684
        %v952 = vunpack.c.l.b16 %v685
        %v953 = vunpack.c.h.b16 %v685
        %v954 = vunpack.c.l.b16 %v686
        %v955 = vunpack.c.h.b16 %v686
        %v956 = vunpack.c.l.b16 %v687
        %v957 = vunpack.c.h.b16 %v687
        %v958 = vunpack.c.l.b16 %v688
        %v959 = vunpack.c.h.b16 %v688
        %v960 = vunpack.c.l.b16 %v689
        %v961 = vunpack.c.h.b16 %v689
        %v962 = vunpack.c.l.b16 %v690
        %v963 = vunpack.c.h.b16 %v690
        %v964 = vunpack.c.l.b16 %v691
        %v965 = vunpack.c.h.b16 %v691
        %v966 = vunpack.c.l.b16 %v692
        %v967 = vunpack.c.h.b16 %v692
        %v968 = vunpack.c.l.b16 %v693
        %v969 = vunpack.c.h.b16 %v693
        %v970 = vunpack.c.l.b16 %v694
        %v971 = vunpack.c.h.b16 %v694
        %v972 = vunpack.c.l.b16 %v695
        %v973 = vunpack.c.h.b16 %v695
        %v974 = vunpack.c.l.b16 %v696
        %v975 = vunpack.c.h.b16 %v696
        %v976 = vunpack.c.l.b16 %v697
        %v977 = vunpack.c.h.b16 %v697
        %v978 = vunpack.c.l.b16 %v698
        %v979 = vunpack.c.h.b16 %v698
        %v980 = vunpack.c.l.b16 %v699
        %v981 = vunpack.c.h.b16 %v699
        %v982 = vunpack.c.l.b16 %v700
        %v983 = vunpack.c.h.b16 %v700
        %v984 = vunpack.c.l.b16 %v701
        %v985 = vunpack.c.h.b16 %v701
        %v986 = vunpack.c.l.b16 %v702
        %v987 = vunpack.c.h.b16 %v702
        %v988 = vunpack.c.l.b16 %v703
        %v989 = vunpack.c.h.b16 %v703
        %v990 = vunpack.c.l.b16 %v704
        %v991 = vunpack.c.h.b16 %v704
        %v992 = vunpack.c.l.b16 %v705
        %v993 = vunpack.c.h.b16 %v705
        %v994 = vunpack.c.l.b16 %v706
        %v995 = vunpack.c.h.b16 %v706
        %v996 = vunpack.c.l.b16 %v707
        %v997 = vunpack.c.h.b16 %v707
        %v998 = vunpack.c.l.b16 %v708
        %v999 = vunpack.c.h.b16 %v708
        %v1000 = vunpack.c.l.b16 %v709
        %v1001 = vunpack.c.h.b16 %v709
        %v1002 = vunpack.c.l.b16 %v710
        %v1003 = vunpack.c.h.b16 %v710
        %v1004 = vunpack.c.l.b16 %v711
        %v1005 = vunpack.c.h.b16 %v711
        %v1006 = vunpack.c.l.b16 %v712
        %v1007 = vunpack.c.h.b16 %v712
        %v1008 = vunpack.c.l.b16 %v713
        %v1009 = vunpack.c.h.b16 %v713
        %v1010 = vunpack.c.l.b16 %v714
        %v1011 = vunpack.c.h.b16 %v714
        %v1012 = vunpack.c.l.b16 %v715
        %v1013 = vunpack.c.h.b16 %v715
        %v1014 = vunpack.c.l.b16 %v716
        %v1015 = vunpack.c.h.b16 %v716
        %v1016 = vunpack.c.l.b16 %v717
        %v1017 = vunpack.c.h.b16 %v717
        %v1018 = vunpack.c.l.b16 %v718
        %v1019 = vunpack.c.h.b16 %v718
        %v1020 = vunpack.c.l.b16 %v719
        %v1021 = vunpack.c.h.b16 %v719
        %v1022 = vunpack.c.l.b16 %v720
        %v1023 = vunpack.c.h.b16 %v720
        %v1024 = vunpack.c.l.b16 %v721
        %v1025 = vunpack.c.h.b16 %v721
        %v1026 = vunpack.c.l.b16 %v722
        %v1027 = vunpack.c.h.b16 %v722
        %v1028 = vunpack.c.l.b16 %v723
        %v1029 = vunpack.c.h.b16 %v723
        %v1030 = vunpack.c.l.b16 %v724
        %v1031 = vunpack.c.h.b16 %v724
        %v1032 = vunpack.c.l.b16 %v725
        %v1033 = vunpack.c.h.b16 %v725
        %v1034 = vunpack.c.l.b16 %v726
        %v1035 = vunpack.c.h.b16 %v726
        %v1036 = vunpack.c.l.b16 %v727
        %v1037 = vunpack.c.h.b16 %v727
        %v1038 = vpack.c.b16 %v850, %v846
        %v1039 = vpack.c.b16 %v851, %v847
        %v1040 = vpack.c.b16 %v852, %v848
        %v1041 = vpack.c.b16 %v853, %v849
        %v1042 = vpack.c.b16 %v858, %v854
        %v1043 = vpack.c.b16 %v859, %v855
        %v1044 = vpack.c.b16 %v860, %v856
        %v1045 = vpack.c.b16 %v861, %v857
        %v1046 = vpack.c.b16 %v866, %v862
        %v1047 = vpack.c.b16 %v867, %v863
        %v1048 = vpack.c.b16 %v868, %v864
        %v1049 = vpack.c.b16 %v869, %v865
        %v1050 = vpack.c.b16 %v874, %v870
        %v1051 = vpack.c.b16 %v875, %v871
        %v1052 = vpack.c.b16 %v876, %v872
        %v1053 = vpack.c.b16 %v877, %v873
        %v1054 = vpack.c.b16 %v882, %v878
        %v1055 = vpack.c.b16 %v883, %v879
        %v1056 = vpack.c.b16 %v884, %v880
        %v1057 = vpack.c.b16 %v885, %v881
        %v1058 = vpack.c.b16 %v890, %v886
        %v1059 = vpack.c.b16 %v891, %v887
        %v1060 = vpack.c.b16 %v892, %v888
        %v1061 = vpack.c.b16 %v893, %v889
        %v1062 = vpack.c.b16 %v898, %v894
        %v1063 = vpack.c.b16 %v899, %v895
        %v1064 = vpack.c.b16 %v900, %v896
        %v1065 = vpack.c.b16 %v901, %v897
        %v1066 = vpack.c.b16 %v906, %v902
        %v1067 = vpack.c.b16 %v907, %v903
        %v1068 = vpack.c.b16 %v908, %v904
        %v1069 = vpack.c.b16 %v909, %v905
        %v1070 = vpack.c.b16 %v914, %v910
        %v1071 = vpack.c.b16 %v915, %v911
        %v1072 = vpack.c.b16 %v916, %v912
        %v1073 = vpack.c.b16 %v917, %v913
        %v1074 = vpack.c.b16 %v922, %v918
        %v1075 = vpack.c.b16 %v923, %v919
        %v1076 = vpack.c.b16 %v924, %v920
        %v1077 = vpack.c.b16 %v925, %v921
        %v1078 = vpack.c.b16 %v930, %v926
        %v1079 = vpack.c.b16 %v931, %v927
        %v1080 = vpack.c.b16 %v932, %v928
        %v1081 = vpack.c.b16 %v933, %v929
        %v1082 = vpack.c.b16 %v938, %v934
        %v1083 = vpack.c.b16 %v939, %v935
        %v1084 = vpack.c.b16 %v940, %v936
        %v1085 = vpack.c.b16 %v941, %v937
        %v1086 = vpack.c.b16 %v946, %v942
        %v1087 = vpack.c.b16 %v947, %v943
        %v1088 = vpack.c.b16 %v948, %v944
        %v1089 = vpack.c.b16 %v949, %v945
        %v1090 = vpack.c.b16 %v954, %v950
        %v1091 = vpack.c.b16 %v955, %v951
        %v1092 = vpack.c.b16 %v956, %v952
        %v1093 = vpack.c.b16 %v957, %v953
        %v1094 = vpack.c.b16 %v962, %v958
        %v1095 = vpack.c.b16 %v963, %v959
        %v1096 = vpack.c.b16 %v964, %v960
        %v1097 = vpack.c.b16 %v965, %v961
        %v1098 = vpack.c.b16 %v970, %v966
        %v1099 = vpack.c.b16 %v971, %v967
        %v1100 = vpack.c.b16 %v972, %v968
        %v1101 = vpack.c.b16 %v973, %v969
        %v1102 = vpack.c.b16 %v978, %v974
        %v1103 = vpack.c.b16 %v979, %v975
        %v1104 = vpack.c.b16 %v980, %v976
        %v1105 = vpack.c.b16 %v981, %v977
        %v1106 = vpack.c.b16 %v986, %v982
        %v1107 = vpack.c.b16 %v987, %v983
        %v1108 = vpack.c.b16 %v988, %v984
        %v1109 = vpack.c.b16 %v989, %v985
        %v1110 = vpack.c.b16 %v994, %v990
        %v1111 = vpack.c.b16 %v995, %v991
        %v1112 = vpack.c.b16 %v996, %v992
        %v1113 = vpack.c.b16 %v997, %v993
        %v1114 = vpack.c.b16 %v1002, %v998
        %v1115 = vpack.c.b16 %v1003, %v999
        %v1116 = vpack.c.b16 %v1004, %v1000
        %v1117 = vpack.c.b16 %v1005, %v1001
        %v1118 = vpack.c.b16 %v1010, %v1006
        %v1119 = vpack.c.b16 %v1011, %v1007
        %v1120 = vpack.c.b16 %v1012, %v1008
        %v1121 = vpack.c.b16 %v1013, %v1009
        %v1122 = vpack.c.b16 %v1018, %v1014
        %v1123 = vpack.c.b16 %v1019, %v1015
        %v1124 = vpack.c.b16 %v1020, %v1016
        %v1125 = vpack.c.b16 %v1021, %v1017
        %v1126 = vpack.c.b16 %v1026, %v1022
        %v1127 = vpack.c.b16 %v1027, %v1023
        %v1128 = vpack.c.b16 %v1028, %v1024
        %v1129 = vpack.c.b16 %v1029, %v1025
        %v1130 = vpack.c.b16 %v1034, %v1030
        %v1131 = vpack.c.b16 %v1035, %v1031
        %v1132 = vpack.c.b16 %v1036, %v1032
        %v1133 = vpack.c.b16 %v1037, %v1033
        %1230 = vmatprep.subr.bf16.mxu0 %v1039
        %1231 = vmatpush1.bf16.msra.mxu0 %v1038
        %1232 = vmatprep.subr.bf16.mxu0 %v1043
        %1233 = vmatpush1.bf16.msra.mxu0 %v1042
        %1234 = vmatprep.subr.bf16.mxu0 %v1047
        %1235 = vmatpush1.bf16.msra.mxu0 %v1046
        %1236 = vmatprep.subr.bf16.mxu0 %v1051
        %1237 = vmatpush1.bf16.msra.mxu0 %v1050
        %1238 = vmatprep.subr.bf16.mxu0 %v1055
        %1239 = vmatpush1.bf16.msra.mxu0 %v1054
        %1240 = vmatprep.subr.bf16.mxu0 %v1059
        %1241 = vmatpush1.bf16.msra.mxu0 %v1058
        %1242 = vmatprep.subr.bf16.mxu0 %v1063
        %1243 = vmatpush1.bf16.msra.mxu0 %v1062
        %1244 = vmatprep.subr.bf16.mxu0 %v1067
        %1245 = vmatpush1.bf16.msra.mxu0 %v1066
        %1246 = vmatprep.subr.bf16.mxu0 %v1071
        %1247 = vmatpush1.bf16.msra.mxu0 %v1070
        %1248 = vmatprep.subr.bf16.mxu0 %v1075
        %1249 = vmatpush1.bf16.msra.mxu0 %v1074
        %1250 = vmatprep.subr.bf16.mxu0 %v1079
        %1251 = vmatpush1.bf16.msra.mxu0 %v1078
        %1252 = vmatprep.subr.bf16.mxu0 %v1083
        %1253 = vmatpush1.bf16.msra.mxu0 %v1082
        %1254 = vmatprep.subr.bf16.mxu0 %v1087
        %1255 = vmatpush1.bf16.msra.mxu0 %v1086
        %1256 = vmatprep.subr.bf16.mxu0 %v1091
        %1257 = vmatpush1.bf16.msra.mxu0 %v1090
        %1258 = vmatprep.subr.bf16.mxu0 %v1095
        %1259 = vmatpush1.bf16.msra.mxu0 %v1094
        %1260 = vmatprep.subr.bf16.mxu0 %v1099
        %1261 = vmatpush1.bf16.msra.mxu0 %v1098
        %1262 = vmatprep.mubr.bf16.mxu0 %v594
        %1263 = vmatmul.mubr.bf16.gmra.mrb[0].mxu0 %v593
        %v1264 = vpop.f32.mrb[0].mxu0
        %v1265 = vadd.f32 %v733, %v1264
        %v1266 = vpop.f32.mrb[0].mxu0
        %v1267 = vadd.f32 %v737, %v1266
        %v1268 = vpop.f32.mrb[0].mxu0
        %v1269 = vadd.f32 %v733, %v1268
        %v1270 = vpop.f32.mrb[0].mxu0
        %v1271 = vadd.f32 %v737, %v1270
        %1272 = vmatprep.mubr.bf16.mxu0 %v597
        %1273 = vmatmul.mubr.bf16.gmra.mrb[0].mxu0 %v596
        %v1274 = vpop.f32.mrb[0].mxu0
        %v1275 = vadd.f32 %v733, %v1274
        %v1276 = vpop.f32.mrb[0].mxu0
        %v1277 = vadd.f32 %v737, %v1276
        %v1278 = vpop.f32.mrb[0].mxu0
        %v1279 = vadd.f32 %v733, %v1278
        %v1280 = vpop.f32.mrb[0].mxu0
        %v1281 = vadd.f32 %v737, %v1280
        %1282 = vmatprep.mubr.bf16.mxu0 %v600
        %1283 = vmatmul.mubr.bf16.gmra.mrb[0].mxu0 %v599
        %v1284 = vpop.f32.mrb[0].mxu0
        %v1285 = vadd.f32 %v733, %v1284
        %v1286 = vpop.f32.mrb[0].mxu0
        %v1287 = vadd.f32 %v737, %v1286
        %v1288 = vpop.f32.mrb[0].mxu0
        %v1289 = vadd.f32 %v733, %v1288
        %v1290 = vpop.f32.mrb[0].mxu0
        %v1291 = vadd.f32 %v737, %v1290
        %1292 = vmatprep.mubr.bf16.mxu0 %v603
        %1293 = vmatmul.mubr.bf16.gmra.mrb[0].mxu0 %v602
        %v1294 = vpop.f32.mrb[0].mxu0
        %v1295 = vadd.f32 %v733, %v1294
        %v1296 = vpop.f32.mrb[0].mxu0
        %v1297 = vadd.f32 %v737, %v1296
        %v1298 = vpop.f32.mrb[0].mxu0
        %v1299 = vadd.f32 %v733, %v1298
        %v1300 = vpop.f32.mrb[0].mxu0
        %v1301 = vadd.f32 %v737, %v1300
        %1302 = vmatprep.mubr.bf16.mxu0 %v606
        %1303 = vmatmul.mubr.bf16.gmra.mrb[0].mxu0 %v605
        %v1304 = vpop.f32.mrb[0].mxu0
        %v1305 = vadd.f32 %v733, %v1304
        %v1306 = vpop.f32.mrb[0].mxu0
        %v1307 = vadd.f32 %v737, %v1306
        %v1308 = vpop.f32.mrb[0].mxu0
        %v1309 = vadd.f32 %v733, %v1308
        %v1310 = vpop.f32.mrb[0].mxu0
        %v1311 = vadd.f32 %v737, %v1310
        %1312 = vmatprep.mubr.bf16.mxu0 %v609
        %1313 = vmatmul.mubr.bf16.gmra.mrb[0].mxu0 %v608
        %v1314 = vpop.f32.mrb[0].mxu0
        %v1315 = vadd.f32 %v733, %v1314
        %v1316 = vpop.f32.mrb[0].mxu0
        %v1317 = vadd.f32 %v737, %v1316
        %v1318 = vpop.f32.mrb[0].mxu0
        %v1319 = vadd.f32 %v733, %v1318
        %v1320 = vpop.f32.mrb[0].mxu0
        %v1321 = vadd.f32 %v737, %v1320
        %1322 = vmatprep.mubr.bf16.mxu0 %v612
        %1323 = vmatmul.mubr.bf16.gmra.mrb[0].mxu0 %v611
        %v1324 = vpop.f32.mrb[0].mxu0
        %v1325 = vadd.f32 %v733, %v1324
        %v1326 = vpop.f32.mrb[0].mxu0
        %v1327 = vadd.f32 %v737, %v1326
        %v1328 = vpop.f32.mrb[0].mxu0
        %v1329 = vadd.f32 %v733, %v1328
        %v1330 = vpop.f32.mrb[0].mxu0
        %v1331 = vadd.f32 %v737, %v1330
        %1332 = vmatprep.mubr.bf16.mxu0 %v615
        %1333 = vmatmul.mubr.bf16.gmra.mrb[0].mxu0 %v614
        %v1334 = vpop.f32.mrb[0].mxu0
        %v1335 = vadd.f32 %v733, %v1334
        %v1336 = vpop.f32.mrb[0].mxu0
        %v1337 = vadd.f32 %v737, %v1336
        %v1338 = vpop.f32.mrb[0].mxu0
        %v1339 = vadd.f32 %v733, %v1338
        %v1340 = vpop.f32.mrb[0].mxu0
        %v1341 = vadd.f32 %v737, %v1340
        %1342 = vmatprep.mubr.bf16.mxu0 %v618
        %1343 = vmatmul.mubr.bf16.gmra.mrb[0].mxu0 %v617
        %v1344 = vpop.f32.mrb[0].mxu0
        %v1345 = vadd.f32 %v733, %v1344
        %v1346 = vpop.f32.mrb[0].mxu0
        %v1347 = vadd.f32 %v737, %v1346
        %v1348 = vpop.f32.mrb[0].mxu0
        %v1349 = vadd.f32 %v733, %v1348
        %v1350 = vpop.f32.mrb[0].mxu0
        %v1351 = vadd.f32 %v737, %v1350
        %1352 = vmatprep.mubr.bf16.mxu0 %v621
        %1353 = vmatmul.mubr.bf16.gmra.mrb[0].mxu0 %v620
        %v1354 = vpop.f32.mrb[0].mxu0
        %v1355 = vadd.f32 %v733, %v1354
        %v1356 = vpop.f32.mrb[0].mxu0
        %v1357 = vadd.f32 %v737, %v1356
        %v1358 = vpop.f32.mrb[0].mxu0
        %v1359 = vadd.f32 %v733, %v1358
        %v1360 = vpop.f32.mrb[0].mxu0
        %v1361 = vadd.f32 %v737, %v1360
        %1362 = vmatprep.mubr.bf16.mxu0 %v624
        %1363 = vmatmul.mubr.bf16.gmra.mrb[0].mxu0 %v623
        %v1364 = vpop.f32.mrb[0].mxu0
        %v1365 = vadd.f32 %v733, %v1364
        %v1366 = vpop.f32.mrb[0].mxu0
        %v1367 = vadd.f32 %v737, %v1366
        %v1368 = vpop.f32.mrb[0].mxu0
        %v1369 = vadd.f32 %v733, %v1368
        %v1370 = vpop.f32.mrb[0].mxu0
        %v1371 = vadd.f32 %v737, %v1370
        %1372 = vmatprep.mubr.bf16.mxu0 %v627
        %1373 = vmatmul.mubr.bf16.gmra.mrb[0].mxu0 %v626
        %v1374 = vpop.f32.mrb[0].mxu0
        %v1375 = vadd.f32 %v733, %v1374
        %v1376 = vpop.f32.mrb[0].mxu0
        %v1377 = vadd.f32 %v737, %v1376
        %v1378 = vpop.f32.mrb[0].mxu0
        %v1379 = vadd.f32 %v733, %v1378
        %v1380 = vpop.f32.mrb[0].mxu0
        %v1381 = vadd.f32 %v737, %v1380
        %1382 = vmatprep.mubr.bf16.mxu0 %v630
        %1383 = vmatmul.mubr.bf16.gmra.mrb[0].mxu0 %v629
        %v1384 = vpop.f32.mrb[0].mxu0
        %v1385 = vadd.f32 %v733, %v1384
        %v1386 = vpop.f32.mrb[0].mxu0
        %v1387 = vadd.f32 %v737, %v1386
        %v1388 = vpop.f32.mrb[0].mxu0
        %v1389 = vadd.f32 %v733, %v1388
        %v1390 = vpop.f32.mrb[0].mxu0
        %v1391 = vadd.f32 %v737, %v1390
        %1392 = vdwg.mxu0
        %1393 = vmatprep.subr.bf16.mxu0 %v1103
        %1394 = vmatpush1.bf16.msra.mxu0 %v1102
        %1395 = vmatprep.subr.bf16.mxu0 %v1107
        %1396 = vmatpush1.bf16.msra.mxu0 %v1106
        %1397 = vmatprep.subr.bf16.mxu0 %v1111
        %1398 = vmatpush1.bf16.msra.mxu0 %v1110
        %1399 = vmatprep.subr.bf16.mxu0 %v1115
        %1400 = vmatpush1.bf16.msra.mxu0 %v1114
        %1401 = vmatprep.subr.bf16.mxu0 %v1119
        %1402 = vmatpush1.bf16.msra.mxu0 %v1118
        %1403 = vmatprep.subr.bf16.mxu0 %v1123
        %1404 = vmatpush1.bf16.msra.mxu0 %v1122
        %1405 = vmatprep.subr.bf16.mxu0 %v1127
        %1406 = vmatpush1.bf16.msra.mxu0 %v1126
        %1407 = vmatprep.subr.bf16.mxu0 %v1131
        %1408 = vmatpush1.bf16.msra.mxu0 %v1130
        %1409 = vmatprep.subr.bf16.mxu0 0
        %1410 = vmatpush1.bf16.msra.mxu0 0
        %1411 = vmatprep.subr.bf16.mxu0 0
        %1412 = vmatpush1.bf16.msra.mxu0 0
        %1413 = vmatprep.subr.bf16.mxu0 0
        %1414 = vmatpush1.bf16.msra.mxu0 0
        %1415 = vmatprep.subr.bf16.mxu0 0
        %1416 = vmatpush1.bf16.msra.mxu0 0
        %1417 = vmatprep.subr.bf16.mxu0 0
        %1418 = vmatpush1.bf16.msra.mxu0 0
        %1419 = vmatprep.subr.bf16.mxu0 0
        %1420 = vmatpush1.bf16.msra.mxu0 0
        %1421 = vmatprep.subr.bf16.mxu0 0
        %1422 = vmatpush1.bf16.msra.mxu0 0
        %1423 = vmatprep.subr.bf16.mxu0 0
        %1424 = vmatpush1.bf16.msra.mxu0 0
        %1425 = vmatprep.mubr.bf16.mxu0 0
        %1426 = vmatmul.mubr.bf16.gmra.mrb[0].mxu0 %v595
        %v1427 = vpop.f32.mrb[0].mxu0
        %v1428 = vadd.f32 %v1265, %v1427
        %v1429 = vpop.f32.mrb[0].mxu0
        %v1430 = vadd.f32 %v1267, %v1429
        %v1431 = vpop.f32.mrb[0].mxu0
        %v1432 = vadd.f32 %v1269, %v1431
        %v1433 = vpop.f32.mrb[0].mxu0
        %v1434 = vadd.f32 %v1271, %v1433
        %1435 = vmatprep.mubr.bf16.mxu0 0
        %1436 = vmatmul.mubr.bf16.gmra.mrb[0].mxu0 %v598
        %v1437 = vpop.f32.mrb[0].mxu0
        %v1438 = vadd.f32 %v1275, %v1437
        %v1439 = vpop.f32.mrb[0].mxu0
        %v1440 = vadd.f32 %v1277, %v1439
        %v1441 = vpop.f32.mrb[0].mxu0
        %v1442 = vadd.f32 %v1279, %v1441
        %v1443 = vpop.f32.mrb[0].mxu0
        %v1444 = vadd.f32 %v1281, %v1443
        %1445 = vmatprep.mubr.bf16.mxu0 0
        %1446 = vmatmul.mubr.bf16.gmra.mrb[0].mxu0 %v601
        %v1447 = vpop.f32.mrb[0].mxu0
        %v1448 = vadd.f32 %v1285, %v1447
        %v1449 = vpop.f32.mrb[0].mxu0
        %v1450 = vadd.f32 %v1287, %v1449
        %v1451 = vpop.f32.mrb[0].mxu0
        %v1452 = vadd.f32 %v1289, %v1451
        %v1453 = vpop.f32.mrb[0].mxu0
        %v1454 = vadd.f32 %v1291, %v1453
        %1455 = vmatprep.mubr.bf16.mxu0 0
        %1456 = vmatmul.mubr.bf16.gmra.mrb[0].mxu0 %v604
        %v1457 = vpop.f32.mrb[0].mxu0
        %v1458 = vadd.f32 %v1295, %v1457
        %v1459 = vpop.f32.mrb[0].mxu0
        %v1460 = vadd.f32 %v1297, %v1459
        %v1461 = vpop.f32.mrb[0].mxu0
        %v1462 = vadd.f32 %v1299, %v1461
        %v1463 = vpop.f32.mrb[0].mxu0
        %v1464 = vadd.f32 %v1301, %v1463
        %1465 = vmatprep.mubr.bf16.mxu0 0
        %1466 = vmatmul.mubr.bf16.gmra.mrb[0].mxu0 %v607
        %v1467 = vpop.f32.mrb[0].mxu0
        %v1468 = vadd.f32 %v1305, %v1467
        %v1469 = vpop.f32.mrb[0].mxu0
        %v1470 = vadd.f32 %v1307, %v1469
        %v1471 = vpop.f32.mrb[0].mxu0
        %v1472 = vadd.f32 %v1309, %v1471
        %v1473 = vpop.f32.mrb[0].mxu0
        %v1474 = vadd.f32 %v1311, %v1473
        %1475 = vmatprep.mubr.bf16.mxu0 0
        %1476 = vmatmul.mubr.bf16.gmra.mrb[0].mxu0 %v610
        %v1477 = vpop.f32.mrb[0].mxu0
        %v1478 = vadd.f32 %v1315, %v1477
        %v1479 = vpop.f32.mrb[0].mxu0
        %v1480 = vadd.f32 %v1317, %v1479
        %v1481 = vpop.f32.mrb[0].mxu0
        %v1482 = vadd.f32 %v1319, %v1481
        %v1483 = vpop.f32.mrb[0].mxu0
        %v1484 = vadd.f32 %v1321, %v1483
        %1485 = vmatprep.mubr.bf16.mxu0 0
        %1486 = vmatmul.mubr.bf16.gmra.mrb[0].mxu0 %v613
        %v1487 = vpop.f32.mrb[0].mxu0
        %v1488 = vadd.f32 %v1325, %v1487
        %v1489 = vpop.f32.mrb[0].mxu0
        %v1490 = vadd.f32 %v1327, %v1489
        %v1491 = vpop.f32.mrb[0].mxu0
        %v1492 = vadd.f32 %v1329, %v1491
        %v1493 = vpop.f32.mrb[0].mxu0
        %v1494 = vadd.f32 %v1331, %v1493
        %1495 = vmatprep.mubr.bf16.mxu0 0
        %1496 = vmatmul.mubr.bf16.gmra.mrb[0].mxu0 %v616
        %v1497 = vpop.f32.mrb[0].mxu0
        %v1498 = vadd.f32 %v1335, %v1497
        %v1499 = vpop.f32.mrb[0].mxu0
        %v1500 = vadd.f32 %v1337, %v1499
        %v1501 = vpop.f32.mrb[0].mxu0
        %v1502 = vadd.f32 %v1339, %v1501
        %v1503 = vpop.f32.mrb[0].mxu0
        %v1504 = vadd.f32 %v1341, %v1503
        %1505 = vmatprep.mubr.bf16.mxu0 0
        %1506 = vmatmul.mubr.bf16.gmra.mrb[0].mxu0 %v619
        %v1507 = vpop.f32.mrb[0].mxu0
        %v1508 = vadd.f32 %v1345, %v1507
        %v1509 = vpop.f32.mrb[0].mxu0
        %v1510 = vadd.f32 %v1347, %v1509
        %v1511 = vpop.f32.mrb[0].mxu0
        %v1512 = vadd.f32 %v1349, %v1511
        %v1513 = vpop.f32.mrb[0].mxu0
        %v1514 = vadd.f32 %v1351, %v1513
        %1515 = vmatprep.mubr.bf16.mxu0 0
        %1516 = vmatmul.mubr.bf16.gmra.mrb[0].mxu0 %v622
        %v1517 = vpop.f32.mrb[0].mxu0
        %v1518 = vadd.f32 %v1355, %v1517
        %v1519 = vpop.f32.mrb[0].mxu0
        %v1520 = vadd.f32 %v1357, %v1519
        %v1521 = vpop.f32.mrb[0].mxu0
        %v1522 = vadd.f32 %v1359, %v1521
        %v1523 = vpop.f32.mrb[0].mxu0
        %v1524 = vadd.f32 %v1361, %v1523
        %1525 = vmatprep.mubr.bf16.mxu0 0
        %1526 = vmatmul.mubr.bf16.gmra.mrb[0].mxu0 %v625
        %v1527 = vpop.f32.mrb[0].mxu0
        %v1528 = vadd.f32 %v1365, %v1527
        %v1529 = vpop.f32.mrb[0].mxu0
        %v1530 = vadd.f32 %v1367, %v1529
        %v1531 = vpop.f32.mrb[0].mxu0
        %v1532 = vadd.f32 %v1369, %v1531
        %v1533 = vpop.f32.mrb[0].mxu0
        %v1534 = vadd.f32 %v1371, %v1533
        %1535 = vmatprep.mubr.bf16.mxu0 0
        %1536 = vmatmul.mubr.bf16.gmra.mrb[0].mxu0 %v628
        %v1537 = vpop.f32.mrb[0].mxu0
        %v1538 = vadd.f32 %v1375, %v1537
        %v1539 = vpop.f32.mrb[0].mxu0
        %v1540 = vadd.f32 %v1377, %v1539
        %v1541 = vpop.f32.mrb[0].mxu0
        %v1542 = vadd.f32 %v1379, %v1541
        %v1543 = vpop.f32.mrb[0].mxu0
        %v1544 = vadd.f32 %v1381, %v1543
        %1545 = vmatprep.mubr.bf16.mxu0 0
        %1546 = vmatmul.mubr.bf16.gmra.mrb[0].mxu0 %v631
        %v1547 = vpop.f32.mrb[0].mxu0
        %v1548 = vadd.f32 %v1385, %v1547
        %v1549 = vpop.f32.mrb[0].mxu0
        %v1550 = vadd.f32 %v1387, %v1549
        %v1551 = vpop.f32.mrb[0].mxu0
        %v1552 = vadd.f32 %v1389, %v1551
        %v1553 = vpop.f32.mrb[0].mxu0
        %v1554 = vadd.f32 %v1391, %v1553
        %1555 = vdwg.mxu0
        %1556 = vmatprep.subr.bf16.mxu0 %v1041
        %1557 = vmatpush1.bf16.msra.mxu0 %v1040
        %1558 = vmatprep.subr.bf16.mxu0 %v1045
        %1559 = vmatpush1.bf16.msra.mxu0 %v1044
        %1560 = vmatprep.subr.bf16.mxu0 %v1049
        %1561 = vmatpush1.bf16.msra.mxu0 %v1048
        %1562 = vmatprep.subr.bf16.mxu0 %v1053
        %1563 = vmatpush1.bf16.msra.mxu0 %v1052
        %1564 = vmatprep.subr.bf16.mxu0 %v1057
        %1565 = vmatpush1.bf16.msra.mxu0 %v1056
        %1566 = vmatprep.subr.bf16.mxu0 %v1061
        %1567 = vmatpush1.bf16.msra.mxu0 %v1060
        %1568 = vmatprep.subr.bf16.mxu0 %v1065
        %1569 = vmatpush1.bf16.msra.mxu0 %v1064
        %1570 = vmatprep.subr.bf16.mxu0 %v1069
        %1571 = vmatpush1.bf16.msra.mxu0 %v1068
        %1572 = vmatprep.subr.bf16.mxu0 %v1073
        %1573 = vmatpush1.bf16.msra.mxu0 %v1072
        %1574 = vmatprep.subr.bf16.mxu0 %v1077
        %1575 = vmatpush1.bf16.msra.mxu0 %v1076
        %1576 = vmatprep.subr.bf16.mxu0 %v1081
        %1577 = vmatpush1.bf16.msra.mxu0 %v1080
        %1578 = vmatprep.subr.bf16.mxu0 %v1085
        %1579 = vmatpush1.bf16.msra.mxu0 %v1084
        %1580 = vmatprep.subr.bf16.mxu0 %v1089
        %1581 = vmatpush1.bf16.msra.mxu0 %v1088
        %1582 = vmatprep.subr.bf16.mxu0 %v1093
        %1583 = vmatpush1.bf16.msra.mxu0 %v1092
        %1584 = vmatprep.subr.bf16.mxu0 %v1097
        %1585 = vmatpush1.bf16.msra.mxu0 %v1096
        %1586 = vmatprep.subr.bf16.mxu0 %v1101
        %1587 = vmatpush1.bf16.msra.mxu0 %v1100
        %1588 = vmatprep.mubr.bf16.mxu0 %v594
        %1589 = vmatmul.mubr.bf16.gmra.mrb[0].mxu0 %v593
        %v1590 = vpop.f32.mrb[0].mxu0
        %v1591 = vadd.f32 %v741, %v1590
        %v1592 = vpop.f32.mrb[0].mxu0
        %v1593 = vadd.f32 %v745, %v1592
        %v1594 = vpop.f32.mrb[0].mxu0
        %v1595 = vadd.f32 %v741, %v1594
        %v1596 = vpop.f32.mrb[0].mxu0
        %v1597 = vadd.f32 %v745, %v1596
        %1598 = vmatprep.mubr.bf16.mxu0 %v597
        %1599 = vmatmul.mubr.bf16.gmra.mrb[0].mxu0 %v596
        %v1600 = vpop.f32.mrb[0].mxu0
        %v1601 = vadd.f32 %v741, %v1600
        %v1602 = vpop.f32.mrb[0].mxu0
        %v1603 = vadd.f32 %v745, %v1602
        %v1604 = vpop.f32.mrb[0].mxu0
        %v1605 = vadd.f32 %v741, %v1604
        %v1606 = vpop.f32.mrb[0].mxu0
        %v1607 = vadd.f32 %v745, %v1606
        %1608 = vmatprep.mubr.bf16.mxu0 %v600
        %1609 = vmatmul.mubr.bf16.gmra.mrb[0].mxu0 %v599
        %v1610 = vpop.f32.mrb[0].mxu0
        %v1611 = vadd.f32 %v741, %v1610
        %v1612 = vpop.f32.mrb[0].mxu0
        %v1613 = vadd.f32 %v745, %v1612
        %v1614 = vpop.f32.mrb[0].mxu0
        %v1615 = vadd.f32 %v741, %v1614
        %v1616 = vpop.f32.mrb[0].mxu0
        %v1617 = vadd.f32 %v745, %v1616
        %1618 = vmatprep.mubr.bf16.mxu0 %v603
        %1619 = vmatmul.mubr.bf16.gmra.mrb[0].mxu0 %v602
        %v1620 = vpop.f32.mrb[0].mxu0
        %v1621 = vadd.f32 %v741, %v1620
        %v1622 = vpop.f32.mrb[0].mxu0
        %v1623 = vadd.f32 %v745, %v1622
        %v1624 = vpop.f32.mrb[0].mxu0
        %v1625 = vadd.f32 %v741, %v1624
        %v1626 = vpop.f32.mrb[0].mxu0
        %v1627 = vadd.f32 %v745, %v1626
        %1628 = vmatprep.mubr.bf16.mxu0 %v606
        %1629 = vmatmul.mubr.bf16.gmra.mrb[0].mxu0 %v605
        %v1630 = vpop.f32.mrb[0].mxu0
        %v1631 = vadd.f32 %v741, %v1630
        %v1632 = vpop.f32.mrb[0].mxu0
        %v1633 = vadd.f32 %v745, %v1632
        %v1634 = vpop.f32.mrb[0].mxu0
        %v1635 = vadd.f32 %v741, %v1634
        %v1636 = vpop.f32.mrb[0].mxu0
        %v1637 = vadd.f32 %v745, %v1636
        %1638 = vmatprep.mubr.bf16.mxu0 %v609
        %1639 = vmatmul.mubr.bf16.gmra.mrb[0].mxu0 %v608
        %v1640 = vpop.f32.mrb[0].mxu0
        %v1641 = vadd.f32 %v741, %v1640
        %v1642 = vpop.f32.mrb[0].mxu0
        %v1643 = vadd.f32 %v745, %v1642
        %v1644 = vpop.f32.mrb[0].mxu0
        %v1645 = vadd.f32 %v741, %v1644
        %v1646 = vpop.f32.mrb[0].mxu0
        %v1647 = vadd.f32 %v745, %v1646
        %1648 = vmatprep.mubr.bf16.mxu0 %v612
        %1649 = vmatmul.mubr.bf16.gmra.mrb[0].mxu0 %v611
        %v1650 = vpop.f32.mrb[0].mxu0
        %v1651 = vadd.f32 %v741, %v1650
        %v1652 = vpop.f32.mrb[0].mxu0
        %v1653 = vadd.f32 %v745, %v1652
        %v1654 = vpop.f32.mrb[0].mxu0
        %v1655 = vadd.f32 %v741, %v1654
        %v1656 = vpop.f32.mrb[0].mxu0
        %v1657 = vadd.f32 %v745, %v1656
        %1658 = vmatprep.mubr.bf16.mxu0 %v615
        %1659 = vmatmul.mubr.bf16.gmra.mrb[0].mxu0 %v614
        %v1660 = vpop.f32.mrb[0].mxu0
        %v1661 = vadd.f32 %v741, %v1660
        %v1662 = vpop.f32.mrb[0].mxu0
        %v1663 = vadd.f32 %v745, %v1662
        %v1664 = vpop.f32.mrb[0].mxu0
        %v1665 = vadd.f32 %v741, %v1664
        %v1666 = vpop.f32.mrb[0].mxu0
        %v1667 = vadd.f32 %v745, %v1666
        %1668 = vmatprep.mubr.bf16.mxu0 %v618
        %1669 = vmatmul.mubr.bf16.gmra.mrb[0].mxu0 %v617
        %v1670 = vpop.f32.mrb[0].mxu0
        %v1671 = vadd.f32 %v741, %v1670
        %v1672 = vpop.f32.mrb[0].mxu0
        %v1673 = vadd.f32 %v745, %v1672
        %v1674 = vpop.f32.mrb[0].mxu0
        %v1675 = vadd.f32 %v741, %v1674
        %v1676 = vpop.f32.mrb[0].mxu0
        %v1677 = vadd.f32 %v745, %v1676
        %1678 = vmatprep.mubr.bf16.mxu0 %v621
        %1679 = vmatmul.mubr.bf16.gmra.mrb[0].mxu0 %v620
        %v1680 = vpop.f32.mrb[0].mxu0
        %v1681 = vadd.f32 %v741, %v1680
        %v1682 = vpop.f32.mrb[0].mxu0
        %v1683 = vadd.f32 %v745, %v1682
        %v1684 = vpop.f32.mrb[0].mxu0
        %v1685 = vadd.f32 %v741, %v1684
        %v1686 = vpop.f32.mrb[0].mxu0
        %v1687 = vadd.f32 %v745, %v1686
        %1688 = vmatprep.mubr.bf16.mxu0 %v624
        %1689 = vmatmul.mubr.bf16.gmra.mrb[0].mxu0 %v623
        %v1690 = vpop.f32.mrb[0].mxu0
        %v1691 = vadd.f32 %v741, %v1690
        %v1692 = vpop.f32.mrb[0].mxu0
        %v1693 = vadd.f32 %v745, %v1692
        %v1694 = vpop.f32.mrb[0].mxu0
        %v1695 = vadd.f32 %v741, %v1694
        %v1696 = vpop.f32.mrb[0].mxu0
        %v1697 = vadd.f32 %v745, %v1696
        %1698 = vmatprep.mubr.bf16.mxu0 %v627
        %1699 = vmatmul.mubr.bf16.gmra.mrb[0].mxu0 %v626
        %v1700 = vpop.f32.mrb[0].mxu0
        %v1701 = vadd.f32 %v741, %v1700
        %v1702 = vpop.f32.mrb[0].mxu0
        %v1703 = vadd.f32 %v745, %v1702
        %v1704 = vpop.f32.mrb[0].mxu0
        %v1705 = vadd.f32 %v741, %v1704
        %v1706 = vpop.f32.mrb[0].mxu0
        %v1707 = vadd.f32 %v745, %v1706
        %1708 = vmatprep.mubr.bf16.mxu0 %v630
        %1709 = vmatmul.mubr.bf16.gmra.mrb[0].mxu0 %v629
        %v1710 = vpop.f32.mrb[0].mxu0
        %v1711 = vadd.f32 %v741, %v1710
        %v1712 = vpop.f32.mrb[0].mxu0
        %v1713 = vadd.f32 %v745, %v1712
        %v1714 = vpop.f32.mrb[0].mxu0
        %v1715 = vadd.f32 %v741, %v1714
        %v1716 = vpop.f32.mrb[0].mxu0
        %v1717 = vadd.f32 %v745, %v1716
        %1718 = vdwg.mxu0
        %1719 = vmatprep.subr.bf16.mxu0 %v1105
        %1720 = vmatpush1.bf16.msra.mxu0 %v1104
        %1721 = vmatprep.subr.bf16.mxu0 %v1109
        %1722 = vmatpush1.bf16.msra.mxu0 %v1108
        %1723 = vmatprep.subr.bf16.mxu0 %v1113
        %1724 = vmatpush1.bf16.msra.mxu0 %v1112
        %1725 = vmatprep.subr.bf16.mxu0 %v1117
        %1726 = vmatpush1.bf16.msra.mxu0 %v1116
        %1727 = vmatprep.subr.bf16.mxu0 %v1121
        %1728 = vmatpush1.bf16.msra.mxu0 %v1120
        %1729 = vmatprep.subr.bf16.mxu0 %v1125
        %1730 = vmatpush1.bf16.msra.mxu0 %v1124
        %1731 = vmatprep.subr.bf16.mxu0 %v1129
        %1732 = vmatpush1.bf16.msra.mxu0 %v1128
        %1733 = vmatprep.subr.bf16.mxu0 %v1133
        %1734 = vmatpush1.bf16.msra.mxu0 %v1132
        %1735 = vmatprep.subr.bf16.mxu0 0
        %1736 = vmatpush1.bf16.msra.mxu0 0
        %1737 = vmatprep.subr.bf16.mxu0 0
        %1738 = vmatpush1.bf16.msra.mxu0 0
        %1739 = vmatprep.subr.bf16.mxu0 0
        %1740 = vmatpush1.bf16.msra.mxu0 0
        %1741 = vmatprep.subr.bf16.mxu0 0
        %1742 = vmatpush1.bf16.msra.mxu0 0
        %1743 = vmatprep.subr.bf16.mxu0 0
        %1744 = vmatpush1.bf16.msra.mxu0 0
        %1745 = vmatprep.subr.bf16.mxu0 0
        %1746 = vmatpush1.bf16.msra.mxu0 0
        %1747 = vmatprep.subr.bf16.mxu0 0
        %1748 = vmatpush1.bf16.msra.mxu0 0
        %1749 = vmatprep.subr.bf16.mxu0 0
        %1750 = vmatpush1.bf16.msra.mxu0 0
        %1751 = vmatprep.mubr.bf16.mxu0 0
        %1752 = vmatmul.mubr.bf16.gmra.mrb[0].mxu0 %v595
        %v1753 = vpop.f32.mrb[0].mxu0
        %v1754 = vadd.f32 %v1591, %v1753
        %v1755 = vpop.f32.mrb[0].mxu0
        %v1756 = vadd.f32 %v1593, %v1755
        %v1757 = vpop.f32.mrb[0].mxu0
        %v1758 = vadd.f32 %v1595, %v1757
        %v1759 = vpop.f32.mrb[0].mxu0
        %v1760 = vadd.f32 %v1597, %v1759
        %1761 = vmatprep.mubr.bf16.mxu0 0
        %1762 = vmatmul.mubr.bf16.gmra.mrb[0].mxu0 %v598
        %v1763 = vpop.f32.mrb[0].mxu0
        %v1764 = vadd.f32 %v1601, %v1763
        %v1765 = vpop.f32.mrb[0].mxu0
        %v1766 = vadd.f32 %v1603, %v1765
        %v1767 = vpop.f32.mrb[0].mxu0
        %v1768 = vadd.f32 %v1605, %v1767
        %v1769 = vpop.f32.mrb[0].mxu0
        %v1770 = vadd.f32 %v1607, %v1769
        %1771 = vmatprep.mubr.bf16.mxu0 0
        %1772 = vmatmul.mubr.bf16.gmra.mrb[0].mxu0 %v601
        %v1773 = vpop.f32.mrb[0].mxu0
        %v1774 = vadd.f32 %v1611, %v1773
        %v1775 = vpop.f32.mrb[0].mxu0
        %v1776 = vadd.f32 %v1613, %v1775
        %v1777 = vpop.f32.mrb[0].mxu0
        %v1778 = vadd.f32 %v1615, %v1777
        %v1779 = vpop.f32.mrb[0].mxu0
        %v1780 = vadd.f32 %v1617, %v1779
        %1781 = vmatprep.mubr.bf16.mxu0 0
        %1782 = vmatmul.mubr.bf16.gmra.mrb[0].mxu0 %v604
        %v1783 = vpop.f32.mrb[0].mxu0
        %v1784 = vadd.f32 %v1621, %v1783
        %v1785 = vpop.f32.mrb[0].mxu0
        %v1786 = vadd.f32 %v1623, %v1785
        %v1787 = vpop.f32.mrb[0].mxu0
        %v1788 = vadd.f32 %v1625, %v1787
        %v1789 = vpop.f32.mrb[0].mxu0
        %v1790 = vadd.f32 %v1627, %v1789
        %1791 = vmatprep.mubr.bf16.mxu0 0
        %1792 = vmatmul.mubr.bf16.gmra.mrb[0].mxu0 %v607
        %v1793 = vpop.f32.mrb[0].mxu0
        %v1794 = vadd.f32 %v1631, %v1793
        %v1795 = vpop.f32.mrb[0].mxu0
        %v1796 = vadd.f32 %v1633, %v1795
        %v1797 = vpop.f32.mrb[0].mxu0
        %v1798 = vadd.f32 %v1635, %v1797
        %v1799 = vpop.f32.mrb[0].mxu0
        %v1800 = vadd.f32 %v1637, %v1799
        %1801 = vmatprep.mubr.bf16.mxu0 0
        %1802 = vmatmul.mubr.bf16.gmra.mrb[0].mxu0 %v610
        %v1803 = vpop.f32.mrb[0].mxu0
        %v1804 = vadd.f32 %v1641, %v1803
        %v1805 = vpop.f32.mrb[0].mxu0
        %v1806 = vadd.f32 %v1643, %v1805
        %v1807 = vpop.f32.mrb[0].mxu0
        %v1808 = vadd.f32 %v1645, %v1807
        %v1809 = vpop.f32.mrb[0].mxu0
        %v1810 = vadd.f32 %v1647, %v1809
        %1811 = vmatprep.mubr.bf16.mxu0 0
        %1812 = vmatmul.mubr.bf16.gmra.mrb[0].mxu0 %v613
        %v1813 = vpop.f32.mrb[0].mxu0
        %v1814 = vadd.f32 %v1651, %v1813
        %v1815 = vpop.f32.mrb[0].mxu0
        %v1816 = vadd.f32 %v1653, %v1815
        %v1817 = vpop.f32.mrb[0].mxu0
        %v1818 = vadd.f32 %v1655, %v1817
        %v1819 = vpop.f32.mrb[0].mxu0
        %v1820 = vadd.f32 %v1657, %v1819
        %1821 = vmatprep.mubr.bf16.mxu0 0
        %1822 = vmatmul.mubr.bf16.gmra.mrb[0].mxu0 %v616
        %v1823 = vpop.f32.mrb[0].mxu0
        %v1824 = vadd.f32 %v1661, %v1823
        %v1825 = vpop.f32.mrb[0].mxu0
        %v1826 = vadd.f32 %v1663, %v1825
        %v1827 = vpop.f32.mrb[0].mxu0
        %v1828 = vadd.f32 %v1665, %v1827
        %v1829 = vpop.f32.mrb[0].mxu0
        %v1830 = vadd.f32 %v1667, %v1829
        %1831 = vmatprep.mubr.bf16.mxu0 0
        %1832 = vmatmul.mubr.bf16.gmra.mrb[0].mxu0 %v619
        %v1833 = vpop.f32.mrb[0].mxu0
        %v1834 = vadd.f32 %v1671, %v1833
        %v1835 = vpop.f32.mrb[0].mxu0
        %v1836 = vadd.f32 %v1673, %v1835
        %v1837 = vpop.f32.mrb[0].mxu0
        %v1838 = vadd.f32 %v1675, %v1837
        %v1839 = vpop.f32.mrb[0].mxu0
        %v1840 = vadd.f32 %v1677, %v1839
        %1841 = vmatprep.mubr.bf16.mxu0 0
        %1842 = vmatmul.mubr.bf16.gmra.mrb[0].mxu0 %v622
        %v1843 = vpop.f32.mrb[0].mxu0
        %v1844 = vadd.f32 %v1681, %v1843
        %v1845 = vpop.f32.mrb[0].mxu0
        %v1846 = vadd.f32 %v1683, %v1845
        %v1847 = vpop.f32.mrb[0].mxu0
        %v1848 = vadd.f32 %v1685, %v1847
        %v1849 = vpop.f32.mrb[0].mxu0
        %v1850 = vadd.f32 %v1687, %v1849
        %1851 = vmatprep.mubr.bf16.mxu0 0
        %1852 = vmatmul.mubr.bf16.gmra.mrb[0].mxu0 %v625
        %v1853 = vpop.f32.mrb[0].mxu0
        %v1854 = vadd.f32 %v1691, %v1853
        %v1855 = vpop.f32.mrb[0].mxu0
        %v1856 = vadd.f32 %v1693, %v1855
        %v1857 = vpop.f32.mrb[0].mxu0
        %v1858 = vadd.f32 %v1695, %v1857
        %v1859 = vpop.f32.mrb[0].mxu0
        %v1860 = vadd.f32 %v1697, %v1859
        %1861 = vmatprep.mubr.bf16.mxu0 0
        %1862 = vmatmul.mubr.bf16.gmra.mrb[0].mxu0 %v628
        %v1863 = vpop.f32.mrb[0].mxu0
        %v1864 = vadd.f32 %v1701, %v1863
        %v1865 = vpop.f32.mrb[0].mxu0
        %v1866 = vadd.f32 %v1703, %v1865
        %v1867 = vpop.f32.mrb[0].mxu0
        %v1868 = vadd.f32 %v1705, %v1867
        %v1869 = vpop.f32.mrb[0].mxu0
        %v1870 = vadd.f32 %v1707, %v1869
        %1871 = vmatprep.mubr.bf16.mxu0 0
        %1872 = vmatmul.mubr.bf16.gmra.mrb[0].mxu0 %v631
        %v1873 = vpop.f32.mrb[0].mxu0
        %v1874 = vadd.f32 %v1711, %v1873
        %v1875 = vpop.f32.mrb[0].mxu0
        %v1876 = vadd.f32 %v1713, %v1875
        %v1877 = vpop.f32.mrb[0].mxu0
        %v1878 = vadd.f32 %v1715, %v1877
        %v1879 = vpop.f32.mrb[0].mxu0
        %v1880 = vadd.f32 %v1717, %v1879
        %1881 = vdwg.mxu0
        %v1882 = vmul.f32 %v1428, 0.5
        %v1883 = vmul.f32 %v1430, 0.5
        %v1884 = vmul.f32 %v1754, 0.5
        %v1885 = vmul.f32 %v1756, 0.5
        %v1886 = vmul.f32 %v1432, 0.5
        %v1887 = vmul.f32 %v1434, 0.5
        %v1888 = vmul.f32 %v1758, 0.5
        %v1889 = vmul.f32 %v1760, 0.5
        %v1890 = vmul.f32 %v1438, 0.5
        %v1891 = vmul.f32 %v1440, 0.5
        %v1892 = vmul.f32 %v1764, 0.5
        %v1893 = vmul.f32 %v1766, 0.5
        %v1894 = vmul.f32 %v1442, 0.5
        %v1895 = vmul.f32 %v1444, 0.5
        %v1896 = vmul.f32 %v1768, 0.5
        %v1897 = vmul.f32 %v1770, 0.5
        %v1898 = vmul.f32 %v1448, 0.5
        %v1899 = vmul.f32 %v1450, 0.5
        %v1900 = vmul.f32 %v1774, 0.5
        %v1901 = vmul.f32 %v1776, 0.5
        %v1902 = vmul.f32 %v1452, 0.5
        %v1903 = vmul.f32 %v1454, 0.5
        %v1904 = vmul.f32 %v1778, 0.5
        %v1905 = vmul.f32 %v1780, 0.5
        %v1906 = vmul.f32 %v1458, 0.5
        %v1907 = vmul.f32 %v1460, 0.5
        %v1908 = vmul.f32 %v1784, 0.5
        %v1909 = vmul.f32 %v1786, 0.5
        %v1910 = vmul.f32 %v1462, 0.5
        %v1911 = vmul.f32 %v1464, 0.5
        %v1912 = vmul.f32 %v1788, 0.5
        %v1913 = vmul.f32 %v1790, 0.5
        %v1914 = vmul.f32 %v1468, 0.5
        %v1915 = vmul.f32 %v1470, 0.5
        %v1916 = vmul.f32 %v1794, 0.5
        %v1917 = vmul.f32 %v1796, 0.5
        %v1918 = vmul.f32 %v1472, 0.5
        %v1919 = vmul.f32 %v1474, 0.5
        %v1920 = vmul.f32 %v1798, 0.5
        %v1921 = vmul.f32 %v1800, 0.5
        %v1922 = vmul.f32 %v1478, 0.5
        %v1923 = vmul.f32 %v1480, 0.5
        %v1924 = vmul.f32 %v1804, 0.5
        %v1925 = vmul.f32 %v1806, 0.5
        %v1926 = vmul.f32 %v1482, 0.5
        %v1927 = vmul.f32 %v1484, 0.5
        %v1928 = vmul.f32 %v1808, 0.5
        %v1929 = vmul.f32 %v1810, 0.5
        %v1930 = vmul.f32 %v1488, 0.5
        %v1931 = vmul.f32 %v1490, 0.5
        %v1932 = vmul.f32 %v1814, 0.5
        %v1933 = vmul.f32 %v1816, 0.5
        %v1934 = vmul.f32 %v1492, 0.5
        %v1935 = vmul.f32 %v1494, 0.5
        %v1936 = vmul.f32 %v1818, 0.5
        %v1937 = vmul.f32 %v1820, 0.5
        %v1938 = vmul.f32 %v1498, 0.5
        %v1939 = vmul.f32 %v1500, 0.5
        %v1940 = vmul.f32 %v1824, 0.5
        %v1941 = vmul.f32 %v1826, 0.5
        %v1942 = vmul.f32 %v1502, 0.5
        %v1943 = vmul.f32 %v1504, 0.5
        %v1944 = vmul.f32 %v1828, 0.5
        %v1945 = vmul.f32 %v1830, 0.5
        %v1946 = vmul.f32 %v1508, 0.5
        %v1947 = vmul.f32 %v1510, 0.5
        %v1948 = vmul.f32 %v1834, 0.5
        %v1949 = vmul.f32 %v1836, 0.5
        %v1950 = vmul.f32 %v1512, 0.5
        %v1951 = vmul.f32 %v1514, 0.5
        %v1952 = vmul.f32 %v1838, 0.5
        %v1953 = vmul.f32 %v1840, 0.5
        %v1954 = vmul.f32 %v1518, 0.5
        %v1955 = vmul.f32 %v1520, 0.5
        %v1956 = vmul.f32 %v1844, 0.5
        %v1957 = vmul.f32 %v1846, 0.5
        %v1958 = vmul.f32 %v1522, 0.5
        %v1959 = vmul.f32 %v1524, 0.5
        %v1960 = vmul.f32 %v1848, 0.5
        %v1961 = vmul.f32 %v1850, 0.5
        %v1962 = vmul.f32 %v1528, 0.5
        %v1963 = vmul.f32 %v1530, 0.5
        %v1964 = vmul.f32 %v1854, 0.5
        %v1965 = vmul.f32 %v1856, 0.5
        %v1966 = vmul.f32 %v1532, 0.5
        %v1967 = vmul.f32 %v1534, 0.5
        %v1968 = vmul.f32 %v1858, 0.5
        %v1969 = vmul.f32 %v1860, 0.5
        %v1970 = vmul.f32 %v1538, 0.5
        %v1971 = vmul.f32 %v1540, 0.5
        %v1972 = vmul.f32 %v1864, 0.5
        %v1973 = vmul.f32 %v1866, 0.5
        %v1974 = vmul.f32 %v1542, 0.5
        %v1975 = vmul.f32 %v1544, 0.5
        %v1976 = vmul.f32 %v1868, 0.5
        %v1977 = vmul.f32 %v1870, 0.5
        %v1978 = vmul.f32 %v1548, 0.5
        %v1979 = vmul.f32 %v1550, 0.5
        %v1980 = vmul.f32 %v1874, 0.5
        %v1981 = vmul.f32 %v1876, 0.5
        %v1982 = vmul.f32 %v1552, 0.5
        %v1983 = vmul.f32 %v1554, 0.5
        %v1984 = vmul.f32 %v1878, 0.5
        %v1985 = vmul.f32 %v1880, 0.5
        %v1986 = vmul.f32 %v1428, 0.70710677
        %v1987 = vmul.f32 %v1430, 0.70710677
        %v1988 = vmul.f32 %v1754, 0.70710677
        %v1989 = vmul.f32 %v1756, 0.70710677
        %v1990 = vmul.f32 %v1432, 0.70710677
        %v1991 = vmul.f32 %v1434, 0.70710677
        %v1992 = vmul.f32 %v1758, 0.70710677
        %v1993 = vmul.f32 %v1760, 0.70710677
        %v1994 = vmul.f32 %v1438, 0.70710677
        %v1995 = vmul.f32 %v1440, 0.70710677
        %v1996 = vmul.f32 %v1764, 0.70710677
        %v1997 = vmul.f32 %v1766, 0.70710677
        %v1998 = vmul.f32 %v1442, 0.70710677
        %v1999 = vmul.f32 %v1444, 0.70710677
        %v2000 = vmul.f32 %v1768, 0.70710677
        %v2001 = vmul.f32 %v1770, 0.70710677
        %v2002 = vmul.f32 %v1448, 0.70710677
        %v2003 = vmul.f32 %v1450, 0.70710677
        %v2004 = vmul.f32 %v1774, 0.70710677
        %v2005 = vmul.f32 %v1776, 0.70710677
        %v2006 = vmul.f32 %v1452, 0.70710677
        %v2007 = vmul.f32 %v1454, 0.70710677
        %v2008 = vmul.f32 %v1778, 0.70710677
        %v2009 = vmul.f32 %v1780, 0.70710677
        %v2010 = vmul.f32 %v1458, 0.70710677
        %v2011 = vmul.f32 %v1460, 0.70710677
        %v2012 = vmul.f32 %v1784, 0.70710677
        %v2013 = vmul.f32 %v1786, 0.70710677
        %v2014 = vmul.f32 %v1462, 0.70710677
        %v2015 = vmul.f32 %v1464, 0.70710677
        %v2016 = vmul.f32 %v1788, 0.70710677
        %v2017 = vmul.f32 %v1790, 0.70710677
        %v2018 = vmul.f32 %v1468, 0.70710677
        %v2019 = vmul.f32 %v1470, 0.70710677
        %v2020 = vmul.f32 %v1794, 0.70710677
        %v2021 = vmul.f32 %v1796, 0.70710677
        %v2022 = vmul.f32 %v1472, 0.70710677
        %v2023 = vmul.f32 %v1474, 0.70710677
        %v2024 = vmul.f32 %v1798, 0.70710677
        %v2025 = vmul.f32 %v1800, 0.70710677
        %v2026 = vmul.f32 %v1478, 0.70710677
        %v2027 = vmul.f32 %v1480, 0.70710677
        %v2028 = vmul.f32 %v1804, 0.70710677
        %v2029 = vmul.f32 %v1806, 0.70710677
        %v2030 = vmul.f32 %v1482, 0.70710677
        %v2031 = vmul.f32 %v1484, 0.70710677
        %v2032 = vmul.f32 %v1808, 0.70710677
        %v2033 = vmul.f32 %v1810, 0.70710677
        %v2034 = vmul.f32 %v1488, 0.70710677
        %v2035 = vmul.f32 %v1490, 0.70710677
        %v2036 = vmul.f32 %v1814, 0.70710677
        %v2037 = vmul.f32 %v1816, 0.70710677
        %v2038 = vmul.f32 %v1492, 0.70710677
        %v2039 = vmul.f32 %v1494, 0.70710677
        %v2040 = vmul.f32 %v1818, 0.70710677
        %v2041 = vmul.f32 %v1820, 0.70710677
        %v2042 = vmul.f32 %v1498, 0.70710677
        %v2043 = vmul.f32 %v1500, 0.70710677
        %v2044 = vmul.f32 %v1824, 0.70710677
        %v2045 = vmul.f32 %v1826, 0.70710677
        %v2046 = vmul.f32 %v1502, 0.70710677
        %v2047 = vmul.f32 %v1504, 0.70710677
        %v2048 = vmul.f32 %v1828, 0.70710677
        %v2049 = vmul.f32 %v1830, 0.70710677
        %v2050 = vmul.f32 %v1508, 0.70710677
        %v2051 = vmul.f32 %v1510, 0.70710677
        %v2052 = vmul.f32 %v1834, 0.70710677
        %v2053 = vmul.f32 %v1836, 0.70710677
        %v2054 = vmul.f32 %v1512, 0.70710677
        %v2055 = vmul.f32 %v1514, 0.70710677
        %v2056 = vmul.f32 %v1838, 0.70710677
        %v2057 = vmul.f32 %v1840, 0.70710677
        %v2058 = vmul.f32 %v1518, 0.70710677
        %v2059 = vmul.f32 %v1520, 0.70710677
        %v2060 = vmul.f32 %v1844, 0.70710677
        %v2061 = vmul.f32 %v1846, 0.70710677
        %v2062 = vmul.f32 %v1522, 0.70710677
        %v2063 = vmul.f32 %v1524, 0.70710677
        %v2064 = vmul.f32 %v1848, 0.70710677
        %v2065 = vmul.f32 %v1850, 0.70710677
        %v2066 = vmul.f32 %v1528, 0.70710677
        %v2067 = vmul.f32 %v1530, 0.70710677
        %v2068 = vmul.f32 %v1854, 0.70710677
        %v2069 = vmul.f32 %v1856, 0.70710677
        %v2070 = vmul.f32 %v1532, 0.70710677
        %v2071 = vmul.f32 %v1534, 0.70710677
        %v2072 = vmul.f32 %v1858, 0.70710677
        %v2073 = vmul.f32 %v1860, 0.70710677
        %v2074 = vmul.f32 %v1538, 0.70710677
        %v2075 = vmul.f32 %v1540, 0.70710677
        %v2076 = vmul.f32 %v1864, 0.70710677
        %v2077 = vmul.f32 %v1866, 0.70710677
        %v2078 = vmul.f32 %v1542, 0.70710677
        %v2079 = vmul.f32 %v1544, 0.70710677
        %v2080 = vmul.f32 %v1868, 0.70710677
        %v2081 = vmul.f32 %v1870, 0.70710677
        %v2082 = vmul.f32 %v1548, 0.70710677
        %v2083 = vmul.f32 %v1550, 0.70710677
        %v2084 = vmul.f32 %v1874, 0.70710677
        %v2085 = vmul.f32 %v1876, 0.70710677
        %v2086 = vmul.f32 %v1552, 0.70710677
        %v2087 = vmul.f32 %v1554, 0.70710677
        %v2088 = vmul.f32 %v1878, 0.70710677
        %v2089 = vmul.f32 %v1880, 0.70710677
        %v2090 = verf.f32.pop %v1986
        %v2091 = verf.f32.pop %v1987
        %v2092 = verf.f32.pop %v1988
        %v2093 = verf.f32.pop %v1989
        %v2094 = verf.f32.pop %v1990
        %v2095 = verf.f32.pop %v1991
        %v2096 = verf.f32.pop %v1992
        %v2097 = verf.f32.pop %v1993
        %v2098 = verf.f32.pop %v1994
        %v2099 = verf.f32.pop %v1995
        %v2100 = verf.f32.pop %v1996
        %v2101 = verf.f32.pop %v1997
        %v2102 = verf.f32.pop %v1998
        %v2103 = verf.f32.pop %v1999
        %v2104 = verf.f32.pop %v2000
        %v2105 = verf.f32.pop %v2001
        %v2106 = verf.f32.pop %v2002
        %v2107 = verf.f32.pop %v2003
        %v2108 = verf.f32.pop %v2004
        %v2109 = verf.f32.pop %v2005
        %v2110 = verf.f32.pop %v2006
        %v2111 = verf.f32.pop %v2007
        %v2112 = verf.f32.pop %v2008
        %v2113 = verf.f32.pop %v2009
        %v2114 = verf.f32.pop %v2010
        %v2115 = verf.f32.pop %v2011
        %v2116 = verf.f32.pop %v2012
        %v2117 = verf.f32.pop %v2013
        %v2118 = verf.f32.pop %v2014
        %v2119 = verf.f32.pop %v2015
        %v2120 = verf.f32.pop %v2016
        %v2121 = verf.f32.pop %v2017
        %v2122 = verf.f32.pop %v2018
        %v2123 = verf.f32.pop %v2019
        %v2124 = verf.f32.pop %v2020
        %v2125 = verf.f32.pop %v2021
        %v2126 = verf.f32.pop %v2022
        %v2127 = verf.f32.pop %v2023
        %v2128 = verf.f32.pop %v2024
        %v2129 = verf.f32.pop %v2025
        %v2130 = verf.f32.pop %v2026
        %v2131 = verf.f32.pop %v2027
        %v2132 = verf.f32.pop %v2028
        %v2133 = verf.f32.pop %v2029
        %v2134 = verf.f32.pop %v2030
        %v2135 = verf.f32.pop %v2031
        %v2136 = verf.f32.pop %v2032
        %v2137 = verf.f32.pop %v2033
        %v2138 = verf.f32.pop %v2034
        %v2139 = verf.f32.pop %v2035
        %v2140 = verf.f32.pop %v2036
        %v2141 = verf.f32.pop %v2037
        %v2142 = verf.f32.pop %v2038
        %v2143 = verf.f32.pop %v2039
        %v2144 = verf.f32.pop %v2040
        %v2145 = verf.f32.pop %v2041
        %v2146 = verf.f32.pop %v2042
        %v2147 = verf.f32.pop %v2043
        %v2148 = verf.f32.pop %v2044
        %v2149 = verf.f32.pop %v2045
        %v2150 = verf.f32.pop %v2046
        %v2151 = verf.f32.pop %v2047
        %v2152 = verf.f32.pop %v2048
        %v2153 = verf.f32.pop %v2049
        %v2154 = verf.f32.pop %v2050
        %v2155 = verf.f32.pop %v2051
        %v2156 = verf.f32.pop %v2052
        %v2157 = verf.f32.pop %v2053
        %v2158 = verf.f32.pop %v2054
        %v2159 = verf.f32.pop %v2055
        %v2160 = verf.f32.pop %v2056
        %v2161 = verf.f32.pop %v2057
        %v2162 = verf.f32.pop %v2058
        %v2163 = verf.f32.pop %v2059
        %v2164 = verf.f32.pop %v2060
        %v2165 = verf.f32.pop %v2061
        %v2166 = verf.f32.pop %v2062
        %v2167 = verf.f32.pop %v2063
        %v2168 = verf.f32.pop %v2064
        %v2169 = verf.f32.pop %v2065
        %v2170 = verf.f32.pop %v2066
        %v2171 = verf.f32.pop %v2067
        %v2172 = verf.f32.pop %v2068
        %v2173 = verf.f32.pop %v2069
        %v2174 = verf.f32.pop %v2070
        %v2175 = verf.f32.pop %v2071
        %v2176 = verf.f32.pop %v2072
        %v2177 = verf.f32.pop %v2073
        %v2178 = verf.f32.pop %v2074
        %v2179 = verf.f32.pop %v2075
        %v2180 = verf.f32.pop %v2076
        %v2181 = verf.f32.pop %v2077
        %v2182 = verf.f32.pop %v2078
        %v2183 = verf.f32.pop %v2079
        %v2184 = verf.f32.pop %v2080
        %v2185 = verf.f32.pop %v2081
        %v2186 = verf.f32.pop %v2082
        %v2187 = verf.f32.pop %v2083
        %v2188 = verf.f32.pop %v2084
        %v2189 = verf.f32.pop %v2085
        %v2190 = verf.f32.pop %v2086
        %v2191 = verf.f32.pop %v2087
        %v2192 = verf.f32.pop %v2088
        %v2193 = verf.f32.pop %v2089
        %v2194 = vadd.f32 %v2090, 1.0
        %v2195 = vadd.f32 %v2091, 1.0
        %v2196 = vadd.f32 %v2092, 1.0
        %v2197 = vadd.f32 %v2093, 1.0
        %v2198 = vadd.f32 %v2094, 1.0
        %v2199 = vadd.f32 %v2095, 1.0
        %v2200 = vadd.f32 %v2096, 1.0
        %v2201 = vadd.f32 %v2097, 1.0
        %v2202 = vadd.f32 %v2098, 1.0
        %v2203 = vadd.f32 %v2099, 1.0
        %v2204 = vadd.f32 %v2100, 1.0
        %v2205 = vadd.f32 %v2101, 1.0
        %v2206 = vadd.f32 %v2102, 1.0
        %v2207 = vadd.f32 %v2103, 1.0
        %v2208 = vadd.f32 %v2104, 1.0
        %v2209 = vadd.f32 %v2105, 1.0
        %v2210 = vadd.f32 %v2106, 1.0
        %v2211 = vadd.f32 %v2107, 1.0
        %v2212 = vadd.f32 %v2108, 1.0
        %v2213 = vadd.f32 %v2109, 1.0
        %v2214 = vadd.f32 %v2110, 1.0
        %v2215 = vadd.f32 %v2111, 1.0
        %v2216 = vadd.f32 %v2112, 1.0
        %v2217 = vadd.f32 %v2113, 1.0
        %v2218 = vadd.f32 %v2114, 1.0
        %v2219 = vadd.f32 %v2115, 1.0
        %v2220 = vadd.f32 %v2116, 1.0
        %v2221 = vadd.f32 %v2117, 1.0
        %v2222 = vadd.f32 %v2118, 1.0
        %v2223 = vadd.f32 %v2119, 1.0
        %v2224 = vadd.f32 %v2120, 1.0
        %v2225 = vadd.f32 %v2121, 1.0
        %v2226 = vadd.f32 %v2122, 1.0
        %v2227 = vadd.f32 %v2123, 1.0
        %v2228 = vadd.f32 %v2124, 1.0
        %v2229 = vadd.f32 %v2125, 1.0
        %v2230 = vadd.f32 %v2126, 1.0
        %v2231 = vadd.f32 %v2127, 1.0
        %v2232 = vadd.f32 %v2128, 1.0
        %v2233 = vadd.f32 %v2129, 1.0
        %v2234 = vadd.f32 %v2130, 1.0
        %v2235 = vadd.f32 %v2131, 1.0
        %v2236 = vadd.f32 %v2132, 1.0
        %v2237 = vadd.f32 %v2133, 1.0
        %v2238 = vadd.f32 %v2134, 1.0
        %v2239 = vadd.f32 %v2135, 1.0
        %v2240 = vadd.f32 %v2136, 1.0
        %v2241 = vadd.f32 %v2137, 1.0
        %v2242 = vadd.f32 %v2138, 1.0
        %v2243 = vadd.f32 %v2139, 1.0
        %v2244 = vadd.f32 %v2140, 1.0
        %v2245 = vadd.f32 %v2141, 1.0
        %v2246 = vadd.f32 %v2142, 1.0
        %v2247 = vadd.f32 %v2143, 1.0
        %v2248 = vadd.f32 %v2144, 1.0
        %v2249 = vadd.f32 %v2145, 1.0
        %v2250 = vadd.f32 %v2146, 1.0
        %v2251 = vadd.f32 %v2147, 1.0
        %v2252 = vadd.f32 %v2148, 1.0
        %v2253 = vadd.f32 %v2149, 1.0
        %v2254 = vadd.f32 %v2150, 1.0
        %v2255 = vadd.f32 %v2151, 1.0
        %v2256 = vadd.f32 %v2152, 1.0
        %v2257 = vadd.f32 %v2153, 1.0
        %v2258 = vadd.f32 %v2154, 1.0
        %v2259 = vadd.f32 %v2155, 1.0
        %v2260 = vadd.f32 %v2156, 1.0
        %v2261 = vadd.f32 %v2157, 1.0
        %v2262 = vadd.f32 %v2158, 1.0
        %v2263 = vadd.f32 %v2159, 1.0
        %v2264 = vadd.f32 %v2160, 1.0
        %v2265 = vadd.f32 %v2161, 1.0
        %v2266 = vadd.f32 %v2162, 1.0
        %v2267 = vadd.f32 %v2163, 1.0
        %v2268 = vadd.f32 %v2164, 1.0
        %v2269 = vadd.f32 %v2165, 1.0
        %v2270 = vadd.f32 %v2166, 1.0
        %v2271 = vadd.f32 %v2167, 1.0
        %v2272 = vadd.f32 %v2168, 1.0
        %v2273 = vadd.f32 %v2169, 1.0
        %v2274 = vadd.f32 %v2170, 1.0
        %v2275 = vadd.f32 %v2171, 1.0
        %v2276 = vadd.f32 %v2172, 1.0
        %v2277 = vadd.f32 %v2173, 1.0
        %v2278 = vadd.f32 %v2174, 1.0
        %v2279 = vadd.f32 %v2175, 1.0
        %v2280 = vadd.f32 %v2176, 1.0
        %v2281 = vadd.f32 %v2177, 1.0
        %v2282 = vadd.f32 %v2178, 1.0
        %v2283 = vadd.f32 %v2179, 1.0
        %v2284 = vadd.f32 %v2180, 1.0
        %v2285 = vadd.f32 %v2181, 1.0
        %v2286 = vadd.f32 %v2182, 1.0
        %v2287 = vadd.f32 %v2183, 1.0
        %v2288 = vadd.f32 %v2184, 1.0
        %v2289 = vadd.f32 %v2185, 1.0
        %v2290 = vadd.f32 %v2186, 1.0
        %v2291 = vadd.f32 %v2187, 1.0
        %v2292 = vadd.f32 %v2188, 1.0
        %v2293 = vadd.f32 %v2189, 1.0
        %v2294 = vadd.f32 %v2190, 1.0
        %v2295 = vadd.f32 %v2191, 1.0
        %v2296 = vadd.f32 %v2192, 1.0
        %v2297 = vadd.f32 %v2193, 1.0
        %v2298 = vmul.f32 %v1882, %v2194
        %v2299 = vmul.f32 %v1883, %v2195
        %v2300 = vmul.f32 %v1884, %v2196
        %v2301 = vmul.f32 %v1885, %v2197
        %v2302 = vmul.f32 %v1886, %v2198
        %v2303 = vmul.f32 %v1887, %v2199
        %v2304 = vmul.f32 %v1888, %v2200
        %v2305 = vmul.f32 %v1889, %v2201
        %v2306 = vmul.f32 %v1890, %v2202
        %v2307 = vmul.f32 %v1891, %v2203
        %v2308 = vmul.f32 %v1892, %v2204
        %v2309 = vmul.f32 %v1893, %v2205
        %v2310 = vmul.f32 %v1894, %v2206
        %v2311 = vmul.f32 %v1895, %v2207
        %v2312 = vmul.f32 %v1896, %v2208
        %v2313 = vmul.f32 %v1897, %v2209
        %v2314 = vmul.f32 %v1898, %v2210
        %v2315 = vmul.f32 %v1899, %v2211
        %v2316 = vmul.f32 %v1900, %v2212
        %v2317 = vmul.f32 %v1901, %v2213
        %v2318 = vmul.f32 %v1902, %v2214
        %v2319 = vmul.f32 %v1903, %v2215
        %v2320 = vmul.f32 %v1904, %v2216
        %v2321 = vmul.f32 %v1905, %v2217
        %v2322 = vmul.f32 %v1906, %v2218
        %v2323 = vmul.f32 %v1907, %v2219
        %v2324 = vmul.f32 %v1908, %v2220
        %v2325 = vmul.f32 %v1909, %v2221
        %v2326 = vmul.f32 %v1910, %v2222
        %v2327 = vmul.f32 %v1911, %v2223
        %v2328 = vmul.f32 %v1912, %v2224
        %v2329 = vmul.f32 %v1913, %v2225
        %v2330 = vmul.f32 %v1914, %v2226
        %v2331 = vmul.f32 %v1915, %v2227
        %v2332 = vmul.f32 %v1916, %v2228
        %v2333 = vmul.f32 %v1917, %v2229
        %v2334 = vmul.f32 %v1918, %v2230
        %v2335 = vmul.f32 %v1919, %v2231
        %v2336 = vmul.f32 %v1920, %v2232
        %v2337 = vmul.f32 %v1921, %v2233
        %v2338 = vmul.f32 %v1922, %v2234
        %v2339 = vmul.f32 %v1923, %v2235
        %v2340 = vmul.f32 %v1924, %v2236
        %v2341 = vmul.f32 %v1925, %v2237
        %v2342 = vmul.f32 %v1926, %v2238
        %v2343 = vmul.f32 %v1927, %v2239
        %v2344 = vmul.f32 %v1928, %v2240
        %v2345 = vmul.f32 %v1929, %v2241
        %v2346 = vmul.f32 %v1930, %v2242
        %v2347 = vmul.f32 %v1931, %v2243
        %v2348 = vmul.f32 %v1932, %v2244
        %v2349 = vmul.f32 %v1933, %v2245
        %v2350 = vmul.f32 %v1934, %v2246
        %v2351 = vmul.f32 %v1935, %v2247
        %v2352 = vmul.f32 %v1936, %v2248
        %v2353 = vmul.f32 %v1937, %v2249
        %v2354 = vmul.f32 %v1938, %v2250
        %v2355 = vmul.f32 %v1939, %v2251
        %v2356 = vmul.f32 %v1940, %v2252
        %v2357 = vmul.f32 %v1941, %v2253
        %v2358 = vmul.f32 %v1942, %v2254
        %v2359 = vmul.f32 %v1943, %v2255
        %v2360 = vmul.f32 %v1944, %v2256
        %v2361 = vmul.f32 %v1945, %v2257
        %v2362 = vmul.f32 %v1946, %v2258
        %v2363 = vmul.f32 %v1947, %v2259
        %v2364 = vmul.f32 %v1948, %v2260
        %v2365 = vmul.f32 %v1949, %v2261
        %v2366 = vmul.f32 %v1950, %v2262
        %v2367 = vmul.f32 %v1951, %v2263
        %v2368 = vmul.f32 %v1952, %v2264
        %v2369 = vmul.f32 %v1953, %v2265
        %v2370 = vmul.f32 %v1954, %v2266
        %v2371 = vmul.f32 %v1955, %v2267
        %v2372 = vmul.f32 %v1956, %v2268
        %v2373 = vmul.f32 %v1957, %v2269
        %v2374 = vmul.f32 %v1958, %v2270
        %v2375 = vmul.f32 %v1959, %v2271
        %v2376 = vmul.f32 %v1960, %v2272
        %v2377 = vmul.f32 %v1961, %v2273
        %v2378 = vmul.f32 %v1962, %v2274
        %v2379 = vmul.f32 %v1963, %v2275
        %v2380 = vmul.f32 %v1964, %v2276
        %v2381 = vmul.f32 %v1965, %v2277
        %v2382 = vmul.f32 %v1966, %v2278
        %v2383 = vmul.f32 %v1967, %v2279
        %v2384 = vmul.f32 %v1968, %v2280
        %v2385 = vmul.f32 %v1969, %v2281
        %v2386 = vmul.f32 %v1970, %v2282
        %v2387 = vmul.f32 %v1971, %v2283
        %v2388 = vmul.f32 %v1972, %v2284
        %v2389 = vmul.f32 %v1973, %v2285
        %v2390 = vmul.f32 %v1974, %v2286
        %v2391 = vmul.f32 %v1975, %v2287
        %v2392 = vmul.f32 %v1976, %v2288
        %v2393 = vmul.f32 %v1977, %v2289
        %v2394 = vmul.f32 %v1978, %v2290
        %v2395 = vmul.f32 %v1979, %v2291
        %v2396 = vmul.f32 %v1980, %v2292
        %v2397 = vmul.f32 %v1981, %v2293
        %v2398 = vmul.f32 %v1982, %v2294
        %v2399 = vmul.f32 %v1983, %v2295
        %v2400 = vmul.f32 %v1984, %v2296
        %v2401 = vmul.f32 %v1985, %v2297
        %v2402 = vld [vmem:[#allocation12] sm:$0xff]
        %v2403 = vld [vmem:[#allocation12 + $0x8] sm:$0xff]
        %v2404 = vld [vmem:[#allocation12 + $0x10] sm:$0xff]
        %v2405 = vld [vmem:[#allocation12 + $0x18] sm:$0xff]
        %v2406 = vld [vmem:[#allocation12 + $0x20] sm:$0xff]
        %v2407 = vld [vmem:[#allocation12 + $0x28] sm:$0xff]
        %v2408 = vld [vmem:[#allocation12 + $0x30] sm:$0xff]
        %v2409 = vld [vmem:[#allocation12 + $0x38] sm:$0xff]
        %v2410 = vld [vmem:[#allocation12 + $0x40] sm:$0xff]
        %v2411 = vld [vmem:[#allocation12 + $0x48] sm:$0xff]
        %v2412 = vld [vmem:[#allocation12 + $0x50] sm:$0xff]
        %v2413 = vld [vmem:[#allocation12 + $0x58] sm:$0xff]
        %v2414 = vld [vmem:[#allocation12 + $0x60] sm:$0xff]
        %v2415 = vld [vmem:[#allocation12 + $0x68] sm:$0xff]
        %v2416 = vld [vmem:[#allocation12 + $0x70] sm:$0xff]
        %v2417 = vld [vmem:[#allocation12 + $0x78] sm:$0xff]
        %v2418 = vld [vmem:[#allocation12 + $0x80] sm:$0xff]
        %v2419 = vld [vmem:[#allocation12 + $0x88] sm:$0xff]
        %v2420 = vld [vmem:[#allocation12 + $0x90] sm:$0xff]
        %v2421 = vld [vmem:[#allocation12 + $0x98] sm:$0xff]
        %v2422 = vld [vmem:[#allocation12 + $0xa0] sm:$0xff]
        %v2423 = vld [vmem:[#allocation12 + $0xa8] sm:$0xff]
        %v2424 = vld [vmem:[#allocation12 + $0xb0] sm:$0xff]
        %v2425 = vld [vmem:[#allocation12 + $0xb8] sm:$0xff]
        %v2426 = vld [vmem:[#allocation12 + $0xc0] sm:$0xff]
        %v2427 = vld [vmem:[#allocation12 + $0xc8] sm:$0xff]
        %v2428 = vld [vmem:[#allocation12 + $0xd0] sm:$0xff]
        %v2429 = vld [vmem:[#allocation12 + $0xd8] sm:$0xff]
        %v2430 = vld [vmem:[#allocation12 + $0xe0] sm:$0xff]
        %v2431 = vld [vmem:[#allocation12 + $0xe8] sm:$0xff]
        %v2432 = vld [vmem:[#allocation12 + $0xf0] sm:$0xff]
        %v2433 = vld [vmem:[#allocation12 + $0xf8] sm:$0xff]
        %v2434 = vld [vmem:[#allocation12 + $0x100] sm:$0xff]
        %v2435 = vld [vmem:[#allocation12 + $0x108] sm:$0xff]
        %v2436 = vld [vmem:[#allocation12 + $0x110] sm:$0xff]
        %v2437 = vld [vmem:[#allocation12 + $0x118] sm:$0xff]
        %v2438 = vld [vmem:[#allocation12 + $0x120] sm:$0xff]
        %v2439 = vld [vmem:[#allocation12 + $0x128] sm:$0xff]
        %v2440 = vld [vmem:[#allocation12 + $0x130] sm:$0xff]
        %v2441 = vld [vmem:[#allocation12 + $0x138] sm:$0xff]
        %v2442 = vld [vmem:[#allocation12 + $0x140] sm:$0xff]
        %v2443 = vld [vmem:[#allocation12 + $0x148] sm:$0xff]
        %v2444 = vld [vmem:[#allocation12 + $0x150] sm:$0xff]
        %v2445 = vld [vmem:[#allocation12 + $0x158] sm:$0xff]
        %v2446 = vld [vmem:[#allocation12 + $0x160] sm:$0xff]
        %v2447 = vld [vmem:[#allocation12 + $0x168] sm:$0xff]
        %v2448 = vld [vmem:[#allocation12 + $0x170] sm:$0xff]
        %v2449 = vld [vmem:[#allocation12 + $0x178] sm:$0xff]
        %v2450 = vld [vmem:[#allocation12 + $0x180] sm:$0xff]
        %v2451 = vld [vmem:[#allocation12 + $0x188] sm:$0xff]
        %v2452 = vld [vmem:[#allocation12 + $0x190] sm:$0xff]
        %v2453 = vld [vmem:[#allocation12 + $0x198] sm:$0xff]
        %v2454 = vld [vmem:[#allocation12 + $0x1a0] sm:$0xff]
        %v2455 = vld [vmem:[#allocation12 + $0x1a8] sm:$0xff]
        %v2456 = vld [vmem:[#allocation12 + $0x1b0] sm:$0xff]
        %v2457 = vld [vmem:[#allocation12 + $0x1b8] sm:$0xff]
        %v2458 = vld [vmem:[#allocation12 + $0x1c0] sm:$0xff]
        %v2459 = vld [vmem:[#allocation12 + $0x1c8] sm:$0xff]
        %v2460 = vld [vmem:[#allocation12 + $0x1d0] sm:$0xff]
        %v2461 = vld [vmem:[#allocation12 + $0x1d8] sm:$0xff]
        %v2462 = vld [vmem:[#allocation12 + $0x1e0] sm:$0xff]
        %v2463 = vld [vmem:[#allocation12 + $0x1e8] sm:$0xff]
        %v2464 = vld [vmem:[#allocation12 + $0x1f0] sm:$0xff]
        %v2465 = vld [vmem:[#allocation12 + $0x1f8] sm:$0xff]
        %v2466 = vld [vmem:[#allocation12 + $0x200] sm:$0xff]
        %v2467 = vld [vmem:[#allocation12 + $0x208] sm:$0xff]
        %v2468 = vld [vmem:[#allocation12 + $0x210] sm:$0xff]
        %v2469 = vld [vmem:[#allocation12 + $0x218] sm:$0xff]
        %v2470 = vld [vmem:[#allocation12 + $0x220] sm:$0xff]
        %v2471 = vld [vmem:[#allocation12 + $0x228] sm:$0xff]
        %v2472 = vld [vmem:[#allocation12 + $0x230] sm:$0xff]
        %v2473 = vld [vmem:[#allocation12 + $0x238] sm:$0xff]
        %v2474 = vld [vmem:[#allocation12 + $0x240] sm:$0xff]
        %v2475 = vld [vmem:[#allocation12 + $0x248] sm:$0xff]
        %v2476 = vld [vmem:[#allocation12 + $0x250] sm:$0xff]
        %v2477 = vld [vmem:[#allocation12 + $0x258] sm:$0xff]
        %v2478 = vld [vmem:[#allocation12 + $0x260] sm:$0xff]
        %v2479 = vld [vmem:[#allocation12 + $0x268] sm:$0xff]
        %v2480 = vpack.c.bf16 %v2302, %v2298
        %v2481 = vpack.c.bf16 %v2303, %v2299
        %v2482 = vpack.c.bf16 %v2304, %v2300
        %v2483 = vpack.c.bf16 %v2305, %v2301
        %v2484 = vpack.c.bf16 %v2310, %v2306
        %v2485 = vpack.c.bf16 %v2311, %v2307
        %v2486 = vpack.c.bf16 %v2312, %v2308
        %v2487 = vpack.c.bf16 %v2313, %v2309
        %v2488 = vpack.c.bf16 %v2318, %v2314
        %v2489 = vpack.c.bf16 %v2319, %v2315
        %v2490 = vpack.c.bf16 %v2320, %v2316
        %v2491 = vpack.c.bf16 %v2321, %v2317
        %v2492 = vpack.c.bf16 %v2326, %v2322
        %v2493 = vpack.c.bf16 %v2327, %v2323
        %v2494 = vpack.c.bf16 %v2328, %v2324
        %v2495 = vpack.c.bf16 %v2329, %v2325
        %v2496 = vpack.c.bf16 %v2334, %v2330
        %v2497 = vpack.c.bf16 %v2335, %v2331
        %v2498 = vpack.c.bf16 %v2336, %v2332
        %v2499 = vpack.c.bf16 %v2337, %v2333
        %v2500 = vpack.c.bf16 %v2342, %v2338
        %v2501 = vpack.c.bf16 %v2343, %v2339
        %v2502 = vpack.c.bf16 %v2344, %v2340
        %v2503 = vpack.c.bf16 %v2345, %v2341
        %v2504 = vpack.c.bf16 %v2350, %v2346
        %v2505 = vpack.c.bf16 %v2351, %v2347
        %v2506 = vpack.c.bf16 %v2352, %v2348
        %v2507 = vpack.c.bf16 %v2353, %v2349
        %v2508 = vpack.c.bf16 %v2358, %v2354
        %v2509 = vpack.c.bf16 %v2359, %v2355
        %v2510 = vpack.c.bf16 %v2360, %v2356
        %v2511 = vpack.c.bf16 %v2361, %v2357
        %v2512 = vpack.c.bf16 %v2366, %v2362
        %v2513 = vpack.c.bf16 %v2367, %v2363
        %v2514 = vpack.c.bf16 %v2368, %v2364
        %v2515 = vpack.c.bf16 %v2369, %v2365
        %v2516 = vpack.c.bf16 %v2374, %v2370
        %v2517 = vpack.c.bf16 %v2375, %v2371
        %v2518 = vpack.c.bf16 %v2376, %v2372
        %v2519 = vpack.c.bf16 %v2377, %v2373
        %v2520 = vpack.c.bf16 %v2382, %v2378
        %v2521 = vpack.c.bf16 %v2383, %v2379
        %v2522 = vpack.c.bf16 %v2384, %v2380
        %v2523 = vpack.c.bf16 %v2385, %v2381
        %v2524 = vpack.c.bf16 %v2390, %v2386
        %v2525 = vpack.c.bf16 %v2391, %v2387
        %v2526 = vpack.c.bf16 %v2392, %v2388
        %v2527 = vpack.c.bf16 %v2393, %v2389
        %v2528 = vpack.c.bf16 %v2398, %v2394
        %v2529 = vpack.c.bf16 %v2399, %v2395
        %v2530 = vpack.c.bf16 %v2400, %v2396
        %v2531 = vpack.c.bf16 %v2401, %v2397
        %v2532 = vld [vmem:[%s298] sm:$0xff]
        %v2533 = vld [vmem:[%s298 + $0x8] sm:$0xf]
        %v2534 = vld [vmem:[%s298 + $0xc] sm:$0xff]
        %v2535 = vld [vmem:[%s298 + $0x14] sm:$0xf]
        %v2536 = vld [vmem:[%s298 + $0x18] sm:$0xff]
        %v2537 = vld [vmem:[%s298 + $0x20] sm:$0xf]
        %v2538 = vld [vmem:[%s298 + $0x24] sm:$0xff]
        %v2539 = vld [vmem:[%s298 + $0x2c] sm:$0xf]
        %v2540 = vld [vmem:[%s298 + $0x30] sm:$0xff]
        %v2541 = vld [vmem:[%s298 + $0x38] sm:$0xf]
        %v2542 = vld [vmem:[%s298 + $0x3c] sm:$0xff]
        %v2543 = vld [vmem:[%s298 + $0x44] sm:$0xf]
        %v2544 = vld [vmem:[%s298 + $0x48] sm:$0xff]
        %v2545 = vld [vmem:[%s298 + $0x50] sm:$0xf]
        %v2546 = vld [vmem:[%s298 + $0x54] sm:$0xff]
        %v2547 = vld [vmem:[%s298 + $0x5c] sm:$0xf]
        %v2548 = vld [vmem:[%s298 + $0x60] sm:$0xff]
        %v2549 = vld [vmem:[%s298 + $0x68] sm:$0xf]
        %v2550 = vld [vmem:[%s298 + $0x6c] sm:$0xff]
        %v2551 = vld [vmem:[%s298 + $0x74] sm:$0xf]
        %v2552 = vld [vmem:[%s298 + $0x78] sm:$0xff]
        %v2553 = vld [vmem:[%s298 + $0x80] sm:$0xf]
        %v2554 = vld [vmem:[%s298 + $0x84] sm:$0xff]
        %v2555 = vld [vmem:[%s298 + $0x8c] sm:$0xf]
        %v2556 = vld [vmem:[%s298 + $0x90] sm:$0xff]
        %v2557 = vld [vmem:[%s298 + $0x98] sm:$0xf]
        %v2558 = vld [vmem:[%s298 + $0x9c] sm:$0xff]
        %v2559 = vld [vmem:[%s298 + $0xa4] sm:$0xf]
        %v2560 = vld [vmem:[%s298 + $0xa8] sm:$0xff]
        %v2561 = vld [vmem:[%s298 + $0xb0] sm:$0xf]
        %v2562 = vld [vmem:[%s298 + $0xb4] sm:$0xff]
        %v2563 = vld [vmem:[%s298 + $0xbc] sm:$0xf]
        %v2564 = vld [vmem:[%s298 + $0xc0] sm:$0xff]
        %v2565 = vld [vmem:[%s298 + $0xc8] sm:$0xf]
        %v2566 = vld [vmem:[%s298 + $0xcc] sm:$0xff]
        %v2567 = vld [vmem:[%s298 + $0xd4] sm:$0xf]
        %v2568 = vld [vmem:[%s298 + $0xd8] sm:$0xff]
        %v2569 = vld [vmem:[%s298 + $0xe0] sm:$0xf]
        %v2570 = vld [vmem:[%s298 + $0xe4] sm:$0xff]
        %v2571 = vld [vmem:[%s298 + $0xec] sm:$0xf]
        %v2572 = vld [vmem:[%s298 + $0xf0] sm:$0xff]
        %v2573 = vld [vmem:[%s298 + $0xf8] sm:$0xf]
        %v2574 = vld [vmem:[%s298 + $0xfc] sm:$0xff]
        %v2575 = vld [vmem:[%s298 + $0x104] sm:$0xf]
        %v2576 = vld [vmem:[%s298 + $0x108] sm:$0xff]
        %v2577 = vld [vmem:[%s298 + $0x110] sm:$0xf]
        %v2578 = vld [vmem:[%s298 + $0x114] sm:$0xff]
        %v2579 = vld [vmem:[%s298 + $0x11c] sm:$0xf]
        %v2580 = vld [vmem:[%s298 + $0x120] sm:$0xff]
        %v2581 = vld [vmem:[%s298 + $0x128] sm:$0xf]
        %v2582 = vld [vmem:[%s298 + $0x12c] sm:$0xff]
        %v2583 = vld [vmem:[%s298 + $0x134] sm:$0xf]
        %v2584 = vld [vmem:[%s298 + $0x138] sm:$0xff]
        %v2585 = vld [vmem:[%s298 + $0x140] sm:$0xf]
        %v2586 = vld [vmem:[%s298 + $0x144] sm:$0xff]
        %v2587 = vld [vmem:[%s298 + $0x14c] sm:$0xf]
        %v2588 = vld [vmem:[%s298 + $0x150] sm:$0xff]
        %v2589 = vld [vmem:[%s298 + $0x158] sm:$0xf]
        %v2590 = vld [vmem:[%s298 + $0x15c] sm:$0xff]
        %v2591 = vld [vmem:[%s298 + $0x164] sm:$0xf]
        %v2592 = vld [vmem:[%s298 + $0x168] sm:$0xff]
        %v2593 = vld [vmem:[%s298 + $0x170] sm:$0xf]
        %v2594 = vld [vmem:[%s298 + $0x174] sm:$0xff]
        %v2595 = vld [vmem:[%s298 + $0x17c] sm:$0xf]
        %v2596 = vld [vmem:[%s298 + $0x180] sm:$0xff]
        %v2597 = vld [vmem:[%s298 + $0x188] sm:$0xf]
        %v2598 = vld [vmem:[%s298 + $0x18c] sm:$0xff]
        %v2599 = vld [vmem:[%s298 + $0x194] sm:$0xf]
        %v2600 = vld [vmem:[%s298 + $0x198] sm:$0xff]
        %v2601 = vld [vmem:[%s298 + $0x1a0] sm:$0xf]
        %v2602 = vld [vmem:[%s298 + $0x1a4] sm:$0xff]
        %v2603 = vld [vmem:[%s298 + $0x1ac] sm:$0xf]
        %v2604 = vld [vmem:[%s298 + $0x1b0] sm:$0xff]
        %v2605 = vld [vmem:[%s298 + $0x1b8] sm:$0xf]
        %v2606 = vld [vmem:[%s298 + $0x1bc] sm:$0xff]
        %v2607 = vld [vmem:[%s298 + $0x1c4] sm:$0xf]
        %v2608 = vld [vmem:[%s298 + $0x1c8] sm:$0xff]
        %v2609 = vld [vmem:[%s298 + $0x1d0] sm:$0xf]
        %v2610 = vld [vmem:[%s298 + $0x1d4] sm:$0xff]
        %v2611 = vld [vmem:[%s298 + $0x1dc] sm:$0xf]
        %v2612 = vld [vmem:[%s298 + $0x1e0] sm:$0xff]
        %v2613 = vld [vmem:[%s298 + $0x1e8] sm:$0xf]
        %v2614 = vld [vmem:[%s298 + $0x1ec] sm:$0xff]
        %v2615 = vld [vmem:[%s298 + $0x1f4] sm:$0xf]
        %v2616 = vld [vmem:[%s298 + $0x1f8] sm:$0xff]
        %v2617 = vld [vmem:[%s298 + $0x200] sm:$0xf]
        %v2618 = vld [vmem:[%s298 + $0x204] sm:$0xff]
        %v2619 = vld [vmem:[%s298 + $0x20c] sm:$0xf]
        %v2620 = vld [vmem:[%s298 + $0x210] sm:$0xff]
        %v2621 = vld [vmem:[%s298 + $0x218] sm:$0xf]
        %v2622 = vld [vmem:[%s298 + $0x21c] sm:$0xff]
        %v2623 = vld [vmem:[%s298 + $0x224] sm:$0xf]
        %v2624 = vld [vmem:[%s298 + $0x228] sm:$0xff]
        %v2625 = vld [vmem:[%s298 + $0x230] sm:$0xf]
        %v2626 = vld [vmem:[%s298 + $0x234] sm:$0xff]
        %v2627 = vld [vmem:[%s298 + $0x23c] sm:$0xf]
        %v2628 = vld [vmem:[%s298 + $0x240] sm:$0xff]
        %v2629 = vld [vmem:[%s298 + $0x248] sm:$0xf]
        %v2630 = vld [vmem:[%s298 + $0x24c] sm:$0xff]
        %v2631 = vld [vmem:[%s298 + $0x254] sm:$0xf]
        %v2632 = vld [vmem:[%s298 + $0x258] sm:$0xff]
        %v2633 = vld [vmem:[%s298 + $0x260] sm:$0xf]
        %v2634 = vld [vmem:[%s298 + $0x264] sm:$0xff]
        %v2635 = vld [vmem:[%s298 + $0x26c] sm:$0xf]
        %v2636 = vld [vmem:[%s298 + $0x270] sm:$0xff]
        %v2637 = vld [vmem:[%s298 + $0x278] sm:$0xf]
        %v2638 = vld [vmem:[%s298 + $0x27c] sm:$0xff]
        %v2639 = vld [vmem:[%s298 + $0x284] sm:$0xf]
        %v2640 = vld [vmem:[%s298 + $0x288] sm:$0xff]
        %v2641 = vld [vmem:[%s298 + $0x290] sm:$0xf]
        %v2642 = vld [vmem:[%s298 + $0x294] sm:$0xff]
        %v2643 = vld [vmem:[%s298 + $0x29c] sm:$0xf]
        %v2644 = vld [vmem:[%s298 + $0x2a0] sm:$0xff]
        %v2645 = vld [vmem:[%s298 + $0x2a8] sm:$0xf]
        %v2646 = vld [vmem:[%s298 + $0x2ac] sm:$0xff]
        %v2647 = vld [vmem:[%s298 + $0x2b4] sm:$0xf]
        %v2648 = vld [vmem:[%s298 + $0x2b8] sm:$0xff]
        %v2649 = vld [vmem:[%s298 + $0x2c0] sm:$0xf]
        %v2650 = vld [vmem:[%s298 + $0x2c4] sm:$0xff]
        %v2651 = vld [vmem:[%s298 + $0x2cc] sm:$0xf]
        %v2652 = vld [vmem:[%s298 + $0x2d0] sm:$0xff]
        %v2653 = vld [vmem:[%s298 + $0x2d8] sm:$0xf]
        %v2654 = vld [vmem:[%s298 + $0x2dc] sm:$0xff]
        %v2655 = vld [vmem:[%s298 + $0x2e4] sm:$0xf]
        %v2656 = vld [vmem:[%s298 + $0x2e8] sm:$0xff]
        %v2657 = vld [vmem:[%s298 + $0x2f0] sm:$0xf]
        %v2658 = vld [vmem:[%s298 + $0x2f4] sm:$0xff]
        %v2659 = vld [vmem:[%s298 + $0x2fc] sm:$0xf]
        %v2788 = vunpack.c.l.b16 %v2532
        %v2789 = vunpack.c.h.b16 %v2532
        %v2790 = vunpack.c.l.b16 %v2533
        %v2791 = vunpack.c.l.b16 %v2534
        %v2792 = vunpack.c.h.b16 %v2534
        %v2793 = vunpack.c.l.b16 %v2535
        %v2794 = vunpack.c.l.b16 %v2536
        %v2795 = vunpack.c.h.b16 %v2536
        %v2796 = vunpack.c.l.b16 %v2537
        %v2797 = vunpack.c.l.b16 %v2538
        %v2798 = vunpack.c.h.b16 %v2538
        %v2799 = vunpack.c.l.b16 %v2539
        %v2800 = vunpack.c.l.b16 %v2540
        %v2801 = vunpack.c.h.b16 %v2540
        %v2802 = vunpack.c.l.b16 %v2541
        %v2803 = vunpack.c.l.b16 %v2542
        %v2804 = vunpack.c.h.b16 %v2542
        %v2805 = vunpack.c.l.b16 %v2543
        %v2806 = vunpack.c.l.b16 %v2544
        %v2807 = vunpack.c.h.b16 %v2544
        %v2808 = vunpack.c.l.b16 %v2545
        %v2809 = vunpack.c.l.b16 %v2546
        %v2810 = vunpack.c.h.b16 %v2546
        %v2811 = vunpack.c.l.b16 %v2547
        %v2812 = vunpack.c.l.b16 %v2548
        %v2813 = vunpack.c.h.b16 %v2548
        %v2814 = vunpack.c.l.b16 %v2549
        %v2815 = vunpack.c.l.b16 %v2550
        %v2816 = vunpack.c.h.b16 %v2550
        %v2817 = vunpack.c.l.b16 %v2551
        %v2818 = vunpack.c.l.b16 %v2552
        %v2819 = vunpack.c.h.b16 %v2552
        %v2820 = vunpack.c.l.b16 %v2553
        %v2821 = vunpack.c.l.b16 %v2554
        %v2822 = vunpack.c.h.b16 %v2554
        %v2823 = vunpack.c.l.b16 %v2555
        %v2824 = vunpack.c.l.b16 %v2556
        %v2825 = vunpack.c.h.b16 %v2556
        %v2826 = vunpack.c.l.b16 %v2557
        %v2827 = vunpack.c.l.b16 %v2558
        %v2828 = vunpack.c.h.b16 %v2558
        %v2829 = vunpack.c.l.b16 %v2559
        %v2830 = vunpack.c.l.b16 %v2560
        %v2831 = vunpack.c.h.b16 %v2560
        %v2832 = vunpack.c.l.b16 %v2561
        %v2833 = vunpack.c.l.b16 %v2562
        %v2834 = vunpack.c.h.b16 %v2562
        %v2835 = vunpack.c.l.b16 %v2563
        %v2836 = vunpack.c.l.b16 %v2564
        %v2837 = vunpack.c.h.b16 %v2564
        %v2838 = vunpack.c.l.b16 %v2565
        %v2839 = vunpack.c.l.b16 %v2566
        %v2840 = vunpack.c.h.b16 %v2566
        %v2841 = vunpack.c.l.b16 %v2567
        %v2842 = vunpack.c.l.b16 %v2568
        %v2843 = vunpack.c.h.b16 %v2568
        %v2844 = vunpack.c.l.b16 %v2569
        %v2845 = vunpack.c.l.b16 %v2570
        %v2846 = vunpack.c.h.b16 %v2570
        %v2847 = vunpack.c.l.b16 %v2571
        %v2848 = vunpack.c.l.b16 %v2572
        %v2849 = vunpack.c.h.b16 %v2572
        %v2850 = vunpack.c.l.b16 %v2573
        %v2851 = vunpack.c.l.b16 %v2574
        %v2852 = vunpack.c.h.b16 %v2574
        %v2853 = vunpack.c.l.b16 %v2575
        %v2854 = vunpack.c.l.b16 %v2576
        %v2855 = vunpack.c.h.b16 %v2576
        %v2856 = vunpack.c.l.b16 %v2577
        %v2857 = vunpack.c.l.b16 %v2578
        %v2858 = vunpack.c.h.b16 %v2578
        %v2859 = vunpack.c.l.b16 %v2579
        %v2860 = vunpack.c.l.b16 %v2580
        %v2861 = vunpack.c.h.b16 %v2580
        %v2862 = vunpack.c.l.b16 %v2581
        %v2863 = vunpack.c.l.b16 %v2582
        %v2864 = vunpack.c.h.b16 %v2582
        %v2865 = vunpack.c.l.b16 %v2583
        %v2866 = vunpack.c.l.b16 %v2584
        %v2867 = vunpack.c.h.b16 %v2584
        %v2868 = vunpack.c.l.b16 %v2585
        %v2869 = vunpack.c.l.b16 %v2586
        %v2870 = vunpack.c.h.b16 %v2586
        %v2871 = vunpack.c.l.b16 %v2587
        %v2872 = vunpack.c.l.b16 %v2588
        %v2873 = vunpack.c.h.b16 %v2588
        %v2874 = vunpack.c.l.b16 %v2589
        %v2875 = vunpack.c.l.b16 %v2590
        %v2876 = vunpack.c.h.b16 %v2590
        %v2877 = vunpack.c.l.b16 %v2591
        %v2878 = vunpack.c.l.b16 %v2592
        %v2879 = vunpack.c.h.b16 %v2592
        %v2880 = vunpack.c.l.b16 %v2593
        %v2881 = vunpack.c.l.b16 %v2594
        %v2882 = vunpack.c.h.b16 %v2594
        %v2883 = vunpack.c.l.b16 %v2595
        %v2884 = vunpack.c.l.b16 %v2596
        %v2885 = vunpack.c.h.b16 %v2596
        %v2886 = vunpack.c.l.b16 %v2597
        %v2887 = vunpack.c.l.b16 %v2598
        %v2888 = vunpack.c.h.b16 %v2598
        %v2889 = vunpack.c.l.b16 %v2599
        %v2890 = vunpack.c.l.b16 %v2600
        %v2891 = vunpack.c.h.b16 %v2600
        %v2892 = vunpack.c.l.b16 %v2601
        %v2893 = vunpack.c.l.b16 %v2602
        %v2894 = vunpack.c.h.b16 %v2602
        %v2895 = vunpack.c.l.b16 %v2603
        %v2896 = vunpack.c.l.b16 %v2604
        %v2897 = vunpack.c.h.b16 %v2604
        %v2898 = vunpack.c.l.b16 %v2605
        %v2899 = vunpack.c.l.b16 %v2606
        %v2900 = vunpack.c.h.b16 %v2606
        %v2901 = vunpack.c.l.b16 %v2607
        %v2902 = vunpack.c.l.b16 %v2608
        %v2903 = vunpack.c.h.b16 %v2608
        %v2904 = vunpack.c.l.b16 %v2609
        %v2905 = vunpack.c.l.b16 %v2610
        %v2906 = vunpack.c.h.b16 %v2610
        %v2907 = vunpack.c.l.b16 %v2611
        %v2908 = vunpack.c.l.b16 %v2612
        %v2909 = vunpack.c.h.b16 %v2612
        %v2910 = vunpack.c.l.b16 %v2613
        %v2911 = vunpack.c.l.b16 %v2614
        %v2912 = vunpack.c.h.b16 %v2614
        %v2913 = vunpack.c.l.b16 %v2615
        %v2914 = vunpack.c.l.b16 %v2616
        %v2915 = vunpack.c.h.b16 %v2616
        %v2916 = vunpack.c.l.b16 %v2617
        %v2917 = vunpack.c.l.b16 %v2618
        %v2918 = vunpack.c.h.b16 %v2618
        %v2919 = vunpack.c.l.b16 %v2619
        %v2920 = vunpack.c.l.b16 %v2620
        %v2921 = vunpack.c.h.b16 %v2620
        %v2922 = vunpack.c.l.b16 %v2621
        %v2923 = vunpack.c.l.b16 %v2622
        %v2924 = vunpack.c.h.b16 %v2622
        %v2925 = vunpack.c.l.b16 %v2623
        %v2926 = vunpack.c.l.b16 %v2624
        %v2927 = vunpack.c.h.b16 %v2624
        %v2928 = vunpack.c.l.b16 %v2625
        %v2929 = vunpack.c.l.b16 %v2626
        %v2930 = vunpack.c.h.b16 %v2626
        %v2931 = vunpack.c.l.b16 %v2627
        %v2932 = vunpack.c.l.b16 %v2628
        %v2933 = vunpack.c.h.b16 %v2628
        %v2934 = vunpack.c.l.b16 %v2629
        %v2935 = vunpack.c.l.b16 %v2630
        %v2936 = vunpack.c.h.b16 %v2630
        %v2937 = vunpack.c.l.b16 %v2631
        %v2938 = vunpack.c.l.b16 %v2632
        %v2939 = vunpack.c.h.b16 %v2632
        %v2940 = vunpack.c.l.b16 %v2633
        %v2941 = vunpack.c.l.b16 %v2634
        %v2942 = vunpack.c.h.b16 %v2634
        %v2943 = vunpack.c.l.b16 %v2635
        %v2944 = vunpack.c.l.b16 %v2636
        %v2945 = vunpack.c.h.b16 %v2636
        %v2946 = vunpack.c.l.b16 %v2637
        %v2947 = vunpack.c.l.b16 %v2638
        %v2948 = vunpack.c.h.b16 %v2638
        %v2949 = vunpack.c.l.b16 %v2639
        %v2950 = vunpack.c.l.b16 %v2640
        %v2951 = vunpack.c.h.b16 %v2640
        %v2952 = vunpack.c.l.b16 %v2641
        %v2953 = vunpack.c.l.b16 %v2642
        %v2954 = vunpack.c.h.b16 %v2642
        %v2955 = vunpack.c.l.b16 %v2643
        %v2956 = vunpack.c.l.b16 %v2644
        %v2957 = vunpack.c.h.b16 %v2644
        %v2958 = vunpack.c.l.b16 %v2645
        %v2959 = vunpack.c.l.b16 %v2646
        %v2960 = vunpack.c.h.b16 %v2646
        %v2961 = vunpack.c.l.b16 %v2647
        %v2962 = vunpack.c.l.b16 %v2648
        %v2963 = vunpack.c.h.b16 %v2648
        %v2964 = vunpack.c.l.b16 %v2649
        %v2965 = vunpack.c.l.b16 %v2650
        %v2966 = vunpack.c.h.b16 %v2650
        %v2967 = vunpack.c.l.b16 %v2651
        %v2968 = vunpack.c.l.b16 %v2652
        %v2969 = vunpack.c.h.b16 %v2652
        %v2970 = vunpack.c.l.b16 %v2653
        %v2971 = vunpack.c.l.b16 %v2654
        %v2972 = vunpack.c.h.b16 %v2654
        %v2973 = vunpack.c.l.b16 %v2655
        %v2974 = vunpack.c.l.b16 %v2656
        %v2975 = vunpack.c.h.b16 %v2656
        %v2976 = vunpack.c.l.b16 %v2657
        %v2977 = vunpack.c.l.b16 %v2658
        %v2978 = vunpack.c.h.b16 %v2658
        %v2979 = vunpack.c.l.b16 %v2659
        %v2980 = vpack.c.b16 %v2791, %v2788
        %v2981 = vpack.c.b16 %v2792, %v2789
        %v2982 = vpack.c.b16 %v2793, %v2790
        %v2983 = vpack.c.b16 %v2797, %v2794
        %v2984 = vpack.c.b16 %v2798, %v2795
        %v2985 = vpack.c.b16 %v2799, %v2796
        %v2986 = vpack.c.b16 %v2803, %v2800
        %v2987 = vpack.c.b16 %v2804, %v2801
        %v2988 = vpack.c.b16 %v2805, %v2802
        %v2989 = vpack.c.b16 %v2809, %v2806
        %v2990 = vpack.c.b16 %v2810, %v2807
        %v2991 = vpack.c.b16 %v2811, %v2808
        %v2992 = vpack.c.b16 %v2815, %v2812
        %v2993 = vpack.c.b16 %v2816, %v2813
        %v2994 = vpack.c.b16 %v2817, %v2814
        %v2995 = vpack.c.b16 %v2821, %v2818
        %v2996 = vpack.c.b16 %v2822, %v2819
        %v2997 = vpack.c.b16 %v2823, %v2820
        %v2998 = vpack.c.b16 %v2827, %v2824
        %v2999 = vpack.c.b16 %v2828, %v2825
        %v3000 = vpack.c.b16 %v2829, %v2826
        %v3001 = vpack.c.b16 %v2833, %v2830
        %v3002 = vpack.c.b16 %v2834, %v2831
        %v3003 = vpack.c.b16 %v2835, %v2832
        %v3004 = vpack.c.b16 %v2839, %v2836
        %v3005 = vpack.c.b16 %v2840, %v2837
        %v3006 = vpack.c.b16 %v2841, %v2838
        %v3007 = vpack.c.b16 %v2845, %v2842
        %v3008 = vpack.c.b16 %v2846, %v2843
        %v3009 = vpack.c.b16 %v2847, %v2844
        %v3010 = vpack.c.b16 %v2851, %v2848
        %v3011 = vpack.c.b16 %v2852, %v2849
        %v3012 = vpack.c.b16 %v2853, %v2850
        %v3013 = vpack.c.b16 %v2857, %v2854
        %v3014 = vpack.c.b16 %v2858, %v2855
        %v3015 = vpack.c.b16 %v2859, %v2856
        %v3016 = vpack.c.b16 %v2863, %v2860
        %v3017 = vpack.c.b16 %v2864, %v2861
        %v3018 = vpack.c.b16 %v2865, %v2862
        %v3019 = vpack.c.b16 %v2869, %v2866
        %v3020 = vpack.c.b16 %v2870, %v2867
        %v3021 = vpack.c.b16 %v2871, %v2868
        %v3022 = vpack.c.b16 %v2875, %v2872
        %v3023 = vpack.c.b16 %v2876, %v2873
        %v3024 = vpack.c.b16 %v2877, %v2874
        %v3025 = vpack.c.b16 %v2881, %v2878
        %v3026 = vpack.c.b16 %v2882, %v2879
        %v3027 = vpack.c.b16 %v2883, %v2880
        %v3028 = vpack.c.b16 %v2887, %v2884
        %v3029 = vpack.c.b16 %v2888, %v2885
        %v3030 = vpack.c.b16 %v2889, %v2886
        %v3031 = vpack.c.b16 %v2893, %v2890
        %v3032 = vpack.c.b16 %v2894, %v2891
        %v3033 = vpack.c.b16 %v2895, %v2892
        %v3034 = vpack.c.b16 %v2899, %v2896
        %v3035 = vpack.c.b16 %v2900, %v2897
        %v3036 = vpack.c.b16 %v2901, %v2898
        %v3037 = vpack.c.b16 %v2905, %v2902
        %v3038 = vpack.c.b16 %v2906, %v2903
        %v3039 = vpack.c.b16 %v2907, %v2904
        %v3040 = vpack.c.b16 %v2911, %v2908
        %v3041 = vpack.c.b16 %v2912, %v2909
        %v3042 = vpack.c.b16 %v2913, %v2910
        %v3043 = vpack.c.b16 %v2917, %v2914
        %v3044 = vpack.c.b16 %v2918, %v2915
        %v3045 = vpack.c.b16 %v2919, %v2916
        %v3046 = vpack.c.b16 %v2923, %v2920
        %v3047 = vpack.c.b16 %v2924, %v2921
        %v3048 = vpack.c.b16 %v2925, %v2922
        %v3049 = vpack.c.b16 %v2929, %v2926
        %v3050 = vpack.c.b16 %v2930, %v2927
        %v3051 = vpack.c.b16 %v2931, %v2928
        %v3052 = vpack.c.b16 %v2935, %v2932
        %v3053 = vpack.c.b16 %v2936, %v2933
        %v3054 = vpack.c.b16 %v2937, %v2934
        %v3055 = vpack.c.b16 %v2941, %v2938
        %v3056 = vpack.c.b16 %v2942, %v2939
        %v3057 = vpack.c.b16 %v2943, %v2940
        %v3058 = vpack.c.b16 %v2947, %v2944
        %v3059 = vpack.c.b16 %v2948, %v2945
        %v3060 = vpack.c.b16 %v2949, %v2946
        %v3061 = vpack.c.b16 %v2953, %v2950
        %v3062 = vpack.c.b16 %v2954, %v2951
        %v3063 = vpack.c.b16 %v2955, %v2952
        %v3064 = vpack.c.b16 %v2959, %v2956
        %v3065 = vpack.c.b16 %v2960, %v2957
        %v3066 = vpack.c.b16 %v2961, %v2958
        %v3067 = vpack.c.b16 %v2965, %v2962
        %v3068 = vpack.c.b16 %v2966, %v2963
        %v3069 = vpack.c.b16 %v2967, %v2964
        %v3070 = vpack.c.b16 %v2971, %v2968
        %v3071 = vpack.c.b16 %v2972, %v2969
        %v3072 = vpack.c.b16 %v2973, %v2970
        %v3073 = vpack.c.b16 %v2977, %v2974
        %v3074 = vpack.c.b16 %v2978, %v2975
        %v3075 = vpack.c.b16 %v2979, %v2976
        %3172 = vmatprep.subr.bf16.mxu0 %v2981
        %3173 = vmatpush1.bf16.msra.mxu0 %v2980
        %3174 = vmatprep.subr.bf16.mxu0 %v2984
        %3175 = vmatpush1.bf16.msra.mxu0 %v2983
        %3176 = vmatprep.subr.bf16.mxu0 %v2987
        %3177 = vmatpush1.bf16.msra.mxu0 %v2986
        %3178 = vmatprep.subr.bf16.mxu0 %v2990
        %3179 = vmatpush1.bf16.msra.mxu0 %v2989
        %3180 = vmatprep.subr.bf16.mxu0 %v2993
        %3181 = vmatpush1.bf16.msra.mxu0 %v2992
        %3182 = vmatprep.subr.bf16.mxu0 %v2996
        %3183 = vmatpush1.bf16.msra.mxu0 %v2995
        %3184 = vmatprep.subr.bf16.mxu0 %v2999
        %3185 = vmatpush1.bf16.msra.mxu0 %v2998
        %3186 = vmatprep.subr.bf16.mxu0 %v3002
        %3187 = vmatpush1.bf16.msra.mxu0 %v3001
        %3188 = vmatprep.subr.bf16.mxu0 %v3005
        %3189 = vmatpush1.bf16.msra.mxu0 %v3004
        %3190 = vmatprep.subr.bf16.mxu0 %v3008
        %3191 = vmatpush1.bf16.msra.mxu0 %v3007
        %3192 = vmatprep.subr.bf16.mxu0 %v3011
        %3193 = vmatpush1.bf16.msra.mxu0 %v3010
        %3194 = vmatprep.subr.bf16.mxu0 %v3014
        %3195 = vmatpush1.bf16.msra.mxu0 %v3013
        %3196 = vmatprep.subr.bf16.mxu0 %v3017
        %3197 = vmatpush1.bf16.msra.mxu0 %v3016
        %3198 = vmatprep.subr.bf16.mxu0 %v3020
        %3199 = vmatpush1.bf16.msra.mxu0 %v3019
        %3200 = vmatprep.subr.bf16.mxu0 %v3023
        %3201 = vmatpush1.bf16.msra.mxu0 %v3022
        %3202 = vmatprep.subr.bf16.mxu0 %v3026
        %3203 = vmatpush1.bf16.msra.mxu0 %v3025
        %3204 = vmatprep.mubr.bf16.mxu0 %v2481
        %3205 = vmatmul.mubr.bf16.gmra.mrb[0].mxu0 %v2480
        %v3206 = vpop.f32.mrb[0].mxu0
        %v3207 = vadd.f32 0.0, %v3206
        %v3208 = vpop.f32.mrb[0].mxu0
        %v3209 = vadd.f32 0.0, %v3208
        %v3210 = vpop.f32.mrb[0].mxu0
        %v3211 = vadd.f32 0.0, %v3210
        %v3212 = vpop.f32.mrb[0].mxu0
        %v3213 = vadd.f32 0.0, %v3212
        %3214 = vmatprep.mubr.bf16.mxu0 %v2485
        %3215 = vmatmul.mubr.bf16.gmra.mrb[0].mxu0 %v2484
        %v3216 = vpop.f32.mrb[0].mxu0
        %v3217 = vadd.f32 0.0, %v3216
        %v3218 = vpop.f32.mrb[0].mxu0
        %v3219 = vadd.f32 0.0, %v3218
        %v3220 = vpop.f32.mrb[0].mxu0
        %v3221 = vadd.f32 0.0, %v3220
        %v3222 = vpop.f32.mrb[0].mxu0
        %v3223 = vadd.f32 0.0, %v3222
        %3224 = vmatprep.mubr.bf16.mxu0 %v2489
        %3225 = vmatmul.mubr.bf16.gmra.mrb[0].mxu0 %v2488
        %v3226 = vpop.f32.mrb[0].mxu0
        %v3227 = vadd.f32 0.0, %v3226
        %v3228 = vpop.f32.mrb[0].mxu0
        %v3229 = vadd.f32 0.0, %v3228
        %v3230 = vpop.f32.mrb[0].mxu0
        %v3231 = vadd.f32 0.0, %v3230
        %v3232 = vpop.f32.mrb[0].mxu0
        %v3233 = vadd.f32 0.0, %v3232
        %3234 = vmatprep.mubr.bf16.mxu0 %v2493
        %3235 = vmatmul.mubr.bf16.gmra.mrb[0].mxu0 %v2492
        %v3236 = vpop.f32.mrb[0].mxu0
        %v3237 = vadd.f32 0.0, %v3236
        %v3238 = vpop.f32.mrb[0].mxu0
        %v3239 = vadd.f32 0.0, %v3238
        %v3240 = vpop.f32.mrb[0].mxu0
        %v3241 = vadd.f32 0.0, %v3240
        %v3242 = vpop.f32.mrb[0].mxu0
        %v3243 = vadd.f32 0.0, %v3242
        %3244 = vmatprep.mubr.bf16.mxu0 %v2497
        %3245 = vmatmul.mubr.bf16.gmra.mrb[0].mxu0 %v2496
        %v3246 = vpop.f32.mrb[0].mxu0
        %v3247 = vadd.f32 0.0, %v3246
        %v3248 = vpop.f32.mrb[0].mxu0
        %v3249 = vadd.f32 0.0, %v3248
        %v3250 = vpop.f32.mrb[0].mxu0
        %v3251 = vadd.f32 0.0, %v3250
        %v3252 = vpop.f32.mrb[0].mxu0
        %v3253 = vadd.f32 0.0, %v3252
        %3254 = vmatprep.mubr.bf16.mxu0 %v2501
        %3255 = vmatmul.mubr.bf16.gmra.mrb[0].mxu0 %v2500
        %v3256 = vpop.f32.mrb[0].mxu0
        %v3257 = vadd.f32 0.0, %v3256
        %v3258 = vpop.f32.mrb[0].mxu0
        %v3259 = vadd.f32 0.0, %v3258
        %v3260 = vpop.f32.mrb[0].mxu0
        %v3261 = vadd.f32 0.0, %v3260
        %v3262 = vpop.f32.mrb[0].mxu0
        %v3263 = vadd.f32 0.0, %v3262
        %3264 = vmatprep.mubr.bf16.mxu0 %v2505
        %3265 = vmatmul.mubr.bf16.gmra.mrb[0].mxu0 %v2504
        %v3266 = vpop.f32.mrb[0].mxu0
        %v3267 = vadd.f32 0.0, %v3266
        %v3268 = vpop.f32.mrb[0].mxu0
        %v3269 = vadd.f32 0.0, %v3268
        %v3270 = vpop.f32.mrb[0].mxu0
        %v3271 = vadd.f32 0.0, %v3270
        %v3272 = vpop.f32.mrb[0].mxu0
        %v3273 = vadd.f32 0.0, %v3272
        %3274 = vmatprep.mubr.bf16.mxu0 %v2509
        %3275 = vmatmul.mubr.bf16.gmra.mrb[0].mxu0 %v2508
        %v3276 = vpop.f32.mrb[0].mxu0
        %v3277 = vadd.f32 0.0, %v3276
        %v3278 = vpop.f32.mrb[0].mxu0
        %v3279 = vadd.f32 0.0, %v3278
        %v3280 = vpop.f32.mrb[0].mxu0
        %v3281 = vadd.f32 0.0, %v3280
        %v3282 = vpop.f32.mrb[0].mxu0
        %v3283 = vadd.f32 0.0, %v3282
        %3284 = vmatprep.mubr.bf16.mxu0 %v2513
        %3285 = vmatmul.mubr.bf16.gmra.mrb[0].mxu0 %v2512
        %v3286 = vpop.f32.mrb[0].mxu0
        %v3287 = vadd.f32 0.0, %v3286
        %v3288 = vpop.f32.mrb[0].mxu0
        %v3289 = vadd.f32 0.0, %v3288
        %v3290 = vpop.f32.mrb[0].mxu0
        %v3291 = vadd.f32 0.0, %v3290
        %v3292 = vpop.f32.mrb[0].mxu0
        %v3293 = vadd.f32 0.0, %v3292
        %3294 = vmatprep.mubr.bf16.mxu0 %v2517
        %3295 = vmatmul.mubr.bf16.gmra.mrb[0].mxu0 %v2516
        %v3296 = vpop.f32.mrb[0].mxu0
        %v3297 = vadd.f32 0.0, %v3296
        %v3298 = vpop.f32.mrb[0].mxu0
        %v3299 = vadd.f32 0.0, %v3298
        %v3300 = vpop.f32.mrb[0].mxu0
        %v3301 = vadd.f32 0.0, %v3300
        %v3302 = vpop.f32.mrb[0].mxu0
        %v3303 = vadd.f32 0.0, %v3302
        %3304 = vmatprep.mubr.bf16.mxu0 %v2521
        %3305 = vmatmul.mubr.bf16.gmra.mrb[0].mxu0 %v2520
        %v3306 = vpop.f32.mrb[0].mxu0
        %v3307 = vadd.f32 0.0, %v3306
        %v3308 = vpop.f32.mrb[0].mxu0
        %v3309 = vadd.f32 0.0, %v3308
        %v3310 = vpop.f32.mrb[0].mxu0
        %v3311 = vadd.f32 0.0, %v3310
        %v3312 = vpop.f32.mrb[0].mxu0
        %v3313 = vadd.f32 0.0, %v3312
        %3314 = vmatprep.mubr.bf16.mxu0 %v2525
        %3315 = vmatmul.mubr.bf16.gmra.mrb[0].mxu0 %v2524
        %v3316 = vpop.f32.mrb[0].mxu0
        %v3317 = vadd.f32 0.0, %v3316
        %v3318 = vpop.f32.mrb[0].mxu0
        %v3319 = vadd.f32 0.0, %v3318
        %v3320 = vpop.f32.mrb[0].mxu0
        %v3321 = vadd.f32 0.0, %v3320
        %v3322 = vpop.f32.mrb[0].mxu0
        %v3323 = vadd.f32 0.0, %v3322
        %3324 = vmatprep.mubr.bf16.mxu0 %v2529
        %3325 = vmatmul.mubr.bf16.gmra.mrb[0].mxu0 %v2528
        %v3326 = vpop.f32.mrb[0].mxu0
        %v3327 = vadd.f32 0.0, %v3326
        %v3328 = vpop.f32.mrb[0].mxu0
        %v3329 = vadd.f32 0.0, %v3328
        %v3330 = vpop.f32.mrb[0].mxu0
        %v3331 = vadd.f32 0.0, %v3330
        %v3332 = vpop.f32.mrb[0].mxu0
        %v3333 = vadd.f32 0.0, %v3332
        %3334 = vdwg.mxu0
        %3335 = vmatprep.subr.bf16.mxu0 %v3029
        %3336 = vmatpush1.bf16.msra.mxu0 %v3028
        %3337 = vmatprep.subr.bf16.mxu0 %v3032
        %3338 = vmatpush1.bf16.msra.mxu0 %v3031
        %3339 = vmatprep.subr.bf16.mxu0 %v3035
        %3340 = vmatpush1.bf16.msra.mxu0 %v3034
        %3341 = vmatprep.subr.bf16.mxu0 %v3038
        %3342 = vmatpush1.bf16.msra.mxu0 %v3037
        %3343 = vmatprep.subr.bf16.mxu0 %v3041
        %3344 = vmatpush1.bf16.msra.mxu0 %v3040
        %3345 = vmatprep.subr.bf16.mxu0 %v3044
        %3346 = vmatpush1.bf16.msra.mxu0 %v3043
        %3347 = vmatprep.subr.bf16.mxu0 %v3047
        %3348 = vmatpush1.bf16.msra.mxu0 %v3046
        %3349 = vmatprep.subr.bf16.mxu0 %v3050
        %3350 = vmatpush1.bf16.msra.mxu0 %v3049
        %3351 = vmatprep.subr.bf16.mxu0 %v3053
        %3352 = vmatpush1.bf16.msra.mxu0 %v3052
        %3353 = vmatprep.subr.bf16.mxu0 %v3056
        %3354 = vmatpush1.bf16.msra.mxu0 %v3055
        %3355 = vmatprep.subr.bf16.mxu0 %v3059
        %3356 = vmatpush1.bf16.msra.mxu0 %v3058
        %3357 = vmatprep.subr.bf16.mxu0 %v3062
        %3358 = vmatpush1.bf16.msra.mxu0 %v3061
        %3359 = vmatprep.subr.bf16.mxu0 %v3065
        %3360 = vmatpush1.bf16.msra.mxu0 %v3064
        %3361 = vmatprep.subr.bf16.mxu0 %v3068
        %3362 = vmatpush1.bf16.msra.mxu0 %v3067
        %3363 = vmatprep.subr.bf16.mxu0 %v3071
        %3364 = vmatpush1.bf16.msra.mxu0 %v3070
        %3365 = vmatprep.subr.bf16.mxu0 %v3074
        %3366 = vmatpush1.bf16.msra.mxu0 %v3073
        %3367 = vmatprep.mubr.bf16.mxu0 %v2483
        %3368 = vmatmul.mubr.bf16.gmra.mrb[0].mxu0 %v2482
        %v3369 = vpop.f32.mrb[0].mxu0
        %v3370 = vadd.f32 %v3207, %v3369
        %v3371 = vpop.f32.mrb[0].mxu0
        %v3372 = vadd.f32 %v3209, %v3371
        %v3373 = vpop.f32.mrb[0].mxu0
        %v3374 = vadd.f32 %v3211, %v3373
        %v3375 = vpop.f32.mrb[0].mxu0
        %v3376 = vadd.f32 %v3213, %v3375
        %3377 = vmatprep.mubr.bf16.mxu0 %v2487
        %3378 = vmatmul.mubr.bf16.gmra.mrb[0].mxu0 %v2486
        %v3379 = vpop.f32.mrb[0].mxu0
        %v3380 = vadd.f32 %v3217, %v3379
        %v3381 = vpop.f32.mrb[0].mxu0
        %v3382 = vadd.f32 %v3219, %v3381
        %v3383 = vpop.f32.mrb[0].mxu0
        %v3384 = vadd.f32 %v3221, %v3383
        %v3385 = vpop.f32.mrb[0].mxu0
        %v3386 = vadd.f32 %v3223, %v3385
        %3387 = vmatprep.mubr.bf16.mxu0 %v2491
        %3388 = vmatmul.mubr.bf16.gmra.mrb[0].mxu0 %v2490
        %v3389 = vpop.f32.mrb[0].mxu0
        %v3390 = vadd.f32 %v3227, %v3389
        %v3391 = vpop.f32.mrb[0].mxu0
        %v3392 = vadd.f32 %v3229, %v3391
        %v3393 = vpop.f32.mrb[0].mxu0
        %v3394 = vadd.f32 %v3231, %v3393
        %v3395 = vpop.f32.mrb[0].mxu0
        %v3396 = vadd.f32 %v3233, %v3395
        %3397 = vmatprep.mubr.bf16.mxu0 %v2495
        %3398 = vmatmul.mubr.bf16.gmra.mrb[0].mxu0 %v2494
        %v3399 = vpop.f32.mrb[0].mxu0
        %v3400 = vadd.f32 %v3237, %v3399
        %v3401 = vpop.f32.mrb[0].mxu0
        %v3402 = vadd.f32 %v3239, %v3401
        %v3403 = vpop.f32.mrb[0].mxu0
        %v3404 = vadd.f32 %v3241, %v3403
        %v3405 = vpop.f32.mrb[0].mxu0
        %v3406 = vadd.f32 %v3243, %v3405
        %3407 = vmatprep.mubr.bf16.mxu0 %v2499
        %3408 = vmatmul.mubr.bf16.gmra.mrb[0].mxu0 %v2498
        %v3409 = vpop.f32.mrb[0].mxu0
        %v3410 = vadd.f32 %v3247, %v3409
        %v3411 = vpop.f32.mrb[0].mxu0
        %v3412 = vadd.f32 %v3249, %v3411
        %v3413 = vpop.f32.mrb[0].mxu0
        %v3414 = vadd.f32 %v3251, %v3413
        %v3415 = vpop.f32.mrb[0].mxu0
        %v3416 = vadd.f32 %v3253, %v3415
        %3417 = vmatprep.mubr.bf16.mxu0 %v2503
        %3418 = vmatmul.mubr.bf16.gmra.mrb[0].mxu0 %v2502
        %v3419 = vpop.f32.mrb[0].mxu0
        %v3420 = vadd.f32 %v3257, %v3419
        %v3421 = vpop.f32.mrb[0].mxu0
        %v3422 = vadd.f32 %v3259, %v3421
        %v3423 = vpop.f32.mrb[0].mxu0
        %v3424 = vadd.f32 %v3261, %v3423
        %v3425 = vpop.f32.mrb[0].mxu0
        %v3426 = vadd.f32 %v3263, %v3425
        %3427 = vmatprep.mubr.bf16.mxu0 %v2507
        %3428 = vmatmul.mubr.bf16.gmra.mrb[0].mxu0 %v2506
        %v3429 = vpop.f32.mrb[0].mxu0
        %v3430 = vadd.f32 %v3267, %v3429
        %v3431 = vpop.f32.mrb[0].mxu0
        %v3432 = vadd.f32 %v3269, %v3431
        %v3433 = vpop.f32.mrb[0].mxu0
        %v3434 = vadd.f32 %v3271, %v3433
        %v3435 = vpop.f32.mrb[0].mxu0
        %v3436 = vadd.f32 %v3273, %v3435
        %3437 = vmatprep.mubr.bf16.mxu0 %v2511
        %3438 = vmatmul.mubr.bf16.gmra.mrb[0].mxu0 %v2510
        %v3439 = vpop.f32.mrb[0].mxu0
        %v3440 = vadd.f32 %v3277, %v3439
        %v3441 = vpop.f32.mrb[0].mxu0
        %v3442 = vadd.f32 %v3279, %v3441
        %v3443 = vpop.f32.mrb[0].mxu0
        %v3444 = vadd.f32 %v3281, %v3443
        %v3445 = vpop.f32.mrb[0].mxu0
        %v3446 = vadd.f32 %v3283, %v3445
        %3447 = vmatprep.mubr.bf16.mxu0 %v2515
        %3448 = vmatmul.mubr.bf16.gmra.mrb[0].mxu0 %v2514
        %v3449 = vpop.f32.mrb[0].mxu0
        %v3450 = vadd.f32 %v3287, %v3449
        %v3451 = vpop.f32.mrb[0].mxu0
        %v3452 = vadd.f32 %v3289, %v3451
        %v3453 = vpop.f32.mrb[0].mxu0
        %v3454 = vadd.f32 %v3291, %v3453
        %v3455 = vpop.f32.mrb[0].mxu0
        %v3456 = vadd.f32 %v3293, %v3455
        %3457 = vmatprep.mubr.bf16.mxu0 %v2519
        %3458 = vmatmul.mubr.bf16.gmra.mrb[0].mxu0 %v2518
        %v3459 = vpop.f32.mrb[0].mxu0
        %v3460 = vadd.f32 %v3297, %v3459
        %v3461 = vpop.f32.mrb[0].mxu0
        %v3462 = vadd.f32 %v3299, %v3461
        %v3463 = vpop.f32.mrb[0].mxu0
        %v3464 = vadd.f32 %v3301, %v3463
        %v3465 = vpop.f32.mrb[0].mxu0
        %v3466 = vadd.f32 %v3303, %v3465
        %3467 = vmatprep.mubr.bf16.mxu0 %v2523
        %3468 = vmatmul.mubr.bf16.gmra.mrb[0].mxu0 %v2522
        %v3469 = vpop.f32.mrb[0].mxu0
        %v3470 = vadd.f32 %v3307, %v3469
        %v3471 = vpop.f32.mrb[0].mxu0
        %v3472 = vadd.f32 %v3309, %v3471
        %v3473 = vpop.f32.mrb[0].mxu0
        %v3474 = vadd.f32 %v3311, %v3473
        %v3475 = vpop.f32.mrb[0].mxu0
        %v3476 = vadd.f32 %v3313, %v3475
        %3477 = vmatprep.mubr.bf16.mxu0 %v2527
        %3478 = vmatmul.mubr.bf16.gmra.mrb[0].mxu0 %v2526
        %v3479 = vpop.f32.mrb[0].mxu0
        %v3480 = vadd.f32 %v3317, %v3479
        %v3481 = vpop.f32.mrb[0].mxu0
        %v3482 = vadd.f32 %v3319, %v3481
        %v3483 = vpop.f32.mrb[0].mxu0
        %v3484 = vadd.f32 %v3321, %v3483
        %v3485 = vpop.f32.mrb[0].mxu0
        %v3486 = vadd.f32 %v3323, %v3485
        %3487 = vmatprep.mubr.bf16.mxu0 %v2531
        %3488 = vmatmul.mubr.bf16.gmra.mrb[0].mxu0 %v2530
        %v3489 = vpop.f32.mrb[0].mxu0
        %v3490 = vadd.f32 %v3327, %v3489
        %v3491 = vpop.f32.mrb[0].mxu0
        %v3492 = vadd.f32 %v3329, %v3491
        %v3493 = vpop.f32.mrb[0].mxu0
        %v3494 = vadd.f32 %v3331, %v3493
        %v3495 = vpop.f32.mrb[0].mxu0
        %v3496 = vadd.f32 %v3333, %v3495
        %3497 = vdwg.mxu0
        %3498 = vmatprep.subr.bf16.mxu0 0
        %3499 = vmatpush1.bf16.msra.mxu0 %v2982
        %3500 = vmatprep.subr.bf16.mxu0 0
        %3501 = vmatpush1.bf16.msra.mxu0 %v2985
        %3502 = vmatprep.subr.bf16.mxu0 0
        %3503 = vmatpush1.bf16.msra.mxu0 %v2988
        %3504 = vmatprep.subr.bf16.mxu0 0
        %3505 = vmatpush1.bf16.msra.mxu0 %v2991
        %3506 = vmatprep.subr.bf16.mxu0 0
        %3507 = vmatpush1.bf16.msra.mxu0 %v2994
        %3508 = vmatprep.subr.bf16.mxu0 0
        %3509 = vmatpush1.bf16.msra.mxu0 %v2997
        %3510 = vmatprep.subr.bf16.mxu0 0
        %3511 = vmatpush1.bf16.msra.mxu0 %v3000
        %3512 = vmatprep.subr.bf16.mxu0 0
        %3513 = vmatpush1.bf16.msra.mxu0 %v3003
        %3514 = vmatprep.subr.bf16.mxu0 0
        %3515 = vmatpush1.bf16.msra.mxu0 %v3006
        %3516 = vmatprep.subr.bf16.mxu0 0
        %3517 = vmatpush1.bf16.msra.mxu0 %v3009
        %3518 = vmatprep.subr.bf16.mxu0 0
        %3519 = vmatpush1.bf16.msra.mxu0 %v3012
        %3520 = vmatprep.subr.bf16.mxu0 0
        %3521 = vmatpush1.bf16.msra.mxu0 %v3015
        %3522 = vmatprep.subr.bf16.mxu0 0
        %3523 = vmatpush1.bf16.msra.mxu0 %v3018
        %3524 = vmatprep.subr.bf16.mxu0 0
        %3525 = vmatpush1.bf16.msra.mxu0 %v3021
        %3526 = vmatprep.subr.bf16.mxu0 0
        %3527 = vmatpush1.bf16.msra.mxu0 %v3024
        %3528 = vmatprep.subr.bf16.mxu0 0
        %3529 = vmatpush1.bf16.msra.mxu0 %v3027
        %3530 = vmatprep.mubr.bf16.mxu0 %v2481
        %3531 = vmatmul.mubr.bf16.gmra.mrb[0].mxu0 %v2480
        %v3532 = vpop.f32.mrb[0].mxu0
        %v3533 = vadd.f32 0.0, %v3532
        %v3534 = vpop.f32.mrb[0].mxu0
        %v3535 = vpop.f32.mrb[0].mxu0
        %v3536 = vadd.f32 0.0, %v3535
        %v3537 = vpop.f32.mrb[0].mxu0
        %3538 = vmatprep.mubr.bf16.mxu0 %v2485
        %3539 = vmatmul.mubr.bf16.gmra.mrb[0].mxu0 %v2484
        %v3540 = vpop.f32.mrb[0].mxu0
        %v3541 = vadd.f32 0.0, %v3540
        %v3542 = vpop.f32.mrb[0].mxu0
        %v3543 = vpop.f32.mrb[0].mxu0
        %v3544 = vadd.f32 0.0, %v3543
        %v3545 = vpop.f32.mrb[0].mxu0
        %3546 = vmatprep.mubr.bf16.mxu0 %v2489
        %3547 = vmatmul.mubr.bf16.gmra.mrb[0].mxu0 %v2488
        %v3548 = vpop.f32.mrb[0].mxu0
        %v3549 = vadd.f32 0.0, %v3548
        %v3550 = vpop.f32.mrb[0].mxu0
        %v3551 = vpop.f32.mrb[0].mxu0
        %v3552 = vadd.f32 0.0, %v3551
        %v3553 = vpop.f32.mrb[0].mxu0
        %3554 = vmatprep.mubr.bf16.mxu0 %v2493
        %3555 = vmatmul.mubr.bf16.gmra.mrb[0].mxu0 %v2492
        %v3556 = vpop.f32.mrb[0].mxu0
        %v3557 = vadd.f32 0.0, %v3556
        %v3558 = vpop.f32.mrb[0].mxu0
        %v3559 = vpop.f32.mrb[0].mxu0
        %v3560 = vadd.f32 0.0, %v3559
        %v3561 = vpop.f32.mrb[0].mxu0
        %3562 = vmatprep.mubr.bf16.mxu0 %v2497
        %3563 = vmatmul.mubr.bf16.gmra.mrb[0].mxu0 %v2496
        %v3564 = vpop.f32.mrb[0].mxu0
        %v3565 = vadd.f32 0.0, %v3564
        %v3566 = vpop.f32.mrb[0].mxu0
        %v3567 = vpop.f32.mrb[0].mxu0
        %v3568 = vadd.f32 0.0, %v3567
        %v3569 = vpop.f32.mrb[0].mxu0
        %3570 = vmatprep.mubr.bf16.mxu0 %v2501
        %3571 = vmatmul.mubr.bf16.gmra.mrb[0].mxu0 %v2500
        %v3572 = vpop.f32.mrb[0].mxu0
        %v3573 = vadd.f32 0.0, %v3572
        %v3574 = vpop.f32.mrb[0].mxu0
        %v3575 = vpop.f32.mrb[0].mxu0
        %v3576 = vadd.f32 0.0, %v3575
        %v3577 = vpop.f32.mrb[0].mxu0
        %3578 = vmatprep.mubr.bf16.mxu0 %v2505
        %3579 = vmatmul.mubr.bf16.gmra.mrb[0].mxu0 %v2504
        %v3580 = vpop.f32.mrb[0].mxu0
        %v3581 = vadd.f32 0.0, %v3580
        %v3582 = vpop.f32.mrb[0].mxu0
        %v3583 = vpop.f32.mrb[0].mxu0
        %v3584 = vadd.f32 0.0, %v3583
        %v3585 = vpop.f32.mrb[0].mxu0
        %3586 = vmatprep.mubr.bf16.mxu0 %v2509
        %3587 = vmatmul.mubr.bf16.gmra.mrb[0].mxu0 %v2508
        %v3588 = vpop.f32.mrb[0].mxu0
        %v3589 = vadd.f32 0.0, %v3588
        %v3590 = vpop.f32.mrb[0].mxu0
        %v3591 = vpop.f32.mrb[0].mxu0
        %v3592 = vadd.f32 0.0, %v3591
        %v3593 = vpop.f32.mrb[0].mxu0
        %3594 = vmatprep.mubr.bf16.mxu0 %v2513
        %3595 = vmatmul.mubr.bf16.gmra.mrb[0].mxu0 %v2512
        %v3596 = vpop.f32.mrb[0].mxu0
        %v3597 = vadd.f32 0.0, %v3596
        %v3598 = vpop.f32.mrb[0].mxu0
        %v3599 = vpop.f32.mrb[0].mxu0
        %v3600 = vadd.f32 0.0, %v3599
        %v3601 = vpop.f32.mrb[0].mxu0
        %3602 = vmatprep.mubr.bf16.mxu0 %v2517
        %3603 = vmatmul.mubr.bf16.gmra.mrb[0].mxu0 %v2516
        %v3604 = vpop.f32.mrb[0].mxu0
        %v3605 = vadd.f32 0.0, %v3604
        %v3606 = vpop.f32.mrb[0].mxu0
        %v3607 = vpop.f32.mrb[0].mxu0
        %v3608 = vadd.f32 0.0, %v3607
        %v3609 = vpop.f32.mrb[0].mxu0
        %3610 = vmatprep.mubr.bf16.mxu0 %v2521
        %3611 = vmatmul.mubr.bf16.gmra.mrb[0].mxu0 %v2520
        %v3612 = vpop.f32.mrb[0].mxu0
        %v3613 = vadd.f32 0.0, %v3612
        %v3614 = vpop.f32.mrb[0].mxu0
        %v3615 = vpop.f32.mrb[0].mxu0
        %v3616 = vadd.f32 0.0, %v3615
        %v3617 = vpop.f32.mrb[0].mxu0
        %3618 = vmatprep.mubr.bf16.mxu0 %v2525
        %3619 = vmatmul.mubr.bf16.gmra.mrb[0].mxu0 %v2524
        %v3620 = vpop.f32.mrb[0].mxu0
        %v3621 = vadd.f32 0.0, %v3620
        %v3622 = vpop.f32.mrb[0].mxu0
        %v3623 = vpop.f32.mrb[0].mxu0
        %v3624 = vadd.f32 0.0, %v3623
        %v3625 = vpop.f32.mrb[0].mxu0
        %3626 = vmatprep.mubr.bf16.mxu0 %v2529
        %3627 = vmatmul.mubr.bf16.gmra.mrb[0].mxu0 %v2528
        %v3628 = vpop.f32.mrb[0].mxu0
        %v3629 = vadd.f32 0.0, %v3628
        %v3630 = vpop.f32.mrb[0].mxu0
        %v3631 = vpop.f32.mrb[0].mxu0
        %v3632 = vadd.f32 0.0, %v3631
        %v3633 = vpop.f32.mrb[0].mxu0
        %3634 = vdwg.mxu0
        %3635 = vmatprep.subr.bf16.mxu0 0
        %3636 = vmatpush1.bf16.msra.mxu0 %v3030
        %3637 = vmatprep.subr.bf16.mxu0 0
        %3638 = vmatpush1.bf16.msra.mxu0 %v3033
        %3639 = vmatprep.subr.bf16.mxu0 0
        %3640 = vmatpush1.bf16.msra.mxu0 %v3036
        %3641 = vmatprep.subr.bf16.mxu0 0
        %3642 = vmatpush1.bf16.msra.mxu0 %v3039
        %3643 = vmatprep.subr.bf16.mxu0 0
        %3644 = vmatpush1.bf16.msra.mxu0 %v3042
        %3645 = vmatprep.subr.bf16.mxu0 0
        %3646 = vmatpush1.bf16.msra.mxu0 %v3045
        %3647 = vmatprep.subr.bf16.mxu0 0
        %3648 = vmatpush1.bf16.msra.mxu0 %v3048
        %3649 = vmatprep.subr.bf16.mxu0 0
        %3650 = vmatpush1.bf16.msra.mxu0 %v3051
        %3651 = vmatprep.subr.bf16.mxu0 0
        %3652 = vmatpush1.bf16.msra.mxu0 %v3054
        %3653 = vmatprep.subr.bf16.mxu0 0
        %3654 = vmatpush1.bf16.msra.mxu0 %v3057
        %3655 = vmatprep.subr.bf16.mxu0 0
        %3656 = vmatpush1.bf16.msra.mxu0 %v3060
        %3657 = vmatprep.subr.bf16.mxu0 0
        %3658 = vmatpush1.bf16.msra.mxu0 %v3063
        %3659 = vmatprep.subr.bf16.mxu0 0
        %3660 = vmatpush1.bf16.msra.mxu0 %v3066
        %3661 = vmatprep.subr.bf16.mxu0 0
        %3662 = vmatpush1.bf16.msra.mxu0 %v3069
        %3663 = vmatprep.subr.bf16.mxu0 0
        %3664 = vmatpush1.bf16.msra.mxu0 %v3072
        %3665 = vmatprep.subr.bf16.mxu0 0
        %3666 = vmatpush1.bf16.msra.mxu0 %v3075
        %3667 = vmatprep.mubr.bf16.mxu0 %v2483
        %3668 = vmatmul.mubr.bf16.gmra.mrb[0].mxu0 %v2482
        %v3669 = vpop.f32.mrb[0].mxu0
        %v3670 = vadd.f32 %v3533, %v3669
        %v3671 = vpop.f32.mrb[0].mxu0
        %v3672 = vpop.f32.mrb[0].mxu0
        %v3673 = vadd.f32 %v3536, %v3672
        %v3674 = vpop.f32.mrb[0].mxu0
        %3675 = vmatprep.mubr.bf16.mxu0 %v2487
        %3676 = vmatmul.mubr.bf16.gmra.mrb[0].mxu0 %v2486
        %v3677 = vpop.f32.mrb[0].mxu0
        %v3678 = vadd.f32 %v3541, %v3677
        %v3679 = vpop.f32.mrb[0].mxu0
        %v3680 = vpop.f32.mrb[0].mxu0
        %v3681 = vadd.f32 %v3544, %v3680
        %v3682 = vpop.f32.mrb[0].mxu0
        %3683 = vmatprep.mubr.bf16.mxu0 %v2491
        %3684 = vmatmul.mubr.bf16.gmra.mrb[0].mxu0 %v2490
        %v3685 = vpop.f32.mrb[0].mxu0
        %v3686 = vadd.f32 %v3549, %v3685
        %v3687 = vpop.f32.mrb[0].mxu0
        %v3688 = vpop.f32.mrb[0].mxu0
        %v3689 = vadd.f32 %v3552, %v3688
        %v3690 = vpop.f32.mrb[0].mxu0
        %3691 = vmatprep.mubr.bf16.mxu0 %v2495
        %3692 = vmatmul.mubr.bf16.gmra.mrb[0].mxu0 %v2494
        %v3693 = vpop.f32.mrb[0].mxu0
        %v3694 = vadd.f32 %v3557, %v3693
        %v3695 = vpop.f32.mrb[0].mxu0
        %v3696 = vpop.f32.mrb[0].mxu0
        %v3697 = vadd.f32 %v3560, %v3696
        %v3698 = vpop.f32.mrb[0].mxu0
        %3699 = vmatprep.mubr.bf16.mxu0 %v2499
        %3700 = vmatmul.mubr.bf16.gmra.mrb[0].mxu0 %v2498
        %v3701 = vpop.f32.mrb[0].mxu0
        %v3702 = vadd.f32 %v3565, %v3701
        %v3703 = vpop.f32.mrb[0].mxu0
        %v3704 = vpop.f32.mrb[0].mxu0
        %v3705 = vadd.f32 %v3568, %v3704
        %v3706 = vpop.f32.mrb[0].mxu0
        %3707 = vmatprep.mubr.bf16.mxu0 %v2503
        %3708 = vmatmul.mubr.bf16.gmra.mrb[0].mxu0 %v2502
        %v3709 = vpop.f32.mrb[0].mxu0
        %v3710 = vadd.f32 %v3573, %v3709
        %v3711 = vpop.f32.mrb[0].mxu0
        %v3712 = vpop.f32.mrb[0].mxu0
        %v3713 = vadd.f32 %v3576, %v3712
        %v3714 = vpop.f32.mrb[0].mxu0
        %3715 = vmatprep.mubr.bf16.mxu0 %v2507
        %3716 = vmatmul.mubr.bf16.gmra.mrb[0].mxu0 %v2506
        %v3717 = vpop.f32.mrb[0].mxu0
        %v3718 = vadd.f32 %v3581, %v3717
        %v3719 = vpop.f32.mrb[0].mxu0
        %v3720 = vpop.f32.mrb[0].mxu0
        %v3721 = vadd.f32 %v3584, %v3720
        %v3722 = vpop.f32.mrb[0].mxu0
        %3723 = vmatprep.mubr.bf16.mxu0 %v2511
        %3724 = vmatmul.mubr.bf16.gmra.mrb[0].mxu0 %v2510
        %v3725 = vpop.f32.mrb[0].mxu0
        %v3726 = vadd.f32 %v3589, %v3725
        %v3727 = vpop.f32.mrb[0].mxu0
        %v3728 = vpop.f32.mrb[0].mxu0
        %v3729 = vadd.f32 %v3592, %v3728
        %v3730 = vpop.f32.mrb[0].mxu0
        %3731 = vmatprep.mubr.bf16.mxu0 %v2515
        %3732 = vmatmul.mubr.bf16.gmra.mrb[0].mxu0 %v2514
        %v3733 = vpop.f32.mrb[0].mxu0
        %v3734 = vadd.f32 %v3597, %v3733
        %v3735 = vpop.f32.mrb[0].mxu0
        %v3736 = vpop.f32.mrb[0].mxu0
        %v3737 = vadd.f32 %v3600, %v3736
        %v3738 = vpop.f32.mrb[0].mxu0
        %3739 = vmatprep.mubr.bf16.mxu0 %v2519
        %3740 = vmatmul.mubr.bf16.gmra.mrb[0].mxu0 %v2518
        %v3741 = vpop.f32.mrb[0].mxu0
        %v3742 = vadd.f32 %v3605, %v3741
        %v3743 = vpop.f32.mrb[0].mxu0
        %v3744 = vpop.f32.mrb[0].mxu0
        %v3745 = vadd.f32 %v3608, %v3744
        %v3746 = vpop.f32.mrb[0].mxu0
        %3747 = vmatprep.mubr.bf16.mxu0 %v2523
        %3748 = vmatmul.mubr.bf16.gmra.mrb[0].mxu0 %v2522
        %v3749 = vpop.f32.mrb[0].mxu0
        %v3750 = vadd.f32 %v3613, %v3749
        %v3751 = vpop.f32.mrb[0].mxu0
        %v3752 = vpop.f32.mrb[0].mxu0
        %v3753 = vadd.f32 %v3616, %v3752
        %v3754 = vpop.f32.mrb[0].mxu0
        %3755 = vmatprep.mubr.bf16.mxu0 %v2527
        %3756 = vmatmul.mubr.bf16.gmra.mrb[0].mxu0 %v2526
        %v3757 = vpop.f32.mrb[0].mxu0
        %v3758 = vadd.f32 %v3621, %v3757
        %v3759 = vpop.f32.mrb[0].mxu0
        %v3760 = vpop.f32.mrb[0].mxu0
        %v3761 = vadd.f32 %v3624, %v3760
        %v3762 = vpop.f32.mrb[0].mxu0
        %3763 = vmatprep.mubr.bf16.mxu0 %v2531
        %3764 = vmatmul.mubr.bf16.gmra.mrb[0].mxu0 %v2530
        %v3765 = vpop.f32.mrb[0].mxu0
        %v3766 = vadd.f32 %v3629, %v3765
        %v3767 = vpop.f32.mrb[0].mxu0
        %v3768 = vpop.f32.mrb[0].mxu0
        %v3769 = vadd.f32 %v3632, %v3768
        %v3770 = vpop.f32.mrb[0].mxu0
        %3771 = vdwg.mxu0
        %v3772 = vadd.f32 %v2402, %v3370
        %v3773 = vadd.f32 %v2403, %v3372
        %v3774 = vadd.f32 %v2404, %v3670
        %v3775 = vadd.f32 %v2405, %v3374
        %v3776 = vadd.f32 %v2406, %v3376
        %v3777 = vadd.f32 %v2407, %v3673
        %v3778 = vadd.f32 %v2408, %v3380
        %v3779 = vadd.f32 %v2409, %v3382
        %v3780 = vadd.f32 %v2410, %v3678
        %v3781 = vadd.f32 %v2411, %v3384
        %v3782 = vadd.f32 %v2412, %v3386
        %v3783 = vadd.f32 %v2413, %v3681
        %v3784 = vadd.f32 %v2414, %v3390
        %v3785 = vadd.f32 %v2415, %v3392
        %v3786 = vadd.f32 %v2416, %v3686
        %v3787 = vadd.f32 %v2417, %v3394
        %v3788 = vadd.f32 %v2418, %v3396
        %v3789 = vadd.f32 %v2419, %v3689
        %v3790 = vadd.f32 %v2420, %v3400
        %v3791 = vadd.f32 %v2421, %v3402
        %v3792 = vadd.f32 %v2422, %v3694
        %v3793 = vadd.f32 %v2423, %v3404
        %v3794 = vadd.f32 %v2424, %v3406
        %v3795 = vadd.f32 %v2425, %v3697
        %v3796 = vadd.f32 %v2426, %v3410
        %v3797 = vadd.f32 %v2427, %v3412
        %v3798 = vadd.f32 %v2428, %v3702
        %v3799 = vadd.f32 %v2429, %v3414
        %v3800 = vadd.f32 %v2430, %v3416
        %v3801 = vadd.f32 %v2431, %v3705
        %v3802 = vadd.f32 %v2432, %v3420
        %v3803 = vadd.f32 %v2433, %v3422
        %v3804 = vadd.f32 %v2434, %v3710
        %v3805 = vadd.f32 %v2435, %v3424
        %v3806 = vadd.f32 %v2436, %v3426
        %v3807 = vadd.f32 %v2437, %v3713
        %v3808 = vadd.f32 %v2438, %v3430
        %v3809 = vadd.f32 %v2439, %v3432
        %v3810 = vadd.f32 %v2440, %v3718
        %v3811 = vadd.f32 %v2441, %v3434
        %v3812 = vadd.f32 %v2442, %v3436
        %v3813 = vadd.f32 %v2443, %v3721
        %v3814 = vadd.f32 %v2444, %v3440
        %v3815 = vadd.f32 %v2445, %v3442
        %v3816 = vadd.f32 %v2446, %v3726
        %v3817 = vadd.f32 %v2447, %v3444
        %v3818 = vadd.f32 %v2448, %v3446
        %v3819 = vadd.f32 %v2449, %v3729
        %v3820 = vadd.f32 %v2450, %v3450
        %v3821 = vadd.f32 %v2451, %v3452
        %v3822 = vadd.f32 %v2452, %v3734
        %v3823 = vadd.f32 %v2453, %v3454
        %v3824 = vadd.f32 %v2454, %v3456
        %v3825 = vadd.f32 %v2455, %v3737
        %v3826 = vadd.f32 %v2456, %v3460
        %v3827 = vadd.f32 %v2457, %v3462
        %v3828 = vadd.f32 %v2458, %v3742
        %v3829 = vadd.f32 %v2459, %v3464
        %v3830 = vadd.f32 %v2460, %v3466
        %v3831 = vadd.f32 %v2461, %v3745
        %v3832 = vadd.f32 %v2462, %v3470
        %v3833 = vadd.f32 %v2463, %v3472
        %v3834 = vadd.f32 %v2464, %v3750
        %v3835 = vadd.f32 %v2465, %v3474
        %v3836 = vadd.f32 %v2466, %v3476
        %v3837 = vadd.f32 %v2467, %v3753
        %v3838 = vadd.f32 %v2468, %v3480
        %v3839 = vadd.f32 %v2469, %v3482
        %v3840 = vadd.f32 %v2470, %v3758
        %v3841 = vadd.f32 %v2471, %v3484
        %v3842 = vadd.f32 %v2472, %v3486
        %v3843 = vadd.f32 %v2473, %v3761
        %v3844 = vadd.f32 %v2474, %v3490
        %v3845 = vadd.f32 %v2475, %v3492
        %v3846 = vadd.f32 %v2476, %v3766
        %v3847 = vadd.f32 %v2477, %v3494
        %v3848 = vadd.f32 %v2478, %v3496
        %v3849 = vadd.f32 %v2479, %v3769
        %3850 = vst [vmem:[#allocation12] sm:$0xff] %v3772
        %3851 = vst [vmem:[#allocation12 + $0x8] sm:$0xff] %v3773
        %3852 = vst [vmem:[#allocation12 + $0x10] sm:$0xff] %v3774
        %3853 = vst [vmem:[#allocation12 + $0x18] sm:$0xff] %v3775
        %3854 = vst [vmem:[#allocation12 + $0x20] sm:$0xff] %v3776
        %3855 = vst [vmem:[#allocation12 + $0x28] sm:$0xff] %v3777
        %3856 = vst [vmem:[#allocation12 + $0x30] sm:$0xff] %v3778
        %3857 = vst [vmem:[#allocation12 + $0x38] sm:$0xff] %v3779
        %3858 = vst [vmem:[#allocation12 + $0x40] sm:$0xff] %v3780
        %3859 = vst [vmem:[#allocation12 + $0x48] sm:$0xff] %v3781
        %3860 = vst [vmem:[#allocation12 + $0x50] sm:$0xff] %v3782
        %3861 = vst [vmem:[#allocation12 + $0x58] sm:$0xff] %v3783
        %3862 = vst [vmem:[#allocation12 + $0x60] sm:$0xff] %v3784
        %3863 = vst [vmem:[#allocation12 + $0x68] sm:$0xff] %v3785
        %3864 = vst [vmem:[#allocation12 + $0x70] sm:$0xff] %v3786
        %3865 = vst [vmem:[#allocation12 + $0x78] sm:$0xff] %v3787
        %3866 = vst [vmem:[#allocation12 + $0x80] sm:$0xff] %v3788
        %3867 = vst [vmem:[#allocation12 + $0x88] sm:$0xff] %v3789
        %3868 = vst [vmem:[#allocation12 + $0x90] sm:$0xff] %v3790
        %3869 = vst [vmem:[#allocation12 + $0x98] sm:$0xff] %v3791
        %3870 = vst [vmem:[#allocation12 + $0xa0] sm:$0xff] %v3792
        %3871 = vst [vmem:[#allocation12 + $0xa8] sm:$0xff] %v3793
        %3872 = vst [vmem:[#allocation12 + $0xb0] sm:$0xff] %v3794
        %3873 = vst [vmem:[#allocation12 + $0xb8] sm:$0xff] %v3795
        %3874 = vst [vmem:[#allocation12 + $0xc0] sm:$0xff] %v3796
        %3875 = vst [vmem:[#allocation12 + $0xc8] sm:$0xff] %v3797
        %3876 = vst [vmem:[#allocation12 + $0xd0] sm:$0xff] %v3798
        %3877 = vst [vmem:[#allocation12 + $0xd8] sm:$0xff] %v3799
        %3878 = vst [vmem:[#allocation12 + $0xe0] sm:$0xff] %v3800
        %3879 = vst [vmem:[#allocation12 + $0xe8] sm:$0xff] %v3801
        %3880 = vst [vmem:[#allocation12 + $0xf0] sm:$0xff] %v3802
        %3881 = vst [vmem:[#allocation12 + $0xf8] sm:$0xff] %v3803
        %3882 = vst [vmem:[#allocation12 + $0x100] sm:$0xff] %v3804
        %3883 = vst [vmem:[#allocation12 + $0x108] sm:$0xff] %v3805
        %3884 = vst [vmem:[#allocation12 + $0x110] sm:$0xff] %v3806
        %3885 = vst [vmem:[#allocation12 + $0x118] sm:$0xff] %v3807
        %3886 = vst [vmem:[#allocation12 + $0x120] sm:$0xff] %v3808
        %3887 = vst [vmem:[#allocation12 + $0x128] sm:$0xff] %v3809
        %3888 = vst [vmem:[#allocation12 + $0x130] sm:$0xff] %v3810
        %3889 = vst [vmem:[#allocation12 + $0x138] sm:$0xff] %v3811
        %3890 = vst [vmem:[#allocation12 + $0x140] sm:$0xff] %v3812
        %3891 = vst [vmem:[#allocation12 + $0x148] sm:$0xff] %v3813
        %3892 = vst [vmem:[#allocation12 + $0x150] sm:$0xff] %v3814
        %3893 = vst [vmem:[#allocation12 + $0x158] sm:$0xff] %v3815
        %3894 = vst [vmem:[#allocation12 + $0x160] sm:$0xff] %v3816
        %3895 = vst [vmem:[#allocation12 + $0x168] sm:$0xff] %v3817
        %3896 = vst [vmem:[#allocation12 + $0x170] sm:$0xff] %v3818
        %3897 = vst [vmem:[#allocation12 + $0x178] sm:$0xff] %v3819
        %3898 = vst [vmem:[#allocation12 + $0x180] sm:$0xff] %v3820
        %3899 = vst [vmem:[#allocation12 + $0x188] sm:$0xff] %v3821
        %3900 = vst [vmem:[#allocation12 + $0x190] sm:$0xff] %v3822
        %3901 = vst [vmem:[#allocation12 + $0x198] sm:$0xff] %v3823
        %3902 = vst [vmem:[#allocation12 + $0x1a0] sm:$0xff] %v3824
        %3903 = vst [vmem:[#allocation12 + $0x1a8] sm:$0xff] %v3825
        %3904 = vst [vmem:[#allocation12 + $0x1b0] sm:$0xff] %v3826
        %3905 = vst [vmem:[#allocation12 + $0x1b8] sm:$0xff] %v3827
        %3906 = vst [vmem:[#allocation12 + $0x1c0] sm:$0xff] %v3828
        %3907 = vst [vmem:[#allocation12 + $0x1c8] sm:$0xff] %v3829
        %3908 = vst [vmem:[#allocation12 + $0x1d0] sm:$0xff] %v3830
        %3909 = vst [vmem:[#allocation12 + $0x1d8] sm:$0xff] %v3831
        %3910 = vst [vmem:[#allocation12 + $0x1e0] sm:$0xff] %v3832
        %3911 = vst [vmem:[#allocation12 + $0x1e8] sm:$0xff] %v3833
        %3912 = vst [vmem:[#allocation12 + $0x1f0] sm:$0xff] %v3834
        %3913 = vst [vmem:[#allocation12 + $0x1f8] sm:$0xff] %v3835
        %3914 = vst [vmem:[#allocation12 + $0x200] sm:$0xff] %v3836
        %3915 = vst [vmem:[#allocation12 + $0x208] sm:$0xff] %v3837
        %3916 = vst [vmem:[#allocation12 + $0x210] sm:$0xff] %v3838
        %3917 = vst [vmem:[#allocation12 + $0x218] sm:$0xff] %v3839
        %3918 = vst [vmem:[#allocation12 + $0x220] sm:$0xff] %v3840
        %3919 = vst [vmem:[#allocation12 + $0x228] sm:$0xff] %v3841
        %3920 = vst [vmem:[#allocation12 + $0x230] sm:$0xff] %v3842
        %3921 = vst [vmem:[#allocation12 + $0x238] sm:$0xff] %v3843
        %3922 = vst [vmem:[#allocation12 + $0x240] sm:$0xff] %v3844
        %3923 = vst [vmem:[#allocation12 + $0x248] sm:$0xff] %v3845
        %3924 = vst [vmem:[#allocation12 + $0x250] sm:$0xff] %v3846
        %3925 = vst [vmem:[#allocation12 + $0x258] sm:$0xff] %v3847
        %3926 = vst [vmem:[#allocation12 + $0x260] sm:$0xff] %v3848
        %3927 = vst [vmem:[#allocation12 + $0x268] sm:$0xff] %v3849
        // Predicated region
        $region65: #{tpu_custom_call.1} parent=39 // pred_check
          %p3928 = pneg %p157
        $region66: #{tpu_custom_call.1} parent=39 // pred_check_branch
          %3930 = sbr.rel (%p3928) target = $region68
        $region67: #{tpu_custom_call.1} parent=39 // pred_region
          %s3932 = ssub.s32 9984, 9984
          %3933 = vsyncadd [#allocation5], %s3932
          %s3934 = sshll.u32 [#allocation12], 4
          %s3935 = int_to_ptr.vmem [resolvable:$true] %s3934
          %3940 = dma.vmem_to_hbm [thread:$0]  %s3935, 9984, %s5, [#allocation5], 384, 384, 24
        $region68: #{tpu_custom_call.1} parent=39 // pred_fallthru
          _
        // Predicated region
        $region69: #{tpu_custom_call.1} parent=39 // pred_check
          %p3941 = pneg %p157
        $region70: #{tpu_custom_call.1} parent=39 // pred_check_branch
          %3943 = sbr.rel (%p3941) target = $region72
        $region71: #{tpu_custom_call.1} parent=39 // pred_region
          %3944 = dma.done [#allocation5], 9984
        $region72: #{tpu_custom_call.1} parent=39 // pred_fallthru
          _
      $region40: #{tpu_custom_call.1} parent=5 // pred_fallthru
        _
      %p3945 = scmp.le.s32.totalorder 2, %s19
      // Predicated region
      $region73: #{tpu_custom_call.1} parent=5 // pred_check
        %p3946 = pneg %p3945
      $region74: #{tpu_custom_call.1} parent=5 // pred_check_branch
        %3948 = sbr.rel (%p3946) target = $region76
      $region75: #{tpu_custom_call.1} parent=5 // pred_region
        %s3949 = ssub.s32 %s19, 2
      $region76: #{tpu_custom_call.1} parent=5 // pred_fallthru
        _
    $region6: #{tpu_custom_call.1} parent=1 // loop_footer
      %s23 = sadd.s32 1, %s19
    $region7: #{tpu_custom_call.1} parent=1 // loop_footer_branch
      %18 = sbr.rel target = $region3
    $region8: #{tpu_custom_call.1} parent=1 // loop_exit
      _
    %3950 = vsyncpa [#allocation4], 1
    %s3951 = scalar_lea.sflag [#allocation4], 1
    %3952 = vsyncpa %s3951, 1
    %3953 = vsyncpa [#allocation7], 1
    %s3954 = scalar_lea.sflag [#allocation7], 1
    %3955 = vsyncpa %s3954, 1
    %3956 = vsyncpa [#allocation10], 1
    %s3957 = scalar_lea.sflag [#allocation10], 1
    %3958 = vsyncpa %s3957, 1
    %3959 = vsyncpa [#allocation5], 1
    %s3960 = scalar_lea.sflag [#allocation5], 1
    %3961 = vsyncpa %s3960, 1

</llo_original>
